<compile_context>
chip_gen: v6e
topology: v6e:2x2x1
jax: 0.10.0
libtpu: 0.0.40
codegen_flags: <defaults>
</compile_context>

<pallas_src>
import functools

import jax
import jax.numpy as jnp
from jax.experimental import pallas as pl
from jax.experimental.pallas import tpu as pltpu


MXU_DT = jnp.bfloat16   # MXU operand dtype (f32 accumulation everywhere)


# ----------------------------------------------------------------------------
# Fused Pallas kernel: encoder + decoder + classifier
# ----------------------------------------------------------------------------

def _t5_fused_kernel(
    # activations / compact lane-concatenated biases / head bookkeeping
    x_enc_ref, x_dec_ref,
    bias_enc_ref, bias_dec_ref, bias_cross_ref,
    head_mask_ref, sum_blk_e_ref, sum_blk_d_ref,
    # encoder weights (stacked over layers; q/k/v stacked on a leading axis)
    e_ln1_ref, e_qkv_ref, e_o_ref, e_ln2_ref, e_wi_ref, e_wo_ref, e_fln_ref,
    # decoder weights
    d_ln1_ref, d_qkv_ref, d_o_ref, d_ln2_ref, d_cq_ref, d_ckv_ref, d_co_ref,
    d_ln3_ref, d_wi_ref, d_wo_ref, d_fln_ref,
    # classifier (lane-padded to 128)
    clf_w_ref, clf_b_ref,
    # output: logits for decoder position 0 of each batch, padded to 128 lanes
    out_ref,
    *, B, Te, Td, H, Dh, D, F, n_enc, n_dec):

    HD = H * Dh

    def rms(x, g):
        # T5 LayerNorm: no mean subtraction, no bias (f32).
        var = jnp.mean(x * x, axis=-1, keepdims=True)
        return x * jax.lax.rsqrt(var + 1e-6) * g

    def mm(x, w):
        # bf16 operands into the MXU (fast path on v6e/v7x, supported on v5e), f32 accum.
        return jnp.dot(x.astype(w.dtype), w, preferred_element_type=jnp.float32)

    # Hoisted once, shared by every layer / attention (review item 2).
    head_mask = head_mask_ref[...]                     # (H, HD) 0/1: lane d belongs to head h
    bias_enc = bias_enc_ref[...]                       # (B, Te, H*Te)
    bias_dec = bias_dec_ref[...]                       # (B, Td, H*Td)
    bias_cross = bias_cross_ref[...]                   # (B, 1,  H*Te)
    sum_blk_e = sum_blk_e_ref[...]                     # (H*Te, H*Te) same-head indicator
    sum_blk_d = sum_blk_d_ref[...]                     # (H*Td, H*Td)

    def attention(q2d, k2d, v2d, o_w, bias, sum_blk, Tq, Tk):
        """All heads in one shot (no per-head loop, no lane slicing).

        K/V are expanded block-diagonally along the key axis: row (h*Tk + k) keeps only
        head h's lanes of key/value k.  One batched matmul then yields every head's
        scores, one more yields every head's context; per-head softmax sums come from a
        0/1 block matrix on the MXU.  T5 attention: no 1/sqrt(d) scaling."""
        q3 = q2d.reshape(B, Tq, HD)
        k3 = k2d.reshape(B, Tk, HD)
        v3 = v2d.reshape(B, Tk, HD)
        kblk = (k3[:, None, :, :] * head_mask[None, :, None, :]).reshape(B, H * Tk, HD)
        vblk = (v3[:, None, :, :] * head_mask[None, :, None, :]).reshape(B, H * Tk, HD)
        s = jnp.einsum('bqd,bkd->bqk', q3.astype(MXU_DT), kblk.astype(MXU_DT),
                       preferred_element_type=jnp.float32)           # (B, Tq, H*Tk)
        s = s + bias                                                  # pos bias + masks
        # Per-(b,q) max shift is constant within each head -> softmax-invariant & stable.
        s = s - jnp.max(s, axis=-1, keepdims=True)
        p = jnp.exp(s)
        p2 = p.reshape(B * Tq, H * Tk)
        denom = jnp.dot(p2, sum_blk, preferred_element_type=jnp.float32)  # per-head sums
        p2 = p2 * pl.reciprocal(denom, approx=True)
        p3 = p2.reshape(B, Tq, H * Tk)
        ctx = jnp.einsum('bqk,bkd->bqd', p3.astype(MXU_DT), vblk.astype(MXU_DT),
                         preferred_element_type=jnp.float32)          # (B, Tq, HD)
        return mm(ctx.reshape(B * Tq, HD), o_w)                       # ONE o-projection

    # ------------------------------ encoder ------------------------------
    x = x_enc_ref[...]                                  # (B*Te, D) f32
    for l in range(n_enc):   # unrolled (n_enc == 2); use lax.fori_loop for deep configs
        hn = rms(x, e_ln1_ref[l])
        q = mm(hn, e_qkv_ref[l, 0])                     # leading-axis Q/K/V split: free
        k = mm(hn, e_qkv_ref[l, 1])
        v = mm(hn, e_qkv_ref[l, 2])
        x = x + attention(q, k, v, e_o_ref[l], bias_enc, sum_blk_e, Te, Te)
        hn = rms(x, e_ln2_ref[l])
        x = x + mm(jnp.maximum(mm(hn, e_wi_ref[l]), 0.0), e_wo_ref[l])
    enc_out = rms(x, e_fln_ref[...])                    # (B*Te, D)

    # ------------------------------ decoder ------------------------------
    y = x_dec_ref[...]                                  # (B*Td, D)
    for l in range(n_dec):
        # self attention (causal + padding mask + relative position bias)
        hn = rms(y, d_ln1_ref[l])
        q = mm(hn, d_qkv_ref[l, 0])
        k = mm(hn, d_qkv_ref[l, 1])
        v = mm(hn, d_qkv_ref[l, 2])
        y = y + attention(q, k, v, d_o_ref[l], bias_dec, sum_blk_d, Td, Td)
        # cross attention (no position bias)
        hn = rms(y, d_ln2_ref[l])
        qc = mm(hn, d_cq_ref[l])
        kc = mm(enc_out, d_ckv_ref[l, 0])
        vc = mm(enc_out, d_ckv_ref[l, 1])
        y = y + attention(qc, kc, vc, d_co_ref[l], bias_cross, sum_blk_e, Td, Te)
        # feed-forward (DenseReluDense)
        hn = rms(y, d_ln3_ref[l])
        y = y + mm(jnp.maximum(mm(hn, d_wi_ref[l]), 0.0), d_wo_ref[l])

    # ------------- classifier: only decoder position 0 of each batch -------------
    # output['last_hidden_state'][:, 0, :] -> dropout(0.2) is identity at eval -> Linear.
    y0 = y.reshape(B, Td, D)[:, 0:1, :].reshape(B, D)
    dec0 = rms(y0, d_fln_ref[...])                      # decoder final RMSNorm (B rows only)
    out_ref[...] = mm(dec0, clf_w_ref[...]) + clf_b_ref[...]   # lane-dense (B, 128) store


# ----------------------------------------------------------------------------
# Relative-position bias tables (plain JAX: gathers / integer bucketing)
# ----------------------------------------------------------------------------

def relative_position_bucket(relative_position, bidirectional, num_buckets, max_distance):
    relative_buckets = jnp.zeros_like(relative_position)
    if bidirectional:
        num_buckets = num_buckets // 2
        relative_buckets = relative_buckets + (relative_position > 0).astype(jnp.int32) * num_buckets
        relative_position = jnp.abs(relative_position)
    else:
        relative_position = -jnp.minimum(relative_position, 0)
    max_exact = num_buckets // 2
    is_small = relative_position < max_exact
    rp = jnp.maximum(relative_position, 1).astype(jnp.float32)
    rel_if_large = max_exact + (
        jnp.log(rp / max_exact) / jnp.log(max_distance / max_exact) * (num_buckets - max_exact)
    ).astype(jnp.int32)
    rel_if_large = jnp.minimum(rel_if_large, num_buckets - 1)
    return relative_buckets + jnp.where(is_small, relative_position, rel_if_large)


def compute_position_bias(rel_emb, qlen, klen, bidirectional, cfg):
    ctx = jnp.arange(qlen, dtype=jnp.int32)[:, None]
    mem = jnp.arange(klen, dtype=jnp.int32)[None, :]
    rel_pos = mem - ctx
    buckets = relative_position_bucket(
        rel_pos, bidirectional, cfg["num_buckets"], cfg["max_distance"])
    values = rel_emb[buckets]                                    # (qlen, klen, H)
    return jnp.transpose(values, (2, 0, 1)).astype(jnp.float32)  # (H, qlen, klen)


# ----------------------------------------------------------------------------
# Forward pass wrapper (embeddings / bias layout in JAX, everything else in one kernel)
# ----------------------------------------------------------------------------

def t5_clf_forward(params, cfg, input_ids, attention_mask,
                   decoder_input_ids, decoder_attention_mask):
    D, H, Dh, F = cfg["d_model"], cfg["n_heads"], cfg["d_kv"], cfg["d_ff"]
    HD = H * Dh
    B, Te = input_ids.shape
    Td = decoder_input_ids.shape[1]
    NPAD = 128  # lane-dense classifier output width; real logits are the first num_labels

    # Token embedding gathers stay in plain JAX (data-dependent gather).
    x_enc = params["embed"][input_ids].reshape(B * Te, D).astype(jnp.float32)
    x_dec = params["embed"][decoder_input_ids].reshape(B * Td, D).astype(jnp.float32)

    # Relative position biases and masks, combined ONCE here (hoisted out of all layer/head
    # loops) in the lane-concatenated layout bias[b, q, h*Tk + k] used by the kernel.
    enc_pos = compute_position_bias(params["enc_rel_bias"], Te, Te, True, cfg)   # (H,Te,Te)
    dec_pos = compute_position_bias(params["dec_rel_bias"], Td, Td, False, cfg)  # (H,Td,Td)
    enc_mask_add = ((1.0 - attention_mask) * -1e9).astype(jnp.float32)           # (B,Te)
    causal = jnp.tril(jnp.ones((Td, Td), jnp.float32))
    dec_self_mask_add = ((1.0 - causal[None, :, :] * decoder_attention_mask[:, None, :])
                         * -1e9).astype(jnp.float32)                             # (B,Td,Td)

    enc_pos_l = jnp.transpose(enc_pos, (1, 0, 2)).reshape(Te, H * Te)            # [q, h*Te+k]
    dec_pos_l = jnp.transpose(dec_pos, (1, 0, 2)).reshape(Td, H * Td)
    bias_enc = enc_pos_l[None, :, :] + jnp.tile(enc_mask_add, (1, H))[:, None, :]  # (B,Te,H*Te)
    bias_dec = dec_pos_l[None, :, :] + jnp.tile(dec_self_mask_add, (1, 1, H))      # (B,Td,H*Td)
    bias_cross = jnp.tile(enc_mask_add, (1, H))[:, None, :]                        # (B,1,H*Te)

    # Head bookkeeping constants for the merged-heads (block-diagonal) attention.
    lane_head = jnp.arange(HD, dtype=jnp.int32) // Dh
    head_mask = (lane_head[None, :] == jnp.arange(H, dtype=jnp.int32)[:, None]
                 ).astype(jnp.float32)                                             # (H, HD)

    def sum_block(Tk):
        col_head = jnp.arange(H * Tk, dtype=jnp.int32) // Tk
        return (col_head[:, None] == col_head[None, :]).astype(jnp.float32)        # (H*Tk, H*Tk)

    sum_blk_e = sum_block(Te)
    sum_blk_d = sum_block(Td)

    # Zero-pad classifier to 128 output lanes (sliced back after the kernel).
    clf_w_pad = jnp.zeros((D, NPAD), MXU_DT).at[:, :cfg["num_labels"]].set(
        params["clf_w"].astype(MXU_DT))
    clf_b_pad = jnp.zeros((1, NPAD), jnp.float32).at[0, :cfg["num_labels"]].set(
        params["clf_b"])

    kernel = functools.partial(
        _t5_fused_kernel, B=B, Te=Te, Td=Td, H=H, Dh=Dh, D=D, F=F,
        n_enc=cfg["n_enc"], n_dec=cfg["n_dec"])

    logits_pad = pl.pallas_call(
        kernel,
        out_shape=jax.ShapeDtypeStruct((B, NPAD), jnp.float32),
        # single grid-less invocation, everything VMEM-resident; honest VMEM budget
        compiler_params=pltpu.CompilerParams(vmem_limit_bytes=4 * 1024 * 1024),
    )(
        x_enc, x_dec, bias_enc, bias_dec, bias_cross, head_mask, sum_blk_e, sum_blk_d,
        params["enc"]["ln1"], params["enc"]["qkv"], params["enc"]["o"],
        params["enc"]["ln2"], params["enc"]["wi"], params["enc"]["wo"],
        params["enc_final_ln"],
        params["dec"]["ln1"], params["dec"]["qkv"], params["dec"]["o"],
        params["dec"]["ln2"], params["dec"]["cq"], params["dec"]["ckv"],
        params["dec"]["co"], params["dec"]["ln3"], params["dec"]["wi"],
        params["dec"]["wo"], params["dec_final_ln"],
        clf_w_pad, clf_b_pad,
    )

    logits = logits_pad[:, :cfg["num_labels"]]
    return {"logits": logits}


# ----------------------------------------------------------------------------
# Deterministic parameter init (shapes implied by the module; no checkpoint load)
# ----------------------------------------------------------------------------

def init_params(key, cfg):
    D, H, Dh, F = cfg["d_model"], cfg["n_heads"], cfg["d_kv"], cfg["d_ff"]
    HD = H * Dh
    n_enc, n_dec = cfg["n_enc"], cfg["n_dec"]
    ks = iter(jax.random.split(key, 64))

    def nrm(shape, std=0.02, dtype=MXU_DT):
        return (std * jax.random.normal(next(ks), shape)).astype(dtype)

    enc = {
        "ln1": jnp.ones((n_enc, 1, D), jnp.float32),
        "qkv": nrm((n_enc, 3, D, HD)),      # Q|K|V stacked on a leading axis
        "o":   nrm((n_enc, HD, D)),
        "ln2": jnp.ones((n_enc, 1, D), jnp.float32),
        "wi":  nrm((n_enc, D, F)),
        "wo":  nrm((n_enc, F, D)),
    }
    dec = {
        "ln1": jnp.ones((n_dec, 1, D), jnp.float32),
        "qkv": nrm((n_dec, 3, D, HD)),      # self-attn Q|K|V
        "o":   nrm((n_dec, HD, D)),
        "ln2": jnp.ones((n_dec, 1, D), jnp.float32),
        "cq":  nrm((n_dec, D, HD)),         # cross-attn query
        "ckv": nrm((n_dec, 2, D, HD)),      # cross-attn K|V stacked on a leading axis
        "co":  nrm((n_dec, HD, D)),
        "ln3": jnp.ones((n_dec, 1, D), jnp.float32),
        "wi":  nrm((n_dec, D, F)),
        "wo":  nrm((n_dec, F, D)),
    }
    return {
        "embed": (0.5 * jax.random.normal(next(ks), (cfg["vocab"], D))).astype(jnp.float32),
        "enc_rel_bias": (0.02 * jax.random.normal(next(ks), (cfg["num_buckets"], H))
                         ).astype(jnp.float32),
        "dec_rel_bias": (0.02 * jax.random.normal(next(ks), (cfg["num_buckets"], H))
                         ).astype(jnp.float32),
        "enc": enc,
        "enc_final_ln": jnp.ones((1, D), jnp.float32),
        "dec": dec,
        "dec_final_ln": jnp.ones((1, D), jnp.float32),
        # classifier: nn.Linear(hidden, 30) init'd with std=0.5, zero bias (per _init_weights)
        "clf_w": (0.5 * jax.random.normal(next(ks), (D, cfg["num_labels"]))).astype(jnp.float32),
        "clf_b": jnp.zeros((cfg["num_labels"],), jnp.float32),
    }


# ----------------------------------------------------------------------------
# Main
# ----------------------------------------------------------------------------

if __name__ == "__main__":
    cfg = dict(vocab=64, d_model=32, n_heads=4, d_kv=8, d_ff=64,
               n_enc=2, n_dec=2, num_buckets=32, max_distance=128, num_labels=30)

    key = jax.random.PRNGKey(0)
    pkey, k1, k2 = jax.random.split(key, 3)
    params = init_params(pkey, cfg)

    B, Te, Td = 2, 8, 8
    input_ids = jax.random.randint(k1, (B, Te), 0, cfg["vocab"], dtype=jnp.int32)
    decoder_input_ids = jax.random.randint(k2, (B, Td), 0, cfg["vocab"], dtype=jnp.int32)
    attention_mask = jnp.ones((B, Te), jnp.float32).at[1, 6:].set(0.0)
    decoder_attention_mask = jnp.ones((B, Td), jnp.float32).at[1, 5:].set(0.0)

    fwd = jax.jit(lambda p, ii, am, dii, dam: t5_clf_forward(p, cfg, ii, am, dii, dam))
    out = fwd(params, input_ids, attention_mask, decoder_input_ids, decoder_attention_mask)
    logits = jax.block_until_ready(out["logits"])

    assert logits.shape == (B, cfg["num_labels"])
    assert bool(jnp.all(jnp.isfinite(logits)))
    print("KERNEL_OK")
</pallas_src>

<mosaic_0001>
module attributes {stable_mosaic.version = 11 : i64} {
  func.func @_t5_fused_kernel(%arg0: memref<16x32xf32, #tpu.memory_space<vmem>>, %arg1: memref<16x32xf32, #tpu.memory_space<vmem>>, %arg2: memref<2x8x32xf32, #tpu.memory_space<vmem>>, %arg3: memref<2x8x32xf32, #tpu.memory_space<vmem>>, %arg4: memref<2x1x32xf32, #tpu.memory_space<vmem>>, %arg5: memref<4x32xf32, #tpu.memory_space<vmem>>, %arg6: memref<32x32xf32, #tpu.memory_space<vmem>>, %arg7: memref<32x32xf32, #tpu.memory_space<vmem>>, %arg8: memref<2x1x32xf32, #tpu.memory_space<vmem>>, %arg9: memref<2x3x32x32xbf16, #tpu.memory_space<vmem>>, %arg10: memref<2x32x32xbf16, #tpu.memory_space<vmem>>, %arg11: memref<2x1x32xf32, #tpu.memory_space<vmem>>, %arg12: memref<2x32x64xbf16, #tpu.memory_space<vmem>>, %arg13: memref<2x64x32xbf16, #tpu.memory_space<vmem>>, %arg14: memref<1x32xf32, #tpu.memory_space<vmem>>, %arg15: memref<2x1x32xf32, #tpu.memory_space<vmem>>, %arg16: memref<2x3x32x32xbf16, #tpu.memory_space<vmem>>, %arg17: memref<2x32x32xbf16, #tpu.memory_space<vmem>>, %arg18: memref<2x1x32xf32, #tpu.memory_space<vmem>>, %arg19: memref<2x32x32xbf16, #tpu.memory_space<vmem>>, %arg20: memref<2x2x32x32xbf16, #tpu.memory_space<vmem>>, %arg21: memref<2x32x32xbf16, #tpu.memory_space<vmem>>, %arg22: memref<2x1x32xf32, #tpu.memory_space<vmem>>, %arg23: memref<2x32x64xbf16, #tpu.memory_space<vmem>>, %arg24: memref<2x64x32xbf16, #tpu.memory_space<vmem>>, %arg25: memref<1x32xf32, #tpu.memory_space<vmem>>, %arg26: memref<32x128xbf16, #tpu.memory_space<vmem>>, %arg27: memref<1x128xf32, #tpu.memory_space<vmem>>, %arg28: memref<2x128xf32, #tpu.memory_space<vmem>>) attributes {dimension_semantics = [], scalar_prefetch = 0 : i64, scratch_operands = 0 : i64, tpu.core_type = #tpu.core_type<tc>} {
    %c0 = arith.constant 0 : index
    %c0_0 = arith.constant 0 : index
    %0 = vector.load %arg5[%c0, %c0_0] : memref<4x32xf32, #tpu.memory_space<vmem>>, vector<4x32xf32>
    %c0_1 = arith.constant 0 : index
    %c0_2 = arith.constant 0 : index
    %c0_3 = arith.constant 0 : index
    %1 = vector.load %arg2[%c0_1, %c0_2, %c0_3] : memref<2x8x32xf32, #tpu.memory_space<vmem>>, vector<2x8x32xf32>
    %c0_4 = arith.constant 0 : index
    %c0_5 = arith.constant 0 : index
    %c0_6 = arith.constant 0 : index
    %2 = vector.load %arg3[%c0_4, %c0_5, %c0_6] : memref<2x8x32xf32, #tpu.memory_space<vmem>>, vector<2x8x32xf32>
    %c0_7 = arith.constant 0 : index
    %c0_8 = arith.constant 0 : index
    %c0_9 = arith.constant 0 : index
    %3 = vector.load %arg4[%c0_7, %c0_8, %c0_9] : memref<2x1x32xf32, #tpu.memory_space<vmem>>, vector<2x1x32xf32>
    %c0_10 = arith.constant 0 : index
    %c0_11 = arith.constant 0 : index
    %4 = vector.load %arg6[%c0_10, %c0_11] : memref<32x32xf32, #tpu.memory_space<vmem>>, vector<32x32xf32>
    %c0_12 = arith.constant 0 : index
    %c0_13 = arith.constant 0 : index
    %5 = vector.load %arg7[%c0_12, %c0_13] : memref<32x32xf32, #tpu.memory_space<vmem>>, vector<32x32xf32>
    %c0_14 = arith.constant 0 : index
    %c0_15 = arith.constant 0 : index
    %6 = vector.load %arg0[%c0_14, %c0_15] : memref<16x32xf32, #tpu.memory_space<vmem>>, vector<16x32xf32>
    %c0_16 = arith.constant 0 : index
    %c0_17 = arith.constant 0 : index
    %c0_18 = arith.constant 0 : index
    %7 = vector.load %arg8[%c0_16, %c0_17, %c0_18] : memref<2x1x32xf32, #tpu.memory_space<vmem>>, vector<1x1x32xf32>
    %8 = vector.shape_cast %7 : vector<1x1x32xf32> to vector<1x32xf32>
    %9 = arith.mulf %6, %6 : vector<16x32xf32>
    %cst = arith.constant dense<0.000000e+00> : vector<16xf32>
    %10 = vector.multi_reduction <add>, %9, %cst [1] : vector<16x32xf32> to vector<16xf32>
    %11 = vector.shape_cast %10 : vector<16xf32> to vector<16x1xf32>
    %cst_19 = arith.constant 3.200000e+01 : f32
    %12 = vector.broadcast %cst_19 : f32 to vector<16x1xf32>
    %13 = arith.divf %11, %12 : vector<16x1xf32>
    %cst_20 = arith.constant 9.99999997E-7 : f32
    %14 = vector.broadcast %cst_20 : f32 to vector<16x1xf32>
    %15 = arith.addf %13, %14 : vector<16x1xf32>
    %16 = math.rsqrt %15 : vector<16x1xf32>
    %17 = vector.broadcast %16 : vector<16x1xf32> to vector<16x32xf32>
    %18 = arith.mulf %6, %17 : vector<16x32xf32>
    %19 = vector.broadcast %8 : vector<1x32xf32> to vector<16x32xf32>
    %20 = arith.mulf %18, %19 : vector<16x32xf32>
    %c0_21 = arith.constant 0 : index
    %c0_22 = arith.constant 0 : index
    %c0_23 = arith.constant 0 : index
    %c0_24 = arith.constant 0 : index
    %21 = vector.load %arg9[%c0_21, %c0_22, %c0_23, %c0_24] : memref<2x3x32x32xbf16, #tpu.memory_space<vmem>>, vector<1x1x32x32xbf16>
    %22 = vector.shape_cast %21 : vector<1x1x32x32xbf16> to vector<32x32xbf16>
    %23 = arith.truncf %20 : vector<16x32xf32> to vector<16x32xbf16>
    %cst_25 = arith.constant dense<0.000000e+00> : vector<16x32xf32>
    %24 = tpu.matmul %23, %22, %cst_25 {dimension_numbers = #tpu.dot_dimension_numbers<[1], [0], [0], [1], [0, 0, 1, 1], [], []>} : vector<16x32xbf16>, vector<32x32xbf16>, vector<16x32xf32> -> vector<16x32xf32>
    %c0_26 = arith.constant 0 : index
    %c1 = arith.constant 1 : index
    %c0_27 = arith.constant 0 : index
    %c0_28 = arith.constant 0 : index
    %25 = vector.load %arg9[%c0_26, %c1, %c0_27, %c0_28] : memref<2x3x32x32xbf16, #tpu.memory_space<vmem>>, vector<1x1x32x32xbf16>
    %26 = vector.shape_cast %25 : vector<1x1x32x32xbf16> to vector<32x32xbf16>
    %27 = arith.truncf %20 : vector<16x32xf32> to vector<16x32xbf16>
    %cst_29 = arith.constant dense<0.000000e+00> : vector<16x32xf32>
    %28 = tpu.matmul %27, %26, %cst_29 {dimension_numbers = #tpu.dot_dimension_numbers<[1], [0], [0], [1], [0, 0, 1, 1], [], []>} : vector<16x32xbf16>, vector<32x32xbf16>, vector<16x32xf32> -> vector<16x32xf32>
    %c0_30 = arith.constant 0 : index
    %c2 = arith.constant 2 : index
    %c0_31 = arith.constant 0 : index
    %c0_32 = arith.constant 0 : index
    %29 = vector.load %arg9[%c0_30, %c2, %c0_31, %c0_32] : memref<2x3x32x32xbf16, #tpu.memory_space<vmem>>, vector<1x1x32x32xbf16>
    %30 = vector.shape_cast %29 : vector<1x1x32x32xbf16> to vector<32x32xbf16>
    %31 = arith.truncf %20 : vector<16x32xf32> to vector<16x32xbf16>
    %cst_33 = arith.constant dense<0.000000e+00> : vector<16x32xf32>
    %32 = tpu.matmul %31, %30, %cst_33 {dimension_numbers = #tpu.dot_dimension_numbers<[1], [0], [0], [1], [0, 0, 1, 1], [], []>} : vector<16x32xbf16>, vector<32x32xbf16>, vector<16x32xf32> -> vector<16x32xf32>
    %c0_34 = arith.constant 0 : index
    %c0_35 = arith.constant 0 : index
    %c0_36 = arith.constant 0 : index
    %33 = vector.load %arg10[%c0_34, %c0_35, %c0_36] : memref<2x32x32xbf16, #tpu.memory_space<vmem>>, vector<1x32x32xbf16>
    %34 = vector.shape_cast %33 : vector<1x32x32xbf16> to vector<32x32xbf16>
    %35 = vector.shape_cast %24 : vector<16x32xf32> to vector<2x8x32xf32>
    %36 = vector.shape_cast %28 : vector<16x32xf32> to vector<2x8x32xf32>
    %37 = vector.shape_cast %32 : vector<16x32xf32> to vector<2x8x32xf32>
    %38 = vector.shape_cast %36 : vector<2x8x32xf32> to vector<2x1x8x32xf32>
    %39 = vector.shape_cast %0 : vector<4x32xf32> to vector<1x4x1x32xf32>
    %40 = vector.broadcast %38 : vector<2x1x8x32xf32> to vector<2x4x8x32xf32>
    %41 = vector.broadcast %39 : vector<1x4x1x32xf32> to vector<2x4x8x32xf32>
    %42 = arith.mulf %40, %41 : vector<2x4x8x32xf32>
    %43 = vector.shape_cast %42 : vector<2x4x8x32xf32> to vector<2x32x32xf32>
    %44 = vector.shape_cast %37 : vector<2x8x32xf32> to vector<2x1x8x32xf32>
    %45 = vector.shape_cast %0 : vector<4x32xf32> to vector<1x4x1x32xf32>
    %46 = vector.broadcast %44 : vector<2x1x8x32xf32> to vector<2x4x8x32xf32>
    %47 = vector.broadcast %45 : vector<1x4x1x32xf32> to vector<2x4x8x32xf32>
    %48 = arith.mulf %46, %47 : vector<2x4x8x32xf32>
    %49 = vector.shape_cast %48 : vector<2x4x8x32xf32> to vector<2x32x32xf32>
    %50 = arith.truncf %35 : vector<2x8x32xf32> to vector<2x8x32xbf16>
    %51 = arith.truncf %43 : vector<2x32x32xf32> to vector<2x32x32xbf16>
    "tpu.trace_start"() <{level = 10 : i32, message = "bqd,bkd->bqk"}> : () -> ()
    %cst_37 = arith.constant dense<0.000000e+00> : vector<2x8x32xf32>
    %52 = tpu.matmul %50, %51, %cst_37 {dimension_numbers = #tpu.dot_dimension_numbers<[2], [2], [1], [1], [0, 0, 0, 1, 1, 1], [0], [0]>} : vector<2x8x32xbf16>, vector<2x32x32xbf16>, vector<2x8x32xf32> -> vector<2x8x32xf32>
    "tpu.trace_stop"() : () -> ()
    %53 = arith.addf %52, %1 : vector<2x8x32xf32>
    %cst_38 = arith.constant dense<0xFF800000> : vector<2x8xf32>
    %54 = vector.multi_reduction <maximumf>, %53, %cst_38 [2] : vector<2x8x32xf32> to vector<2x8xf32>
    %55 = vector.shape_cast %54 : vector<2x8xf32> to vector<2x8x1xf32>
    %56 = vector.broadcast %55 : vector<2x8x1xf32> to vector<2x8x32xf32>
    %57 = arith.subf %53, %56 : vector<2x8x32xf32>
    %58 = math.exp %57 : vector<2x8x32xf32>
    %59 = vector.shape_cast %58 : vector<2x8x32xf32> to vector<16x32xf32>
    %cst_39 = arith.constant dense<0.000000e+00> : vector<16x32xf32>
    %60 = tpu.matmul %59, %4, %cst_39 {dimension_numbers = #tpu.dot_dimension_numbers<[1], [0], [0], [1], [0, 0, 1, 1], [], []>} : vector<16x32xf32>, vector<32x32xf32>, vector<16x32xf32> -> vector<16x32xf32>
    %61 = tpu.reciprocal %60 {approx = true} : vector<16x32xf32> -> vector<16x32xf32>
    %62 = arith.mulf %59, %61 : vector<16x32xf32>
    %63 = vector.shape_cast %62 : vector<16x32xf32> to vector<2x8x32xf32>
    %64 = arith.truncf %63 : vector<2x8x32xf32> to vector<2x8x32xbf16>
    %65 = arith.truncf %49 : vector<2x32x32xf32> to vector<2x32x32xbf16>
    "tpu.trace_start"() <{level = 10 : i32, message = "bqk,bkd->bqd"}> : () -> ()
    %cst_40 = arith.constant dense<0.000000e+00> : vector<2x8x32xf32>
    %66 = tpu.matmul %64, %65, %cst_40 {dimension_numbers = #tpu.dot_dimension_numbers<[2], [1], [1], [2], [0, 0, 0, 1, 1, 2], [0], [0]>} : vector<2x8x32xbf16>, vector<2x32x32xbf16>, vector<2x8x32xf32> -> vector<2x8x32xf32>
    "tpu.trace_stop"() : () -> ()
    %67 = vector.shape_cast %66 : vector<2x8x32xf32> to vector<16x32xf32>
    %68 = arith.truncf %67 : vector<16x32xf32> to vector<16x32xbf16>
    %cst_41 = arith.constant dense<0.000000e+00> : vector<16x32xf32>
    %69 = tpu.matmul %68, %34, %cst_41 {dimension_numbers = #tpu.dot_dimension_numbers<[1], [0], [0], [1], [0, 0, 1, 1], [], []>} : vector<16x32xbf16>, vector<32x32xbf16>, vector<16x32xf32> -> vector<16x32xf32>
    %70 = arith.addf %6, %69 : vector<16x32xf32>
    %c0_42 = arith.constant 0 : index
    %c0_43 = arith.constant 0 : index
    %c0_44 = arith.constant 0 : index
    %71 = vector.load %arg11[%c0_42, %c0_43, %c0_44] : memref<2x1x32xf32, #tpu.memory_space<vmem>>, vector<1x1x32xf32>
    %72 = vector.shape_cast %71 : vector<1x1x32xf32> to vector<1x32xf32>
    %73 = arith.mulf %70, %70 : vector<16x32xf32>
    %cst_45 = arith.constant dense<0.000000e+00> : vector<16xf32>
    %74 = vector.multi_reduction <add>, %73, %cst_45 [1] : vector<16x32xf32> to vector<16xf32>
    %75 = vector.shape_cast %74 : vector<16xf32> to vector<16x1xf32>
    %cst_46 = arith.constant 3.200000e+01 : f32
    %76 = vector.broadcast %cst_46 : f32 to vector<16x1xf32>
    %77 = arith.divf %75, %76 : vector<16x1xf32>
    %cst_47 = arith.constant 9.99999997E-7 : f32
    %78 = vector.broadcast %cst_47 : f32 to vector<16x1xf32>
    %79 = arith.addf %77, %78 : vector<16x1xf32>
    %80 = math.rsqrt %79 : vector<16x1xf32>
    %81 = vector.broadcast %80 : vector<16x1xf32> to vector<16x32xf32>
    %82 = arith.mulf %70, %81 : vector<16x32xf32>
    %83 = vector.broadcast %72 : vector<1x32xf32> to vector<16x32xf32>
    %84 = arith.mulf %82, %83 : vector<16x32xf32>
    %c0_48 = arith.constant 0 : index
    %c0_49 = arith.constant 0 : index
    %c0_50 = arith.constant 0 : index
    %85 = vector.load %arg12[%c0_48, %c0_49, %c0_50] : memref<2x32x64xbf16, #tpu.memory_space<vmem>>, vector<1x32x64xbf16>
    %86 = vector.shape_cast %85 : vector<1x32x64xbf16> to vector<32x64xbf16>
    %87 = arith.truncf %84 : vector<16x32xf32> to vector<16x32xbf16>
    %cst_51 = arith.constant dense<0.000000e+00> : vector<16x64xf32>
    %88 = tpu.matmul %87, %86, %cst_51 {dimension_numbers = #tpu.dot_dimension_numbers<[1], [0], [0], [1], [0, 0, 1, 1], [], []>} : vector<16x32xbf16>, vector<32x64xbf16>, vector<16x64xf32> -> vector<16x64xf32>
    %cst_52 = arith.constant 0.000000e+00 : f32
    %89 = vector.broadcast %cst_52 : f32 to vector<16x64xf32>
    %90 = arith.maximumf %88, %89 : vector<16x64xf32>
    %c0_53 = arith.constant 0 : index
    %c0_54 = arith.constant 0 : index
    %c0_55 = arith.constant 0 : index
    %91 = vector.load %arg13[%c0_53, %c0_54, %c0_55] : memref<2x64x32xbf16, #tpu.memory_space<vmem>>, vector<1x64x32xbf16>
    %92 = vector.shape_cast %91 : vector<1x64x32xbf16> to vector<64x32xbf16>
    %93 = arith.truncf %90 : vector<16x64xf32> to vector<16x64xbf16>
    %cst_56 = arith.constant dense<0.000000e+00> : vector<16x32xf32>
    %94 = tpu.matmul %93, %92, %cst_56 {dimension_numbers = #tpu.dot_dimension_numbers<[1], [0], [0], [1], [0, 0, 1, 1], [], []>} : vector<16x64xbf16>, vector<64x32xbf16>, vector<16x32xf32> -> vector<16x32xf32>
    %95 = arith.addf %70, %94 : vector<16x32xf32>
    %c1_57 = arith.constant 1 : index
    %c0_58 = arith.constant 0 : index
    %c0_59 = arith.constant 0 : index
    %96 = vector.load %arg8[%c1_57, %c0_58, %c0_59] : memref<2x1x32xf32, #tpu.memory_space<vmem>>, vector<1x1x32xf32>
    %97 = vector.shape_cast %96 : vector<1x1x32xf32> to vector<1x32xf32>
    %98 = arith.mulf %95, %95 : vector<16x32xf32>
    %cst_60 = arith.constant dense<0.000000e+00> : vector<16xf32>
    %99 = vector.multi_reduction <add>, %98, %cst_60 [1] : vector<16x32xf32> to vector<16xf32>
    %100 = vector.shape_cast %99 : vector<16xf32> to vector<16x1xf32>
    %cst_61 = arith.constant 3.200000e+01 : f32
    %101 = vector.broadcast %cst_61 : f32 to vector<16x1xf32>
    %102 = arith.divf %100, %101 : vector<16x1xf32>
    %cst_62 = arith.constant 9.99999997E-7 : f32
    %103 = vector.broadcast %cst_62 : f32 to vector<16x1xf32>
    %104 = arith.addf %102, %103 : vector<16x1xf32>
    %105 = math.rsqrt %104 : vector<16x1xf32>
    %106 = vector.broadcast %105 : vector<16x1xf32> to vector<16x32xf32>
    %107 = arith.mulf %95, %106 : vector<16x32xf32>
    %108 = vector.broadcast %97 : vector<1x32xf32> to vector<16x32xf32>
    %109 = arith.mulf %107, %108 : vector<16x32xf32>
    %c1_63 = arith.constant 1 : index
    %c0_64 = arith.constant 0 : index
    %c0_65 = arith.constant 0 : index
    %c0_66 = arith.constant 0 : index
    %110 = vector.load %arg9[%c1_63, %c0_64, %c0_65, %c0_66] : memref<2x3x32x32xbf16, #tpu.memory_space<vmem>>, vector<1x1x32x32xbf16>
    %111 = vector.shape_cast %110 : vector<1x1x32x32xbf16> to vector<32x32xbf16>
    %112 = arith.truncf %109 : vector<16x32xf32> to vector<16x32xbf16>
    %cst_67 = arith.constant dense<0.000000e+00> : vector<16x32xf32>
    %113 = tpu.matmul %112, %111, %cst_67 {dimension_numbers = #tpu.dot_dimension_numbers<[1], [0], [0], [1], [0, 0, 1, 1], [], []>} : vector<16x32xbf16>, vector<32x32xbf16>, vector<16x32xf32> -> vector<16x32xf32>
    %c1_68 = arith.constant 1 : index
    %c1_69 = arith.constant 1 : index
    %c0_70 = arith.constant 0 : index
    %c0_71 = arith.constant 0 : index
    %114 = vector.load %arg9[%c1_68, %c1_69, %c0_70, %c0_71] : memref<2x3x32x32xbf16, #tpu.memory_space<vmem>>, vector<1x1x32x32xbf16>
    %115 = vector.shape_cast %114 : vector<1x1x32x32xbf16> to vector<32x32xbf16>
    %116 = arith.truncf %109 : vector<16x32xf32> to vector<16x32xbf16>
    %cst_72 = arith.constant dense<0.000000e+00> : vector<16x32xf32>
    %117 = tpu.matmul %116, %115, %cst_72 {dimension_numbers = #tpu.dot_dimension_numbers<[1], [0], [0], [1], [0, 0, 1, 1], [], []>} : vector<16x32xbf16>, vector<32x32xbf16>, vector<16x32xf32> -> vector<16x32xf32>
    %c1_73 = arith.constant 1 : index
    %c2_74 = arith.constant 2 : index
    %c0_75 = arith.constant 0 : index
    %c0_76 = arith.constant 0 : index
    %118 = vector.load %arg9[%c1_73, %c2_74, %c0_75, %c0_76] : memref<2x3x32x32xbf16, #tpu.memory_space<vmem>>, vector<1x1x32x32xbf16>
    %119 = vector.shape_cast %118 : vector<1x1x32x32xbf16> to vector<32x32xbf16>
    %120 = arith.truncf %109 : vector<16x32xf32> to vector<16x32xbf16>
    %cst_77 = arith.constant dense<0.000000e+00> : vector<16x32xf32>
    %121 = tpu.matmul %120, %119, %cst_77 {dimension_numbers = #tpu.dot_dimension_numbers<[1], [0], [0], [1], [0, 0, 1, 1], [], []>} : vector<16x32xbf16>, vector<32x32xbf16>, vector<16x32xf32> -> vector<16x32xf32>
    %c1_78 = arith.constant 1 : index
    %c0_79 = arith.constant 0 : index
    %c0_80 = arith.constant 0 : index
    %122 = vector.load %arg10[%c1_78, %c0_79, %c0_80] : memref<2x32x32xbf16, #tpu.memory_space<vmem>>, vector<1x32x32xbf16>
    %123 = vector.shape_cast %122 : vector<1x32x32xbf16> to vector<32x32xbf16>
    %124 = vector.shape_cast %113 : vector<16x32xf32> to vector<2x8x32xf32>
    %125 = vector.shape_cast %117 : vector<16x32xf32> to vector<2x8x32xf32>
    %126 = vector.shape_cast %121 : vector<16x32xf32> to vector<2x8x32xf32>
    %127 = vector.shape_cast %125 : vector<2x8x32xf32> to vector<2x1x8x32xf32>
    %128 = vector.shape_cast %0 : vector<4x32xf32> to vector<1x4x1x32xf32>
    %129 = vector.broadcast %127 : vector<2x1x8x32xf32> to vector<2x4x8x32xf32>
    %130 = vector.broadcast %128 : vector<1x4x1x32xf32> to vector<2x4x8x32xf32>
    %131 = arith.mulf %129, %130 : vector<2x4x8x32xf32>
    %132 = vector.shape_cast %131 : vector<2x4x8x32xf32> to vector<2x32x32xf32>
    %133 = vector.shape_cast %126 : vector<2x8x32xf32> to vector<2x1x8x32xf32>
    %134 = vector.shape_cast %0 : vector<4x32xf32> to vector<1x4x1x32xf32>
    %135 = vector.broadcast %133 : vector<2x1x8x32xf32> to vector<2x4x8x32xf32>
    %136 = vector.broadcast %134 : vector<1x4x1x32xf32> to vector<2x4x8x32xf32>
    %137 = arith.mulf %135, %136 : vector<2x4x8x32xf32>
    %138 = vector.shape_cast %137 : vector<2x4x8x32xf32> to vector<2x32x32xf32>
    %139 = arith.truncf %124 : vector<2x8x32xf32> to vector<2x8x32xbf16>
    %140 = arith.truncf %132 : vector<2x32x32xf32> to vector<2x32x32xbf16>
    "tpu.trace_start"() <{level = 10 : i32, message = "bqd,bkd->bqk"}> : () -> ()
    %cst_81 = arith.constant dense<0.000000e+00> : vector<2x8x32xf32>
    %141 = tpu.matmul %139, %140, %cst_81 {dimension_numbers = #tpu.dot_dimension_numbers<[2], [2], [1], [1], [0, 0, 0, 1, 1, 1], [0], [0]>} : vector<2x8x32xbf16>, vector<2x32x32xbf16>, vector<2x8x32xf32> -> vector<2x8x32xf32>
    "tpu.trace_stop"() : () -> ()
    %142 = arith.addf %141, %1 : vector<2x8x32xf32>
    %cst_82 = arith.constant dense<0xFF800000> : vector<2x8xf32>
    %143 = vector.multi_reduction <maximumf>, %142, %cst_82 [2] : vector<2x8x32xf32> to vector<2x8xf32>
    %144 = vector.shape_cast %143 : vector<2x8xf32> to vector<2x8x1xf32>
    %145 = vector.broadcast %144 : vector<2x8x1xf32> to vector<2x8x32xf32>
    %146 = arith.subf %142, %145 : vector<2x8x32xf32>
    %147 = math.exp %146 : vector<2x8x32xf32>
    %148 = vector.shape_cast %147 : vector<2x8x32xf32> to vector<16x32xf32>
    %cst_83 = arith.constant dense<0.000000e+00> : vector<16x32xf32>
    %149 = tpu.matmul %148, %4, %cst_83 {dimension_numbers = #tpu.dot_dimension_numbers<[1], [0], [0], [1], [0, 0, 1, 1], [], []>} : vector<16x32xf32>, vector<32x32xf32>, vector<16x32xf32> -> vector<16x32xf32>
    %150 = tpu.reciprocal %149 {approx = true} : vector<16x32xf32> -> vector<16x32xf32>
    %151 = arith.mulf %148, %150 : vector<16x32xf32>
    %152 = vector.shape_cast %151 : vector<16x32xf32> to vector<2x8x32xf32>
    %153 = arith.truncf %152 : vector<2x8x32xf32> to vector<2x8x32xbf16>
    %154 = arith.truncf %138 : vector<2x32x32xf32> to vector<2x32x32xbf16>
    "tpu.trace_start"() <{level = 10 : i32, message = "bqk,bkd->bqd"}> : () -> ()
    %cst_84 = arith.constant dense<0.000000e+00> : vector<2x8x32xf32>
    %155 = tpu.matmul %153, %154, %cst_84 {dimension_numbers = #tpu.dot_dimension_numbers<[2], [1], [1], [2], [0, 0, 0, 1, 1, 2], [0], [0]>} : vector<2x8x32xbf16>, vector<2x32x32xbf16>, vector<2x8x32xf32> -> vector<2x8x32xf32>
    "tpu.trace_stop"() : () -> ()
    %156 = vector.shape_cast %155 : vector<2x8x32xf32> to vector<16x32xf32>
    %157 = arith.truncf %156 : vector<16x32xf32> to vector<16x32xbf16>
    %cst_85 = arith.constant dense<0.000000e+00> : vector<16x32xf32>
    %158 = tpu.matmul %157, %123, %cst_85 {dimension_numbers = #tpu.dot_dimension_numbers<[1], [0], [0], [1], [0, 0, 1, 1], [], []>} : vector<16x32xbf16>, vector<32x32xbf16>, vector<16x32xf32> -> vector<16x32xf32>
    %159 = arith.addf %95, %158 : vector<16x32xf32>
    %c1_86 = arith.constant 1 : index
    %c0_87 = arith.constant 0 : index
    %c0_88 = arith.constant 0 : index
    %160 = vector.load %arg11[%c1_86, %c0_87, %c0_88] : memref<2x1x32xf32, #tpu.memory_space<vmem>>, vector<1x1x32xf32>
    %161 = vector.shape_cast %160 : vector<1x1x32xf32> to vector<1x32xf32>
    %162 = arith.mulf %159, %159 : vector<16x32xf32>
    %cst_89 = arith.constant dense<0.000000e+00> : vector<16xf32>
    %163 = vector.multi_reduction <add>, %162, %cst_89 [1] : vector<16x32xf32> to vector<16xf32>
    %164 = vector.shape_cast %163 : vector<16xf32> to vector<16x1xf32>
    %cst_90 = arith.constant 3.200000e+01 : f32
    %165 = vector.broadcast %cst_90 : f32 to vector<16x1xf32>
    %166 = arith.divf %164, %165 : vector<16x1xf32>
    %cst_91 = arith.constant 9.99999997E-7 : f32
    %167 = vector.broadcast %cst_91 : f32 to vector<16x1xf32>
    %168 = arith.addf %166, %167 : vector<16x1xf32>
    %169 = math.rsqrt %168 : vector<16x1xf32>
    %170 = vector.broadcast %169 : vector<16x1xf32> to vector<16x32xf32>
    %171 = arith.mulf %159, %170 : vector<16x32xf32>
    %172 = vector.broadcast %161 : vector<1x32xf32> to vector<16x32xf32>
    %173 = arith.mulf %171, %172 : vector<16x32xf32>
    %c1_92 = arith.constant 1 : index
    %c0_93 = arith.constant 0 : index
    %c0_94 = arith.constant 0 : index
    %174 = vector.load %arg12[%c1_92, %c0_93, %c0_94] : memref<2x32x64xbf16, #tpu.memory_space<vmem>>, vector<1x32x64xbf16>
    %175 = vector.shape_cast %174 : vector<1x32x64xbf16> to vector<32x64xbf16>
    %176 = arith.truncf %173 : vector<16x32xf32> to vector<16x32xbf16>
    %cst_95 = arith.constant dense<0.000000e+00> : vector<16x64xf32>
    %177 = tpu.matmul %176, %175, %cst_95 {dimension_numbers = #tpu.dot_dimension_numbers<[1], [0], [0], [1], [0, 0, 1, 1], [], []>} : vector<16x32xbf16>, vector<32x64xbf16>, vector<16x64xf32> -> vector<16x64xf32>
    %cst_96 = arith.constant 0.000000e+00 : f32
    %178 = vector.broadcast %cst_96 : f32 to vector<16x64xf32>
    %179 = arith.maximumf %177, %178 : vector<16x64xf32>
    %c1_97 = arith.constant 1 : index
    %c0_98 = arith.constant 0 : index
    %c0_99 = arith.constant 0 : index
    %180 = vector.load %arg13[%c1_97, %c0_98, %c0_99] : memref<2x64x32xbf16, #tpu.memory_space<vmem>>, vector<1x64x32xbf16>
    %181 = vector.shape_cast %180 : vector<1x64x32xbf16> to vector<64x32xbf16>
    %182 = arith.truncf %179 : vector<16x64xf32> to vector<16x64xbf16>
    %cst_100 = arith.constant dense<0.000000e+00> : vector<16x32xf32>
    %183 = tpu.matmul %182, %181, %cst_100 {dimension_numbers = #tpu.dot_dimension_numbers<[1], [0], [0], [1], [0, 0, 1, 1], [], []>} : vector<16x64xbf16>, vector<64x32xbf16>, vector<16x32xf32> -> vector<16x32xf32>
    %184 = arith.addf %159, %183 : vector<16x32xf32>
    %c0_101 = arith.constant 0 : index
    %c0_102 = arith.constant 0 : index
    %185 = vector.load %arg14[%c0_101, %c0_102] : memref<1x32xf32, #tpu.memory_space<vmem>>, vector<1x32xf32>
    %186 = arith.mulf %184, %184 : vector<16x32xf32>
    %cst_103 = arith.constant dense<0.000000e+00> : vector<16xf32>
    %187 = vector.multi_reduction <add>, %186, %cst_103 [1] : vector<16x32xf32> to vector<16xf32>
    %188 = vector.shape_cast %187 : vector<16xf32> to vector<16x1xf32>
    %cst_104 = arith.constant 3.200000e+01 : f32
    %189 = vector.broadcast %cst_104 : f32 to vector<16x1xf32>
    %190 = arith.divf %188, %189 : vector<16x1xf32>
    %cst_105 = arith.constant 9.99999997E-7 : f32
    %191 = vector.broadcast %cst_105 : f32 to vector<16x1xf32>
    %192 = arith.addf %190, %191 : vector<16x1xf32>
    %193 = math.rsqrt %192 : vector<16x1xf32>
    %194 = vector.broadcast %193 : vector<16x1xf32> to vector<16x32xf32>
    %195 = arith.mulf %184, %194 : vector<16x32xf32>
    %196 = vector.broadcast %185 : vector<1x32xf32> to vector<16x32xf32>
    %197 = arith.mulf %195, %196 : vector<16x32xf32>
    %c0_106 = arith.constant 0 : index
    %c0_107 = arith.constant 0 : index
    %198 = vector.load %arg1[%c0_106, %c0_107] : memref<16x32xf32, #tpu.memory_space<vmem>>, vector<16x32xf32>
    %c0_108 = arith.constant 0 : index
    %c0_109 = arith.constant 0 : index
    %c0_110 = arith.constant 0 : index
    %199 = vector.load %arg15[%c0_108, %c0_109, %c0_110] : memref<2x1x32xf32, #tpu.memory_space<vmem>>, vector<1x1x32xf32>
    %200 = vector.shape_cast %199 : vector<1x1x32xf32> to vector<1x32xf32>
    %201 = arith.mulf %198, %198 : vector<16x32xf32>
    %cst_111 = arith.constant dense<0.000000e+00> : vector<16xf32>
    %202 = vector.multi_reduction <add>, %201, %cst_111 [1] : vector<16x32xf32> to vector<16xf32>
    %203 = vector.shape_cast %202 : vector<16xf32> to vector<16x1xf32>
    %cst_112 = arith.constant 3.200000e+01 : f32
    %204 = vector.broadcast %cst_112 : f32 to vector<16x1xf32>
    %205 = arith.divf %203, %204 : vector<16x1xf32>
    %cst_113 = arith.constant 9.99999997E-7 : f32
    %206 = vector.broadcast %cst_113 : f32 to vector<16x1xf32>
    %207 = arith.addf %205, %206 : vector<16x1xf32>
    %208 = math.rsqrt %207 : vector<16x1xf32>
    %209 = vector.broadcast %208 : vector<16x1xf32> to vector<16x32xf32>
    %210 = arith.mulf %198, %209 : vector<16x32xf32>
    %211 = vector.broadcast %200 : vector<1x32xf32> to vector<16x32xf32>
    %212 = arith.mulf %210, %211 : vector<16x32xf32>
    %c0_114 = arith.constant 0 : index
    %c0_115 = arith.constant 0 : index
    %c0_116 = arith.constant 0 : index
    %c0_117 = arith.constant 0 : index
    %213 = vector.load %arg16[%c0_114, %c0_115, %c0_116, %c0_117] : memref<2x3x32x32xbf16, #tpu.memory_space<vmem>>, vector<1x1x32x32xbf16>
    %214 = vector.shape_cast %213 : vector<1x1x32x32xbf16> to vector<32x32xbf16>
    %215 = arith.truncf %212 : vector<16x32xf32> to vector<16x32xbf16>
    %cst_118 = arith.constant dense<0.000000e+00> : vector<16x32xf32>
    %216 = tpu.matmul %215, %214, %cst_118 {dimension_numbers = #tpu.dot_dimension_numbers<[1], [0], [0], [1], [0, 0, 1, 1], [], []>} : vector<16x32xbf16>, vector<32x32xbf16>, vector<16x32xf32> -> vector<16x32xf32>
    %c0_119 = arith.constant 0 : index
    %c1_120 = arith.constant 1 : index
    %c0_121 = arith.constant 0 : index
    %c0_122 = arith.constant 0 : index
    %217 = vector.load %arg16[%c0_119, %c1_120, %c0_121, %c0_122] : memref<2x3x32x32xbf16, #tpu.memory_space<vmem>>, vector<1x1x32x32xbf16>
    %218 = vector.shape_cast %217 : vector<1x1x32x32xbf16> to vector<32x32xbf16>
    %219 = arith.truncf %212 : vector<16x32xf32> to vector<16x32xbf16>
    %cst_123 = arith.constant dense<0.000000e+00> : vector<16x32xf32>
    %220 = tpu.matmul %219, %218, %cst_123 {dimension_numbers = #tpu.dot_dimension_numbers<[1], [0], [0], [1], [0, 0, 1, 1], [], []>} : vector<16x32xbf16>, vector<32x32xbf16>, vector<16x32xf32> -> vector<16x32xf32>
    %c0_124 = arith.constant 0 : index
    %c2_125 = arith.constant 2 : index
    %c0_126 = arith.constant 0 : index
    %c0_127 = arith.constant 0 : index
    %221 = vector.load %arg16[%c0_124, %c2_125, %c0_126, %c0_127] : memref<2x3x32x32xbf16, #tpu.memory_space<vmem>>, vector<1x1x32x32xbf16>
    %222 = vector.shape_cast %221 : vector<1x1x32x32xbf16> to vector<32x32xbf16>
    %223 = arith.truncf %212 : vector<16x32xf32> to vector<16x32xbf16>
    %cst_128 = arith.constant dense<0.000000e+00> : vector<16x32xf32>
    %224 = tpu.matmul %223, %222, %cst_128 {dimension_numbers = #tpu.dot_dimension_numbers<[1], [0], [0], [1], [0, 0, 1, 1], [], []>} : vector<16x32xbf16>, vector<32x32xbf16>, vector<16x32xf32> -> vector<16x32xf32>
    %c0_129 = arith.constant 0 : index
    %c0_130 = arith.constant 0 : index
    %c0_131 = arith.constant 0 : index
    %225 = vector.load %arg17[%c0_129, %c0_130, %c0_131] : memref<2x32x32xbf16, #tpu.memory_space<vmem>>, vector<1x32x32xbf16>
    %226 = vector.shape_cast %225 : vector<1x32x32xbf16> to vector<32x32xbf16>
    %227 = vector.shape_cast %216 : vector<16x32xf32> to vector<2x8x32xf32>
    %228 = vector.shape_cast %220 : vector<16x32xf32> to vector<2x8x32xf32>
    %229 = vector.shape_cast %224 : vector<16x32xf32> to vector<2x8x32xf32>
    %230 = vector.shape_cast %228 : vector<2x8x32xf32> to vector<2x1x8x32xf32>
    %231 = vector.shape_cast %0 : vector<4x32xf32> to vector<1x4x1x32xf32>
    %232 = vector.broadcast %230 : vector<2x1x8x32xf32> to vector<2x4x8x32xf32>
    %233 = vector.broadcast %231 : vector<1x4x1x32xf32> to vector<2x4x8x32xf32>
    %234 = arith.mulf %232, %233 : vector<2x4x8x32xf32>
    %235 = vector.shape_cast %234 : vector<2x4x8x32xf32> to vector<2x32x32xf32>
    %236 = vector.shape_cast %229 : vector<2x8x32xf32> to vector<2x1x8x32xf32>
    %237 = vector.shape_cast %0 : vector<4x32xf32> to vector<1x4x1x32xf32>
    %238 = vector.broadcast %236 : vector<2x1x8x32xf32> to vector<2x4x8x32xf32>
    %239 = vector.broadcast %237 : vector<1x4x1x32xf32> to vector<2x4x8x32xf32>
    %240 = arith.mulf %238, %239 : vector<2x4x8x32xf32>
    %241 = vector.shape_cast %240 : vector<2x4x8x32xf32> to vector<2x32x32xf32>
    %242 = arith.truncf %227 : vector<2x8x32xf32> to vector<2x8x32xbf16>
    %243 = arith.truncf %235 : vector<2x32x32xf32> to vector<2x32x32xbf16>
    "tpu.trace_start"() <{level = 10 : i32, message = "bqd,bkd->bqk"}> : () -> ()
    %cst_132 = arith.constant dense<0.000000e+00> : vector<2x8x32xf32>
    %244 = tpu.matmul %242, %243, %cst_132 {dimension_numbers = #tpu.dot_dimension_numbers<[2], [2], [1], [1], [0, 0, 0, 1, 1, 1], [0], [0]>} : vector<2x8x32xbf16>, vector<2x32x32xbf16>, vector<2x8x32xf32> -> vector<2x8x32xf32>
    "tpu.trace_stop"() : () -> ()
    %245 = arith.addf %244, %2 : vector<2x8x32xf32>
    %cst_133 = arith.constant dense<0xFF800000> : vector<2x8xf32>
    %246 = vector.multi_reduction <maximumf>, %245, %cst_133 [2] : vector<2x8x32xf32> to vector<2x8xf32>
    %247 = vector.shape_cast %246 : vector<2x8xf32> to vector<2x8x1xf32>
    %248 = vector.broadcast %247 : vector<2x8x1xf32> to vector<2x8x32xf32>
    %249 = arith.subf %245, %248 : vector<2x8x32xf32>
    %250 = math.exp %249 : vector<2x8x32xf32>
    %251 = vector.shape_cast %250 : vector<2x8x32xf32> to vector<16x32xf32>
    %cst_134 = arith.constant dense<0.000000e+00> : vector<16x32xf32>
    %252 = tpu.matmul %251, %5, %cst_134 {dimension_numbers = #tpu.dot_dimension_numbers<[1], [0], [0], [1], [0, 0, 1, 1], [], []>} : vector<16x32xf32>, vector<32x32xf32>, vector<16x32xf32> -> vector<16x32xf32>
    %253 = tpu.reciprocal %252 {approx = true} : vector<16x32xf32> -> vector<16x32xf32>
    %254 = arith.mulf %251, %253 : vector<16x32xf32>
    %255 = vector.shape_cast %254 : vector<16x32xf32> to vector<2x8x32xf32>
    %256 = arith.truncf %255 : vector<2x8x32xf32> to vector<2x8x32xbf16>
    %257 = arith.truncf %241 : vector<2x32x32xf32> to vector<2x32x32xbf16>
    "tpu.trace_start"() <{level = 10 : i32, message = "bqk,bkd->bqd"}> : () -> ()
    %cst_135 = arith.constant dense<0.000000e+00> : vector<2x8x32xf32>
    %258 = tpu.matmul %256, %257, %cst_135 {dimension_numbers = #tpu.dot_dimension_numbers<[2], [1], [1], [2], [0, 0, 0, 1, 1, 2], [0], [0]>} : vector<2x8x32xbf16>, vector<2x32x32xbf16>, vector<2x8x32xf32> -> vector<2x8x32xf32>
    "tpu.trace_stop"() : () -> ()
    %259 = vector.shape_cast %258 : vector<2x8x32xf32> to vector<16x32xf32>
    %260 = arith.truncf %259 : vector<16x32xf32> to vector<16x32xbf16>
    %cst_136 = arith.constant dense<0.000000e+00> : vector<16x32xf32>
    %261 = tpu.matmul %260, %226, %cst_136 {dimension_numbers = #tpu.dot_dimension_numbers<[1], [0], [0], [1], [0, 0, 1, 1], [], []>} : vector<16x32xbf16>, vector<32x32xbf16>, vector<16x32xf32> -> vector<16x32xf32>
    %262 = arith.addf %198, %261 : vector<16x32xf32>
    %c0_137 = arith.constant 0 : index
    %c0_138 = arith.constant 0 : index
    %c0_139 = arith.constant 0 : index
    %263 = vector.load %arg18[%c0_137, %c0_138, %c0_139] : memref<2x1x32xf32, #tpu.memory_space<vmem>>, vector<1x1x32xf32>
    %264 = vector.shape_cast %263 : vector<1x1x32xf32> to vector<1x32xf32>
    %265 = arith.mulf %262, %262 : vector<16x32xf32>
    %cst_140 = arith.constant dense<0.000000e+00> : vector<16xf32>
    %266 = vector.multi_reduction <add>, %265, %cst_140 [1] : vector<16x32xf32> to vector<16xf32>
    %267 = vector.shape_cast %266 : vector<16xf32> to vector<16x1xf32>
    %cst_141 = arith.constant 3.200000e+01 : f32
    %268 = vector.broadcast %cst_141 : f32 to vector<16x1xf32>
    %269 = arith.divf %267, %268 : vector<16x1xf32>
    %cst_142 = arith.constant 9.99999997E-7 : f32
    %270 = vector.broadcast %cst_142 : f32 to vector<16x1xf32>
    %271 = arith.addf %269, %270 : vector<16x1xf32>
    %272 = math.rsqrt %271 : vector<16x1xf32>
    %273 = vector.broadcast %272 : vector<16x1xf32> to vector<16x32xf32>
    %274 = arith.mulf %262, %273 : vector<16x32xf32>
    %275 = vector.broadcast %264 : vector<1x32xf32> to vector<16x32xf32>
    %276 = arith.mulf %274, %275 : vector<16x32xf32>
    %c0_143 = arith.constant 0 : index
    %c0_144 = arith.constant 0 : index
    %c0_145 = arith.constant 0 : index
    %277 = vector.load %arg19[%c0_143, %c0_144, %c0_145] : memref<2x32x32xbf16, #tpu.memory_space<vmem>>, vector<1x32x32xbf16>
    %278 = vector.shape_cast %277 : vector<1x32x32xbf16> to vector<32x32xbf16>
    %279 = arith.truncf %276 : vector<16x32xf32> to vector<16x32xbf16>
    %cst_146 = arith.constant dense<0.000000e+00> : vector<16x32xf32>
    %280 = tpu.matmul %279, %278, %cst_146 {dimension_numbers = #tpu.dot_dimension_numbers<[1], [0], [0], [1], [0, 0, 1, 1], [], []>} : vector<16x32xbf16>, vector<32x32xbf16>, vector<16x32xf32> -> vector<16x32xf32>
    %c0_147 = arith.constant 0 : index
    %c0_148 = arith.constant 0 : index
    %c0_149 = arith.constant 0 : index
    %c0_150 = arith.constant 0 : index
    %281 = vector.load %arg20[%c0_147, %c0_148, %c0_149, %c0_150] : memref<2x2x32x32xbf16, #tpu.memory_space<vmem>>, vector<1x1x32x32xbf16>
    %282 = vector.shape_cast %281 : vector<1x1x32x32xbf16> to vector<32x32xbf16>
    %283 = arith.truncf %197 : vector<16x32xf32> to vector<16x32xbf16>
    %cst_151 = arith.constant dense<0.000000e+00> : vector<16x32xf32>
    %284 = tpu.matmul %283, %282, %cst_151 {dimension_numbers = #tpu.dot_dimension_numbers<[1], [0], [0], [1], [0, 0, 1, 1], [], []>} : vector<16x32xbf16>, vector<32x32xbf16>, vector<16x32xf32> -> vector<16x32xf32>
    %c0_152 = arith.constant 0 : index
    %c1_153 = arith.constant 1 : index
    %c0_154 = arith.constant 0 : index
    %c0_155 = arith.constant 0 : index
    %285 = vector.load %arg20[%c0_152, %c1_153, %c0_154, %c0_155] : memref<2x2x32x32xbf16, #tpu.memory_space<vmem>>, vector<1x1x32x32xbf16>
    %286 = vector.shape_cast %285 : vector<1x1x32x32xbf16> to vector<32x32xbf16>
    %287 = arith.truncf %197 : vector<16x32xf32> to vector<16x32xbf16>
    %cst_156 = arith.constant dense<0.000000e+00> : vector<16x32xf32>
    %288 = tpu.matmul %287, %286, %cst_156 {dimension_numbers = #tpu.dot_dimension_numbers<[1], [0], [0], [1], [0, 0, 1, 1], [], []>} : vector<16x32xbf16>, vector<32x32xbf16>, vector<16x32xf32> -> vector<16x32xf32>
    %c0_157 = arith.constant 0 : index
    %c0_158 = arith.constant 0 : index
    %c0_159 = arith.constant 0 : index
    %289 = vector.load %arg21[%c0_157, %c0_158, %c0_159] : memref<2x32x32xbf16, #tpu.memory_space<vmem>>, vector<1x32x32xbf16>
    %290 = vector.shape_cast %289 : vector<1x32x32xbf16> to vector<32x32xbf16>
    %291 = vector.shape_cast %280 : vector<16x32xf32> to vector<2x8x32xf32>
    %292 = vector.shape_cast %284 : vector<16x32xf32> to vector<2x8x32xf32>
    %293 = vector.shape_cast %288 : vector<16x32xf32> to vector<2x8x32xf32>
    %294 = vector.shape_cast %292 : vector<2x8x32xf32> to vector<2x1x8x32xf32>
    %295 = vector.shape_cast %0 : vector<4x32xf32> to vector<1x4x1x32xf32>
    %296 = vector.broadcast %294 : vector<2x1x8x32xf32> to vector<2x4x8x32xf32>
    %297 = vector.broadcast %295 : vector<1x4x1x32xf32> to vector<2x4x8x32xf32>
    %298 = arith.mulf %296, %297 : vector<2x4x8x32xf32>
    %299 = vector.shape_cast %298 : vector<2x4x8x32xf32> to vector<2x32x32xf32>
    %300 = vector.shape_cast %293 : vector<2x8x32xf32> to vector<2x1x8x32xf32>
    %301 = vector.shape_cast %0 : vector<4x32xf32> to vector<1x4x1x32xf32>
    %302 = vector.broadcast %300 : vector<2x1x8x32xf32> to vector<2x4x8x32xf32>
    %303 = vector.broadcast %301 : vector<1x4x1x32xf32> to vector<2x4x8x32xf32>
    %304 = arith.mulf %302, %303 : vector<2x4x8x32xf32>
    %305 = vector.shape_cast %304 : vector<2x4x8x32xf32> to vector<2x32x32xf32>
    %306 = arith.truncf %291 : vector<2x8x32xf32> to vector<2x8x32xbf16>
    %307 = arith.truncf %299 : vector<2x32x32xf32> to vector<2x32x32xbf16>
    "tpu.trace_start"() <{level = 10 : i32, message = "bqd,bkd->bqk"}> : () -> ()
    %cst_160 = arith.constant dense<0.000000e+00> : vector<2x8x32xf32>
    %308 = tpu.matmul %306, %307, %cst_160 {dimension_numbers = #tpu.dot_dimension_numbers<[2], [2], [1], [1], [0, 0, 0, 1, 1, 1], [0], [0]>} : vector<2x8x32xbf16>, vector<2x32x32xbf16>, vector<2x8x32xf32> -> vector<2x8x32xf32>
    "tpu.trace_stop"() : () -> ()
    %309 = vector.broadcast %3 : vector<2x1x32xf32> to vector<2x8x32xf32>
    %310 = arith.addf %308, %309 : vector<2x8x32xf32>
    %cst_161 = arith.constant dense<0xFF800000> : vector<2x8xf32>
    %311 = vector.multi_reduction <maximumf>, %310, %cst_161 [2] : vector<2x8x32xf32> to vector<2x8xf32>
    %312 = vector.shape_cast %311 : vector<2x8xf32> to vector<2x8x1xf32>
    %313 = vector.broadcast %312 : vector<2x8x1xf32> to vector<2x8x32xf32>
    %314 = arith.subf %310, %313 : vector<2x8x32xf32>
    %315 = math.exp %314 : vector<2x8x32xf32>
    %316 = vector.shape_cast %315 : vector<2x8x32xf32> to vector<16x32xf32>
    %cst_162 = arith.constant dense<0.000000e+00> : vector<16x32xf32>
    %317 = tpu.matmul %316, %4, %cst_162 {dimension_numbers = #tpu.dot_dimension_numbers<[1], [0], [0], [1], [0, 0, 1, 1], [], []>} : vector<16x32xf32>, vector<32x32xf32>, vector<16x32xf32> -> vector<16x32xf32>
    %318 = tpu.reciprocal %317 {approx = true} : vector<16x32xf32> -> vector<16x32xf32>
    %319 = arith.mulf %316, %318 : vector<16x32xf32>
    %320 = vector.shape_cast %319 : vector<16x32xf32> to vector<2x8x32xf32>
    %321 = arith.truncf %320 : vector<2x8x32xf32> to vector<2x8x32xbf16>
    %322 = arith.truncf %305 : vector<2x32x32xf32> to vector<2x32x32xbf16>
    "tpu.trace_start"() <{level = 10 : i32, message = "bqk,bkd->bqd"}> : () -> ()
    %cst_163 = arith.constant dense<0.000000e+00> : vector<2x8x32xf32>
    %323 = tpu.matmul %321, %322, %cst_163 {dimension_numbers = #tpu.dot_dimension_numbers<[2], [1], [1], [2], [0, 0, 0, 1, 1, 2], [0], [0]>} : vector<2x8x32xbf16>, vector<2x32x32xbf16>, vector<2x8x32xf32> -> vector<2x8x32xf32>
    "tpu.trace_stop"() : () -> ()
    %324 = vector.shape_cast %323 : vector<2x8x32xf32> to vector<16x32xf32>
    %325 = arith.truncf %324 : vector<16x32xf32> to vector<16x32xbf16>
    %cst_164 = arith.constant dense<0.000000e+00> : vector<16x32xf32>
    %326 = tpu.matmul %325, %290, %cst_164 {dimension_numbers = #tpu.dot_dimension_numbers<[1], [0], [0], [1], [0, 0, 1, 1], [], []>} : vector<16x32xbf16>, vector<32x32xbf16>, vector<16x32xf32> -> vector<16x32xf32>
    %327 = arith.addf %262, %326 : vector<16x32xf32>
    %c0_165 = arith.constant 0 : index
    %c0_166 = arith.constant 0 : index
    %c0_167 = arith.constant 0 : index
    %328 = vector.load %arg22[%c0_165, %c0_166, %c0_167] : memref<2x1x32xf32, #tpu.memory_space<vmem>>, vector<1x1x32xf32>
    %329 = vector.shape_cast %328 : vector<1x1x32xf32> to vector<1x32xf32>
    %330 = arith.mulf %327, %327 : vector<16x32xf32>
    %cst_168 = arith.constant dense<0.000000e+00> : vector<16xf32>
    %331 = vector.multi_reduction <add>, %330, %cst_168 [1] : vector<16x32xf32> to vector<16xf32>
    %332 = vector.shape_cast %331 : vector<16xf32> to vector<16x1xf32>
    %cst_169 = arith.constant 3.200000e+01 : f32
    %333 = vector.broadcast %cst_169 : f32 to vector<16x1xf32>
    %334 = arith.divf %332, %333 : vector<16x1xf32>
    %cst_170 = arith.constant 9.99999997E-7 : f32
    %335 = vector.broadcast %cst_170 : f32 to vector<16x1xf32>
    %336 = arith.addf %334, %335 : vector<16x1xf32>
    %337 = math.rsqrt %336 : vector<16x1xf32>
    %338 = vector.broadcast %337 : vector<16x1xf32> to vector<16x32xf32>
    %339 = arith.mulf %327, %338 : vector<16x32xf32>
    %340 = vector.broadcast %329 : vector<1x32xf32> to vector<16x32xf32>
    %341 = arith.mulf %339, %340 : vector<16x32xf32>
    %c0_171 = arith.constant 0 : index
    %c0_172 = arith.constant 0 : index
    %c0_173 = arith.constant 0 : index
    %342 = vector.load %arg23[%c0_171, %c0_172, %c0_173] : memref<2x32x64xbf16, #tpu.memory_space<vmem>>, vector<1x32x64xbf16>
    %343 = vector.shape_cast %342 : vector<1x32x64xbf16> to vector<32x64xbf16>
    %344 = arith.truncf %341 : vector<16x32xf32> to vector<16x32xbf16>
    %cst_174 = arith.constant dense<0.000000e+00> : vector<16x64xf32>
    %345 = tpu.matmul %344, %343, %cst_174 {dimension_numbers = #tpu.dot_dimension_numbers<[1], [0], [0], [1], [0, 0, 1, 1], [], []>} : vector<16x32xbf16>, vector<32x64xbf16>, vector<16x64xf32> -> vector<16x64xf32>
    %cst_175 = arith.constant 0.000000e+00 : f32
    %346 = vector.broadcast %cst_175 : f32 to vector<16x64xf32>
    %347 = arith.maximumf %345, %346 : vector<16x64xf32>
    %c0_176 = arith.constant 0 : index
    %c0_177 = arith.constant 0 : index
    %c0_178 = arith.constant 0 : index
    %348 = vector.load %arg24[%c0_176, %c0_177, %c0_178] : memref<2x64x32xbf16, #tpu.memory_space<vmem>>, vector<1x64x32xbf16>
    %349 = vector.shape_cast %348 : vector<1x64x32xbf16> to vector<64x32xbf16>
    %350 = arith.truncf %347 : vector<16x64xf32> to vector<16x64xbf16>
    %cst_179 = arith.constant dense<0.000000e+00> : vector<16x32xf32>
    %351 = tpu.matmul %350, %349, %cst_179 {dimension_numbers = #tpu.dot_dimension_numbers<[1], [0], [0], [1], [0, 0, 1, 1], [], []>} : vector<16x64xbf16>, vector<64x32xbf16>, vector<16x32xf32> -> vector<16x32xf32>
    %352 = arith.addf %327, %351 : vector<16x32xf32>
    %c1_180 = arith.constant 1 : index
    %c0_181 = arith.constant 0 : index
    %c0_182 = arith.constant 0 : index
    %353 = vector.load %arg15[%c1_180, %c0_181, %c0_182] : memref<2x1x32xf32, #tpu.memory_space<vmem>>, vector<1x1x32xf32>
    %354 = vector.shape_cast %353 : vector<1x1x32xf32> to vector<1x32xf32>
    %355 = arith.mulf %352, %352 : vector<16x32xf32>
    %cst_183 = arith.constant dense<0.000000e+00> : vector<16xf32>
    %356 = vector.multi_reduction <add>, %355, %cst_183 [1] : vector<16x32xf32> to vector<16xf32>
    %357 = vector.shape_cast %356 : vector<16xf32> to vector<16x1xf32>
    %cst_184 = arith.constant 3.200000e+01 : f32
    %358 = vector.broadcast %cst_184 : f32 to vector<16x1xf32>
    %359 = arith.divf %357, %358 : vector<16x1xf32>
    %cst_185 = arith.constant 9.99999997E-7 : f32
    %360 = vector.broadcast %cst_185 : f32 to vector<16x1xf32>
    %361 = arith.addf %359, %360 : vector<16x1xf32>
    %362 = math.rsqrt %361 : vector<16x1xf32>
    %363 = vector.broadcast %362 : vector<16x1xf32> to vector<16x32xf32>
    %364 = arith.mulf %352, %363 : vector<16x32xf32>
    %365 = vector.broadcast %354 : vector<1x32xf32> to vector<16x32xf32>
    %366 = arith.mulf %364, %365 : vector<16x32xf32>
    %c1_186 = arith.constant 1 : index
    %c0_187 = arith.constant 0 : index
    %c0_188 = arith.constant 0 : index
    %c0_189 = arith.constant 0 : index
    %367 = vector.load %arg16[%c1_186, %c0_187, %c0_188, %c0_189] : memref<2x3x32x32xbf16, #tpu.memory_space<vmem>>, vector<1x1x32x32xbf16>
    %368 = vector.shape_cast %367 : vector<1x1x32x32xbf16> to vector<32x32xbf16>
    %369 = arith.truncf %366 : vector<16x32xf32> to vector<16x32xbf16>
    %cst_190 = arith.constant dense<0.000000e+00> : vector<16x32xf32>
    %370 = tpu.matmul %369, %368, %cst_190 {dimension_numbers = #tpu.dot_dimension_numbers<[1], [0], [0], [1], [0, 0, 1, 1], [], []>} : vector<16x32xbf16>, vector<32x32xbf16>, vector<16x32xf32> -> vector<16x32xf32>
    %c1_191 = arith.constant 1 : index
    %c1_192 = arith.constant 1 : index
    %c0_193 = arith.constant 0 : index
    %c0_194 = arith.constant 0 : index
    %371 = vector.load %arg16[%c1_191, %c1_192, %c0_193, %c0_194] : memref<2x3x32x32xbf16, #tpu.memory_space<vmem>>, vector<1x1x32x32xbf16>
    %372 = vector.shape_cast %371 : vector<1x1x32x32xbf16> to vector<32x32xbf16>
    %373 = arith.truncf %366 : vector<16x32xf32> to vector<16x32xbf16>
    %cst_195 = arith.constant dense<0.000000e+00> : vector<16x32xf32>
    %374 = tpu.matmul %373, %372, %cst_195 {dimension_numbers = #tpu.dot_dimension_numbers<[1], [0], [0], [1], [0, 0, 1, 1], [], []>} : vector<16x32xbf16>, vector<32x32xbf16>, vector<16x32xf32> -> vector<16x32xf32>
    %c1_196 = arith.constant 1 : index
    %c2_197 = arith.constant 2 : index
    %c0_198 = arith.constant 0 : index
    %c0_199 = arith.constant 0 : index
    %375 = vector.load %arg16[%c1_196, %c2_197, %c0_198, %c0_199] : memref<2x3x32x32xbf16, #tpu.memory_space<vmem>>, vector<1x1x32x32xbf16>
    %376 = vector.shape_cast %375 : vector<1x1x32x32xbf16> to vector<32x32xbf16>
    %377 = arith.truncf %366 : vector<16x32xf32> to vector<16x32xbf16>
    %cst_200 = arith.constant dense<0.000000e+00> : vector<16x32xf32>
    %378 = tpu.matmul %377, %376, %cst_200 {dimension_numbers = #tpu.dot_dimension_numbers<[1], [0], [0], [1], [0, 0, 1, 1], [], []>} : vector<16x32xbf16>, vector<32x32xbf16>, vector<16x32xf32> -> vector<16x32xf32>
    %c1_201 = arith.constant 1 : index
    %c0_202 = arith.constant 0 : index
    %c0_203 = arith.constant 0 : index
    %379 = vector.load %arg17[%c1_201, %c0_202, %c0_203] : memref<2x32x32xbf16, #tpu.memory_space<vmem>>, vector<1x32x32xbf16>
    %380 = vector.shape_cast %379 : vector<1x32x32xbf16> to vector<32x32xbf16>
    %381 = vector.shape_cast %370 : vector<16x32xf32> to vector<2x8x32xf32>
    %382 = vector.shape_cast %374 : vector<16x32xf32> to vector<2x8x32xf32>
    %383 = vector.shape_cast %378 : vector<16x32xf32> to vector<2x8x32xf32>
    %384 = vector.shape_cast %382 : vector<2x8x32xf32> to vector<2x1x8x32xf32>
    %385 = vector.shape_cast %0 : vector<4x32xf32> to vector<1x4x1x32xf32>
    %386 = vector.broadcast %384 : vector<2x1x8x32xf32> to vector<2x4x8x32xf32>
    %387 = vector.broadcast %385 : vector<1x4x1x32xf32> to vector<2x4x8x32xf32>
    %388 = arith.mulf %386, %387 : vector<2x4x8x32xf32>
    %389 = vector.shape_cast %388 : vector<2x4x8x32xf32> to vector<2x32x32xf32>
    %390 = vector.shape_cast %383 : vector<2x8x32xf32> to vector<2x1x8x32xf32>
    %391 = vector.shape_cast %0 : vector<4x32xf32> to vector<1x4x1x32xf32>
    %392 = vector.broadcast %390 : vector<2x1x8x32xf32> to vector<2x4x8x32xf32>
    %393 = vector.broadcast %391 : vector<1x4x1x32xf32> to vector<2x4x8x32xf32>
    %394 = arith.mulf %392, %393 : vector<2x4x8x32xf32>
    %395 = vector.shape_cast %394 : vector<2x4x8x32xf32> to vector<2x32x32xf32>
    %396 = arith.truncf %381 : vector<2x8x32xf32> to vector<2x8x32xbf16>
    %397 = arith.truncf %389 : vector<2x32x32xf32> to vector<2x32x32xbf16>
    "tpu.trace_start"() <{level = 10 : i32, message = "bqd,bkd->bqk"}> : () -> ()
    %cst_204 = arith.constant dense<0.000000e+00> : vector<2x8x32xf32>
    %398 = tpu.matmul %396, %397, %cst_204 {dimension_numbers = #tpu.dot_dimension_numbers<[2], [2], [1], [1], [0, 0, 0, 1, 1, 1], [0], [0]>} : vector<2x8x32xbf16>, vector<2x32x32xbf16>, vector<2x8x32xf32> -> vector<2x8x32xf32>
    "tpu.trace_stop"() : () -> ()
    %399 = arith.addf %398, %2 : vector<2x8x32xf32>
    %cst_205 = arith.constant dense<0xFF800000> : vector<2x8xf32>
    %400 = vector.multi_reduction <maximumf>, %399, %cst_205 [2] : vector<2x8x32xf32> to vector<2x8xf32>
    %401 = vector.shape_cast %400 : vector<2x8xf32> to vector<2x8x1xf32>
    %402 = vector.broadcast %401 : vector<2x8x1xf32> to vector<2x8x32xf32>
    %403 = arith.subf %399, %402 : vector<2x8x32xf32>
    %404 = math.exp %403 : vector<2x8x32xf32>
    %405 = vector.shape_cast %404 : vector<2x8x32xf32> to vector<16x32xf32>
    %cst_206 = arith.constant dense<0.000000e+00> : vector<16x32xf32>
    %406 = tpu.matmul %405, %5, %cst_206 {dimension_numbers = #tpu.dot_dimension_numbers<[1], [0], [0], [1], [0, 0, 1, 1], [], []>} : vector<16x32xf32>, vector<32x32xf32>, vector<16x32xf32> -> vector<16x32xf32>
    %407 = tpu.reciprocal %406 {approx = true} : vector<16x32xf32> -> vector<16x32xf32>
    %408 = arith.mulf %405, %407 : vector<16x32xf32>
    %409 = vector.shape_cast %408 : vector<16x32xf32> to vector<2x8x32xf32>
    %410 = arith.truncf %409 : vector<2x8x32xf32> to vector<2x8x32xbf16>
    %411 = arith.truncf %395 : vector<2x32x32xf32> to vector<2x32x32xbf16>
    "tpu.trace_start"() <{level = 10 : i32, message = "bqk,bkd->bqd"}> : () -> ()
    %cst_207 = arith.constant dense<0.000000e+00> : vector<2x8x32xf32>
    %412 = tpu.matmul %410, %411, %cst_207 {dimension_numbers = #tpu.dot_dimension_numbers<[2], [1], [1], [2], [0, 0, 0, 1, 1, 2], [0], [0]>} : vector<2x8x32xbf16>, vector<2x32x32xbf16>, vector<2x8x32xf32> -> vector<2x8x32xf32>
    "tpu.trace_stop"() : () -> ()
    %413 = vector.shape_cast %412 : vector<2x8x32xf32> to vector<16x32xf32>
    %414 = arith.truncf %413 : vector<16x32xf32> to vector<16x32xbf16>
    %cst_208 = arith.constant dense<0.000000e+00> : vector<16x32xf32>
    %415 = tpu.matmul %414, %380, %cst_208 {dimension_numbers = #tpu.dot_dimension_numbers<[1], [0], [0], [1], [0, 0, 1, 1], [], []>} : vector<16x32xbf16>, vector<32x32xbf16>, vector<16x32xf32> -> vector<16x32xf32>
    %416 = arith.addf %352, %415 : vector<16x32xf32>
    %c1_209 = arith.constant 1 : index
    %c0_210 = arith.constant 0 : index
    %c0_211 = arith.constant 0 : index
    %417 = vector.load %arg18[%c1_209, %c0_210, %c0_211] : memref<2x1x32xf32, #tpu.memory_space<vmem>>, vector<1x1x32xf32>
    %418 = vector.shape_cast %417 : vector<1x1x32xf32> to vector<1x32xf32>
    %419 = arith.mulf %416, %416 : vector<16x32xf32>
    %cst_212 = arith.constant dense<0.000000e+00> : vector<16xf32>
    %420 = vector.multi_reduction <add>, %419, %cst_212 [1] : vector<16x32xf32> to vector<16xf32>
    %421 = vector.shape_cast %420 : vector<16xf32> to vector<16x1xf32>
    %cst_213 = arith.constant 3.200000e+01 : f32
    %422 = vector.broadcast %cst_213 : f32 to vector<16x1xf32>
    %423 = arith.divf %421, %422 : vector<16x1xf32>
    %cst_214 = arith.constant 9.99999997E-7 : f32
    %424 = vector.broadcast %cst_214 : f32 to vector<16x1xf32>
    %425 = arith.addf %423, %424 : vector<16x1xf32>
    %426 = math.rsqrt %425 : vector<16x1xf32>
    %427 = vector.broadcast %426 : vector<16x1xf32> to vector<16x32xf32>
    %428 = arith.mulf %416, %427 : vector<16x32xf32>
    %429 = vector.broadcast %418 : vector<1x32xf32> to vector<16x32xf32>
    %430 = arith.mulf %428, %429 : vector<16x32xf32>
    %c1_215 = arith.constant 1 : index
    %c0_216 = arith.constant 0 : index
    %c0_217 = arith.constant 0 : index
    %431 = vector.load %arg19[%c1_215, %c0_216, %c0_217] : memref<2x32x32xbf16, #tpu.memory_space<vmem>>, vector<1x32x32xbf16>
    %432 = vector.shape_cast %431 : vector<1x32x32xbf16> to vector<32x32xbf16>
    %433 = arith.truncf %430 : vector<16x32xf32> to vector<16x32xbf16>
    %cst_218 = arith.constant dense<0.000000e+00> : vector<16x32xf32>
    %434 = tpu.matmul %433, %432, %cst_218 {dimension_numbers = #tpu.dot_dimension_numbers<[1], [0], [0], [1], [0, 0, 1, 1], [], []>} : vector<16x32xbf16>, vector<32x32xbf16>, vector<16x32xf32> -> vector<16x32xf32>
    %c1_219 = arith.constant 1 : index
    %c0_220 = arith.constant 0 : index
    %c0_221 = arith.constant 0 : index
    %c0_222 = arith.constant 0 : index
    %435 = vector.load %arg20[%c1_219, %c0_220, %c0_221, %c0_222] : memref<2x2x32x32xbf16, #tpu.memory_space<vmem>>, vector<1x1x32x32xbf16>
    %436 = vector.shape_cast %435 : vector<1x1x32x32xbf16> to vector<32x32xbf16>
    %437 = arith.truncf %197 : vector<16x32xf32> to vector<16x32xbf16>
    %cst_223 = arith.constant dense<0.000000e+00> : vector<16x32xf32>
    %438 = tpu.matmul %437, %436, %cst_223 {dimension_numbers = #tpu.dot_dimension_numbers<[1], [0], [0], [1], [0, 0, 1, 1], [], []>} : vector<16x32xbf16>, vector<32x32xbf16>, vector<16x32xf32> -> vector<16x32xf32>
    %c1_224 = arith.constant 1 : index
    %c1_225 = arith.constant 1 : index
    %c0_226 = arith.constant 0 : index
    %c0_227 = arith.constant 0 : index
    %439 = vector.load %arg20[%c1_224, %c1_225, %c0_226, %c0_227] : memref<2x2x32x32xbf16, #tpu.memory_space<vmem>>, vector<1x1x32x32xbf16>
    %440 = vector.shape_cast %439 : vector<1x1x32x32xbf16> to vector<32x32xbf16>
    %441 = arith.truncf %197 : vector<16x32xf32> to vector<16x32xbf16>
    %cst_228 = arith.constant dense<0.000000e+00> : vector<16x32xf32>
    %442 = tpu.matmul %441, %440, %cst_228 {dimension_numbers = #tpu.dot_dimension_numbers<[1], [0], [0], [1], [0, 0, 1, 1], [], []>} : vector<16x32xbf16>, vector<32x32xbf16>, vector<16x32xf32> -> vector<16x32xf32>
    %c1_229 = arith.constant 1 : index
    %c0_230 = arith.constant 0 : index
    %c0_231 = arith.constant 0 : index
    %443 = vector.load %arg21[%c1_229, %c0_230, %c0_231] : memref<2x32x32xbf16, #tpu.memory_space<vmem>>, vector<1x32x32xbf16>
    %444 = vector.shape_cast %443 : vector<1x32x32xbf16> to vector<32x32xbf16>
    %445 = vector.shape_cast %434 : vector<16x32xf32> to vector<2x8x32xf32>
    %446 = vector.shape_cast %438 : vector<16x32xf32> to vector<2x8x32xf32>
    %447 = vector.shape_cast %442 : vector<16x32xf32> to vector<2x8x32xf32>
    %448 = vector.shape_cast %446 : vector<2x8x32xf32> to vector<2x1x8x32xf32>
    %449 = vector.shape_cast %0 : vector<4x32xf32> to vector<1x4x1x32xf32>
    %450 = vector.broadcast %448 : vector<2x1x8x32xf32> to vector<2x4x8x32xf32>
    %451 = vector.broadcast %449 : vector<1x4x1x32xf32> to vector<2x4x8x32xf32>
    %452 = arith.mulf %450, %451 : vector<2x4x8x32xf32>
    %453 = vector.shape_cast %452 : vector<2x4x8x32xf32> to vector<2x32x32xf32>
    %454 = vector.shape_cast %447 : vector<2x8x32xf32> to vector<2x1x8x32xf32>
    %455 = vector.shape_cast %0 : vector<4x32xf32> to vector<1x4x1x32xf32>
    %456 = vector.broadcast %454 : vector<2x1x8x32xf32> to vector<2x4x8x32xf32>
    %457 = vector.broadcast %455 : vector<1x4x1x32xf32> to vector<2x4x8x32xf32>
    %458 = arith.mulf %456, %457 : vector<2x4x8x32xf32>
    %459 = vector.shape_cast %458 : vector<2x4x8x32xf32> to vector<2x32x32xf32>
    %460 = arith.truncf %445 : vector<2x8x32xf32> to vector<2x8x32xbf16>
    %461 = arith.truncf %453 : vector<2x32x32xf32> to vector<2x32x32xbf16>
    "tpu.trace_start"() <{level = 10 : i32, message = "bqd,bkd->bqk"}> : () -> ()
    %cst_232 = arith.constant dense<0.000000e+00> : vector<2x8x32xf32>
    %462 = tpu.matmul %460, %461, %cst_232 {dimension_numbers = #tpu.dot_dimension_numbers<[2], [2], [1], [1], [0, 0, 0, 1, 1, 1], [0], [0]>} : vector<2x8x32xbf16>, vector<2x32x32xbf16>, vector<2x8x32xf32> -> vector<2x8x32xf32>
    "tpu.trace_stop"() : () -> ()
    %463 = vector.broadcast %3 : vector<2x1x32xf32> to vector<2x8x32xf32>
    %464 = arith.addf %462, %463 : vector<2x8x32xf32>
    %cst_233 = arith.constant dense<0xFF800000> : vector<2x8xf32>
    %465 = vector.multi_reduction <maximumf>, %464, %cst_233 [2] : vector<2x8x32xf32> to vector<2x8xf32>
    %466 = vector.shape_cast %465 : vector<2x8xf32> to vector<2x8x1xf32>
    %467 = vector.broadcast %466 : vector<2x8x1xf32> to vector<2x8x32xf32>
    %468 = arith.subf %464, %467 : vector<2x8x32xf32>
    %469 = math.exp %468 : vector<2x8x32xf32>
    %470 = vector.shape_cast %469 : vector<2x8x32xf32> to vector<16x32xf32>
    %cst_234 = arith.constant dense<0.000000e+00> : vector<16x32xf32>
    %471 = tpu.matmul %470, %4, %cst_234 {dimension_numbers = #tpu.dot_dimension_numbers<[1], [0], [0], [1], [0, 0, 1, 1], [], []>} : vector<16x32xf32>, vector<32x32xf32>, vector<16x32xf32> -> vector<16x32xf32>
    %472 = tpu.reciprocal %471 {approx = true} : vector<16x32xf32> -> vector<16x32xf32>
    %473 = arith.mulf %470, %472 : vector<16x32xf32>
    %474 = vector.shape_cast %473 : vector<16x32xf32> to vector<2x8x32xf32>
    %475 = arith.truncf %474 : vector<2x8x32xf32> to vector<2x8x32xbf16>
    %476 = arith.truncf %459 : vector<2x32x32xf32> to vector<2x32x32xbf16>
    "tpu.trace_start"() <{level = 10 : i32, message = "bqk,bkd->bqd"}> : () -> ()
    %cst_235 = arith.constant dense<0.000000e+00> : vector<2x8x32xf32>
    %477 = tpu.matmul %475, %476, %cst_235 {dimension_numbers = #tpu.dot_dimension_numbers<[2], [1], [1], [2], [0, 0, 0, 1, 1, 2], [0], [0]>} : vector<2x8x32xbf16>, vector<2x32x32xbf16>, vector<2x8x32xf32> -> vector<2x8x32xf32>
    "tpu.trace_stop"() : () -> ()
    %478 = vector.shape_cast %477 : vector<2x8x32xf32> to vector<16x32xf32>
    %479 = arith.truncf %478 : vector<16x32xf32> to vector<16x32xbf16>
    %cst_236 = arith.constant dense<0.000000e+00> : vector<16x32xf32>
    %480 = tpu.matmul %479, %444, %cst_236 {dimension_numbers = #tpu.dot_dimension_numbers<[1], [0], [0], [1], [0, 0, 1, 1], [], []>} : vector<16x32xbf16>, vector<32x32xbf16>, vector<16x32xf32> -> vector<16x32xf32>
    %481 = arith.addf %416, %480 : vector<16x32xf32>
    %c1_237 = arith.constant 1 : index
    %c0_238 = arith.constant 0 : index
    %c0_239 = arith.constant 0 : index
    %482 = vector.load %arg22[%c1_237, %c0_238, %c0_239] : memref<2x1x32xf32, #tpu.memory_space<vmem>>, vector<1x1x32xf32>
    %483 = vector.shape_cast %482 : vector<1x1x32xf32> to vector<1x32xf32>
    %484 = arith.mulf %481, %481 : vector<16x32xf32>
    %cst_240 = arith.constant dense<0.000000e+00> : vector<16xf32>
    %485 = vector.multi_reduction <add>, %484, %cst_240 [1] : vector<16x32xf32> to vector<16xf32>
    %486 = vector.shape_cast %485 : vector<16xf32> to vector<16x1xf32>
    %cst_241 = arith.constant 3.200000e+01 : f32
    %487 = vector.broadcast %cst_241 : f32 to vector<16x1xf32>
    %488 = arith.divf %486, %487 : vector<16x1xf32>
    %cst_242 = arith.constant 9.99999997E-7 : f32
    %489 = vector.broadcast %cst_242 : f32 to vector<16x1xf32>
    %490 = arith.addf %488, %489 : vector<16x1xf32>
    %491 = math.rsqrt %490 : vector<16x1xf32>
    %492 = vector.broadcast %491 : vector<16x1xf32> to vector<16x32xf32>
    %493 = arith.mulf %481, %492 : vector<16x32xf32>
    %494 = vector.broadcast %483 : vector<1x32xf32> to vector<16x32xf32>
    %495 = arith.mulf %493, %494 : vector<16x32xf32>
    %c1_243 = arith.constant 1 : index
    %c0_244 = arith.constant 0 : index
    %c0_245 = arith.constant 0 : index
    %496 = vector.load %arg23[%c1_243, %c0_244, %c0_245] : memref<2x32x64xbf16, #tpu.memory_space<vmem>>, vector<1x32x64xbf16>
    %497 = vector.shape_cast %496 : vector<1x32x64xbf16> to vector<32x64xbf16>
    %498 = arith.truncf %495 : vector<16x32xf32> to vector<16x32xbf16>
    %cst_246 = arith.constant dense<0.000000e+00> : vector<16x64xf32>
    %499 = tpu.matmul %498, %497, %cst_246 {dimension_numbers = #tpu.dot_dimension_numbers<[1], [0], [0], [1], [0, 0, 1, 1], [], []>} : vector<16x32xbf16>, vector<32x64xbf16>, vector<16x64xf32> -> vector<16x64xf32>
    %cst_247 = arith.constant 0.000000e+00 : f32
    %500 = vector.broadcast %cst_247 : f32 to vector<16x64xf32>
    %501 = arith.maximumf %499, %500 : vector<16x64xf32>
    %c1_248 = arith.constant 1 : index
    %c0_249 = arith.constant 0 : index
    %c0_250 = arith.constant 0 : index
    %502 = vector.load %arg24[%c1_248, %c0_249, %c0_250] : memref<2x64x32xbf16, #tpu.memory_space<vmem>>, vector<1x64x32xbf16>
    %503 = vector.shape_cast %502 : vector<1x64x32xbf16> to vector<64x32xbf16>
    %504 = arith.truncf %501 : vector<16x64xf32> to vector<16x64xbf16>
    %cst_251 = arith.constant dense<0.000000e+00> : vector<16x32xf32>
    %505 = tpu.matmul %504, %503, %cst_251 {dimension_numbers = #tpu.dot_dimension_numbers<[1], [0], [0], [1], [0, 0, 1, 1], [], []>} : vector<16x64xbf16>, vector<64x32xbf16>, vector<16x32xf32> -> vector<16x32xf32>
    %506 = arith.addf %481, %505 : vector<16x32xf32>
    %507 = vector.shape_cast %506 : vector<16x32xf32> to vector<2x8x32xf32>
    %508 = vector.extract_strided_slice %507 {offsets = [0, 0, 0], sizes = [2, 1, 32], strides = [1, 1, 1]} : vector<2x8x32xf32> to vector<2x1x32xf32>
    %509 = vector.shape_cast %508 : vector<2x1x32xf32> to vector<2x32xf32>
    %c0_252 = arith.constant 0 : index
    %c0_253 = arith.constant 0 : index
    %510 = vector.load %arg25[%c0_252, %c0_253] : memref<1x32xf32, #tpu.memory_space<vmem>>, vector<1x32xf32>
    %511 = arith.mulf %509, %509 : vector<2x32xf32>
    %cst_254 = arith.constant dense<0.000000e+00> : vector<2xf32>
    %512 = vector.multi_reduction <add>, %511, %cst_254 [1] : vector<2x32xf32> to vector<2xf32>
    %513 = vector.shape_cast %512 : vector<2xf32> to vector<2x1xf32>
    %cst_255 = arith.constant 3.200000e+01 : f32
    %514 = vector.broadcast %cst_255 : f32 to vector<2x1xf32>
    %515 = arith.divf %513, %514 : vector<2x1xf32>
    %cst_256 = arith.constant 9.99999997E-7 : f32
    %516 = vector.broadcast %cst_256 : f32 to vector<2x1xf32>
    %517 = arith.addf %515, %516 : vector<2x1xf32>
    %518 = math.rsqrt %517 : vector<2x1xf32>
    %519 = vector.broadcast %518 : vector<2x1xf32> to vector<2x32xf32>
    %520 = arith.mulf %509, %519 : vector<2x32xf32>
    %521 = vector.broadcast %510 : vector<1x32xf32> to vector<2x32xf32>
    %522 = arith.mulf %520, %521 : vector<2x32xf32>
    %c0_257 = arith.constant 0 : index
    %c0_258 = arith.constant 0 : index
    %523 = vector.load %arg26[%c0_257, %c0_258] : memref<32x128xbf16, #tpu.memory_space<vmem>>, vector<32x128xbf16>
    %524 = arith.truncf %522 : vector<2x32xf32> to vector<2x32xbf16>
    %cst_259 = arith.constant dense<0.000000e+00> : vector<2x128xf32>
    %525 = tpu.matmul %524, %523, %cst_259 {dimension_numbers = #tpu.dot_dimension_numbers<[1], [0], [0], [1], [0, 0, 1, 1], [], []>} : vector<2x32xbf16>, vector<32x128xbf16>, vector<2x128xf32> -> vector<2x128xf32>
    %c0_260 = arith.constant 0 : index
    %c0_261 = arith.constant 0 : index
    %526 = vector.load %arg27[%c0_260, %c0_261] : memref<1x128xf32, #tpu.memory_space<vmem>>, vector<1x128xf32>
    %527 = vector.broadcast %526 : vector<1x128xf32> to vector<2x128xf32>
    %528 = arith.addf %525, %527 : vector<2x128xf32>
    %c0_262 = arith.constant 0 : index
    %c0_263 = arith.constant 0 : index
    %529 = vector.load %arg28[%c0_262, %c0_263] : memref<2x128xf32, #tpu.memory_space<vmem>>, vector<2x128xf32>
    tpu.vector_store %arg28[%c0_262, %c0_263], %528 {strides = array<i32>} : memref<2x128xf32, #tpu.memory_space<vmem>>, vector<2x128xf32>,
    return
  }
}

</mosaic_0001>

<llo_original>
// kernel: tile.24
$region0: #{tile.24}
  %s0 = inlined_call_operand.vmem [shape: f32[2,8,4,8], index: 0, kind: input, shape index: {}]
  %s1 = inlined_call_operand.vmem [shape: f32[2,8,32], index: 1, kind: output, shape index: {}]
  $region1: #{tile.24} parent=0
    #allocation0 [shape = 'u8[65536]{0}', space=vmem, size = 0x10000, scoped, tag = 'scoped mem for input reshape']
    %s3 = sshll.u32 1, 4
    %s4 = ssub.s32 %s3, 1
    %s5 = smul.addr 4, 15
    %s6 = scalar_lea.vmem %s0, %s5
    %v7 = vld [vmem:[%s6] sm:%s4]
    %s8 = scalar_lea.vmem [#allocation0], 120
    %9 = vst [vmem:[%s8] sm:%s4] %v7
    %s10 = smul.addr 4, 14
    %s11 = scalar_lea.vmem %s0, %s10
    %v12 = vld [vmem:[%s11] sm:%s4]
    %s13 = scalar_lea.vmem [#allocation0], 112
    %14 = vst [vmem:[%s13] sm:%s4] %v12
    %s15 = smul.addr 4, 13
    %s16 = scalar_lea.vmem %s0, %s15
    %v17 = vld [vmem:[%s16] sm:%s4]
    %s18 = scalar_lea.vmem [#allocation0], 104
    %19 = vst [vmem:[%s18] sm:%s4] %v17
    %s20 = smul.addr 4, 12
    %s21 = scalar_lea.vmem %s0, %s20
    %v22 = vld [vmem:[%s21] sm:%s4]
    %s23 = scalar_lea.vmem [#allocation0], 96
    %24 = vst [vmem:[%s23] sm:%s4] %v22
    %s25 = smul.addr 4, 11
    %s26 = scalar_lea.vmem %s0, %s25
    %v27 = vld [vmem:[%s26] sm:%s4]
    %s28 = scalar_lea.vmem [#allocation0], 88
    %29 = vst [vmem:[%s28] sm:%s4] %v27
    %s30 = smul.addr 4, 10
    %s31 = scalar_lea.vmem %s0, %s30
    %v32 = vld [vmem:[%s31] sm:%s4]
    %s33 = scalar_lea.vmem [#allocation0], 80
    %34 = vst [vmem:[%s33] sm:%s4] %v32
    %s35 = smul.addr 4, 9
    %s36 = scalar_lea.vmem %s0, %s35
    %v37 = vld [vmem:[%s36] sm:%s4]
    %s38 = scalar_lea.vmem [#allocation0], 72
    %39 = vst [vmem:[%s38] sm:%s4] %v37
    %s40 = smul.addr 4, 8
    %s41 = scalar_lea.vmem %s0, %s40
    %v42 = vld [vmem:[%s41] sm:%s4]
    %s43 = scalar_lea.vmem [#allocation0], 64
    %44 = vst [vmem:[%s43] sm:%s4] %v42
    %s45 = smul.addr 4, 7
    %s46 = scalar_lea.vmem %s0, %s45
    %v47 = vld [vmem:[%s46] sm:%s4]
    %s48 = scalar_lea.vmem [#allocation0], 56
    %49 = vst [vmem:[%s48] sm:%s4] %v47
    %s50 = smul.addr 4, 6
    %s51 = scalar_lea.vmem %s0, %s50
    %v52 = vld [vmem:[%s51] sm:%s4]
    %s53 = scalar_lea.vmem [#allocation0], 48
    %54 = vst [vmem:[%s53] sm:%s4] %v52
    %s55 = smul.addr 4, 5
    %s56 = scalar_lea.vmem %s0, %s55
    %v57 = vld [vmem:[%s56] sm:%s4]
    %s58 = scalar_lea.vmem [#allocation0], 40
    %59 = vst [vmem:[%s58] sm:%s4] %v57
    %s60 = smul.addr 4, 4
    %s61 = scalar_lea.vmem %s0, %s60
    %v62 = vld [vmem:[%s61] sm:%s4]
    %s63 = scalar_lea.vmem [#allocation0], 32
    %64 = vst [vmem:[%s63] sm:%s4] %v62
    %s65 = smul.addr 4, 3
    %s66 = scalar_lea.vmem %s0, %s65
    %v67 = vld [vmem:[%s66] sm:%s4]
    %s68 = scalar_lea.vmem [#allocation0], 24
    %69 = vst [vmem:[%s68] sm:%s4] %v67
    %s70 = smul.addr 4, 2
    %s71 = scalar_lea.vmem %s0, %s70
    %v72 = vld [vmem:[%s71] sm:%s4]
    %s73 = scalar_lea.vmem [#allocation0], 16
    %74 = vst [vmem:[%s73] sm:%s4] %v72
    %s75 = scalar_lea.vmem %s0, 4
    %v76 = vld [vmem:[%s75] sm:%s4]
    %s77 = scalar_lea.vmem [#allocation0], 8
    %78 = vst [vmem:[%s77] sm:%s4] %v76
    %v79 = vld [vmem:[%s0] sm:%s4]
    %80 = vst [vmem:[#allocation0] sm:%s4] %v79
    %v81 = vld [vmem:[#allocation0] ss:$8 sm:$0xf]
    %v82 = vld [vmem:[#allocation0] ss:$8 sm:$0xf0]
    %vm83 = vcmask 1047556
    %v84 = vsel %vm83, %v82, %v81
    %vm85 = vcmask 64512
    %86 = vst.msk [vmem:[%s1] sm:$0xff] %vm85, %v84
    %s87 = scalar_lea.vmem [#allocation0], 64
    %v88 = vld [vmem:[%s87] ss:$8 sm:$0xf]
    %s89 = scalar_lea.vmem [#allocation0], 64
    %v90 = vld [vmem:[%s89] ss:$8 sm:$0xf0]
    %vm91 = vcmask 1047556
    %v92 = vsel %vm91, %v90, %v88
    %vm93 = vcmask 64512
    %s94 = scalar_lea.vmem %s1, 8
    %95 = vst.msk [vmem:[%s94] sm:$0xff] %vm93, %v92
    %s96 = scalar_lea.vmem [#allocation0], 3
    %v97 = vld [vmem:[%s96] ss:$8 sm:$0xf]
    %s98 = scalar_lea.vmem [#allocation0], 3
    %v99 = vld [vmem:[%s98] ss:$8 sm:$0xf0]
    %vm100 = vcmask 1047556
    %v101 = vsel %vm100, %v99, %v97
    %102 = vrot.lane.b32.xlu0 %v101, 24
    %v103 = vpop.permute.xlu0 %102
    %vm104 = vcmask 261312
    %105 = vst.msk [vmem:[%s1] sm:$0xff] %vm104, %v103
    %s106 = scalar_lea.vmem [#allocation0], 67
    %v107 = vld [vmem:[%s106] ss:$8 sm:$0xf]
    %s108 = scalar_lea.vmem [#allocation0], 67
    %v109 = vld [vmem:[%s108] ss:$8 sm:$0xf0]
    %vm110 = vcmask 1047556
    %v111 = vsel %vm110, %v109, %v107
    %112 = vrot.lane.b32.xlu0 %v111, 24
    %v113 = vpop.permute.xlu0 %112
    %vm114 = vcmask 261312
    %s115 = scalar_lea.vmem %s1, 8
    %116 = vst.msk [vmem:[%s115] sm:$0xff] %vm114, %v113
    %s117 = scalar_lea.vmem [#allocation0], 2
    %v118 = vld [vmem:[%s117] ss:$8 sm:$0xf]
    %s119 = scalar_lea.vmem [#allocation0], 2
    %v120 = vld [vmem:[%s119] ss:$8 sm:$0xf0]
    %vm121 = vcmask 1047556
    %v122 = vsel %vm121, %v120, %v118
    %123 = vrot.lane.b32.xlu0 %v122, 16
    %v124 = vpop.permute.xlu0 %123
    %vm125 = vcmask 195712
    %126 = vst.msk [vmem:[%s1] sm:$0xff] %vm125, %v124
    %s127 = scalar_lea.vmem [#allocation0], 66
    %v128 = vld [vmem:[%s127] ss:$8 sm:$0xf]
    %s129 = scalar_lea.vmem [#allocation0], 66
    %v130 = vld [vmem:[%s129] ss:$8 sm:$0xf0]
    %vm131 = vcmask 1047556
    %v132 = vsel %vm131, %v130, %v128
    %133 = vrot.lane.b32.xlu0 %v132, 16
    %v134 = vpop.permute.xlu0 %133
    %vm135 = vcmask 195712
    %s136 = scalar_lea.vmem %s1, 8
    %137 = vst.msk [vmem:[%s136] sm:$0xff] %vm135, %v134
    %s138 = scalar_lea.vmem [#allocation0], 1
    %v139 = vld [vmem:[%s138] ss:$8 sm:$0xf]
    %s140 = scalar_lea.vmem [#allocation0], 1
    %v141 = vld [vmem:[%s140] ss:$8 sm:$0xf0]
    %vm142 = vcmask 1047556
    %v143 = vsel %vm142, %v141, %v139
    %144 = vrot.lane.b32.xlu0 %v143, 8
    %v145 = vpop.permute.xlu0 %144
    %vm146 = vcmask 130112
    %147 = vst.msk [vmem:[%s1] sm:$0xff] %vm146, %v145
    %s148 = scalar_lea.vmem [#allocation0], 65
    %v149 = vld [vmem:[%s148] ss:$8 sm:$0xf]
    %s150 = scalar_lea.vmem [#allocation0], 65
    %v151 = vld [vmem:[%s150] ss:$8 sm:$0xf0]
    %vm152 = vcmask 1047556
    %v153 = vsel %vm152, %v151, %v149
    %154 = vrot.lane.b32.xlu0 %v153, 8
    %v155 = vpop.permute.xlu0 %154
    %vm156 = vcmask 130112
    %s157 = scalar_lea.vmem %s1, 8
    %158 = vst.msk [vmem:[%s157] sm:$0xff] %vm156, %v155

// kernel: _lambda_.1
$region0: #{_lambda_.1}
  #allocation0 [shape = 'u32[]', space=smem, size = 0x4, offset = 0x4, fixed_abs, tag = 'smem constant byte address 0x4 - core index']
  #allocation1 [shape = 'u32[144,128]{1,0:T(1,128)}', space=vmem, size = 0x12000, scoped, tag = 'internal scratch']
  %s0 = inlined_call_operand.vmem [shape: f32[16,32], index: 0, kind: input, shape index: {}]
  %s1 = inlined_call_operand.vmem [shape: f32[16,32], index: 1, kind: input, shape index: {}]
  %s2 = inlined_call_operand.vmem [shape: f32[2,8,32], index: 2, kind: input, shape index: {}]
  %s3 = inlined_call_operand.vmem [shape: f32[2,8,32], index: 3, kind: input, shape index: {}]
  %s4 = inlined_call_operand.vmem [shape: f32[2,1,32], index: 4, kind: input, shape index: {}]
  %s5 = inlined_call_operand.vmem [shape: f32[4,32], index: 5, kind: input, shape index: {}]
  %s6 = inlined_call_operand.vmem [shape: f32[32,32], index: 6, kind: input, shape index: {}, may-alias: {6,7}]
  %s7 = inlined_call_operand.vmem [shape: f32[32,32], index: 7, kind: input, shape index: {}, may-alias: {6,7}]
  %s8 = inlined_call_operand.vmem [shape: f32[2,1,32], index: 8, kind: input, shape index: {}]
  %s9 = inlined_call_operand.vmem [shape: bf16[2,3,32,32], index: 9, kind: input, shape index: {}]
  %s10 = inlined_call_operand.vmem [shape: bf16[2,32,32], index: 10, kind: input, shape index: {}]
  %s11 = inlined_call_operand.vmem [shape: f32[2,1,32], index: 11, kind: input, shape index: {}]
  %s12 = inlined_call_operand.vmem [shape: bf16[2,32,64], index: 12, kind: input, shape index: {}]
  %s13 = inlined_call_operand.vmem [shape: bf16[2,64,32], index: 13, kind: input, shape index: {}]
  %s14 = inlined_call_operand.vmem [shape: f32[1,32], index: 14, kind: input, shape index: {}]
  %s15 = inlined_call_operand.vmem [shape: f32[2,1,32], index: 15, kind: input, shape index: {}]
  %s16 = inlined_call_operand.vmem [shape: bf16[2,3,32,32], index: 16, kind: input, shape index: {}]
  %s17 = inlined_call_operand.vmem [shape: bf16[2,32,32], index: 17, kind: input, shape index: {}]
  %s18 = inlined_call_operand.vmem [shape: f32[2,1,32], index: 18, kind: input, shape index: {}]
  %s19 = inlined_call_operand.vmem [shape: bf16[2,32,32], index: 19, kind: input, shape index: {}]
  %s20 = inlined_call_operand.vmem [shape: bf16[2,2,32,32], index: 20, kind: input, shape index: {}]
  %s21 = inlined_call_operand.vmem [shape: bf16[2,32,32], index: 21, kind: input, shape index: {}]
  %s22 = inlined_call_operand.vmem [shape: f32[2,1,32], index: 22, kind: input, shape index: {}]
  %s23 = inlined_call_operand.vmem [shape: bf16[2,32,64], index: 23, kind: input, shape index: {}]
  %s24 = inlined_call_operand.vmem [shape: bf16[2,64,32], index: 24, kind: input, shape index: {}]
  %s25 = inlined_call_operand.vmem [shape: f32[1,32], index: 25, kind: input, shape index: {}]
  %s26 = inlined_call_operand.vmem [shape: bf16[32,128], index: 26, kind: input, shape index: {}]
  %s27 = inlined_call_operand.vmem [shape: f32[1,128], index: 27, kind: input, shape index: {}]
  %s28 = inlined_call_operand.hbm [shape: f32[2,128], index: 28, kind: output, shape index: {}]
  %s29 = sld [smem:[#allocation0]]
  $region122: #{_lambda_.1} parent=0
    _
  %s31 = ssub.s32 1, %s29
  %s32 = scalar_select 0, %s31, %s29
  $region1: #{_lambda_.1} parent=0
    #allocation2 [shape = 'u8[1024]{0}', space=vmem, size = 0x400, scoped, tag = 'output window, operand 0, single buffered']
    #allocation3 [shape = 's32[1]{0}', space=sflag, size = 0x4, scoped, tag = 'scoped memory for _lambda_.1']
    %33 = vsyncpa [#allocation3], 0
    // Predicated region
    $region2: #{_lambda_.1} parent=1 // pred_check
      _
    $region3: #{_lambda_.1} parent=1 // pred_check_branch
      %35 = sbr.rel (0) target = $region5
    $region4: #{_lambda_.1} parent=1 // pred_region
      _
    $region5: #{_lambda_.1} parent=1 // pred_fallthru
      _
    // Predicated region
    $region6: #{_lambda_.1} parent=1 // pred_check
      _
    $region7: #{_lambda_.1} parent=1 // pred_check_branch
      %37 = sbr.rel (0) target = $region9
    $region8: #{_lambda_.1} parent=1 // pred_region
      _
    $region9: #{_lambda_.1} parent=1 // pred_fallthru
      _
    // Predicated region
    $region10: #{_lambda_.1} parent=1 // pred_check
      _
    $region11: #{_lambda_.1} parent=1 // pred_check_branch
      %39 = sbr.rel (0) target = $region13
    $region12: #{_lambda_.1} parent=1 // pred_region
      _
    $region13: #{_lambda_.1} parent=1 // pred_fallthru
      _
    // Predicated region
    $region14: #{_lambda_.1} parent=1 // pred_check
      _
    $region15: #{_lambda_.1} parent=1 // pred_check_branch
      %41 = sbr.rel (0) target = $region17
    $region16: #{_lambda_.1} parent=1 // pred_region
      _
    $region17: #{_lambda_.1} parent=1 // pred_fallthru
      _
    // Predicated region
    $region18: #{_lambda_.1} parent=1 // pred_check
      _
    $region19: #{_lambda_.1} parent=1 // pred_check_branch
      %43 = sbr.rel (0) target = $region21
    $region20: #{_lambda_.1} parent=1 // pred_region
      _
    $region21: #{_lambda_.1} parent=1 // pred_fallthru
      _
    // Predicated region
    $region22: #{_lambda_.1} parent=1 // pred_check
      _
    $region23: #{_lambda_.1} parent=1 // pred_check_branch
      %45 = sbr.rel (0) target = $region25
    $region24: #{_lambda_.1} parent=1 // pred_region
      _
    $region25: #{_lambda_.1} parent=1 // pred_fallthru
      _
    // Predicated region
    $region26: #{_lambda_.1} parent=1 // pred_check
      _
    $region27: #{_lambda_.1} parent=1 // pred_check_branch
      %47 = sbr.rel (0) target = $region29
    $region28: #{_lambda_.1} parent=1 // pred_region
      _
    $region29: #{_lambda_.1} parent=1 // pred_fallthru
      _
    // Predicated region
    $region30: #{_lambda_.1} parent=1 // pred_check
      _
    $region31: #{_lambda_.1} parent=1 // pred_check_branch
      %49 = sbr.rel (0) target = $region33
    $region32: #{_lambda_.1} parent=1 // pred_region
      _
    $region33: #{_lambda_.1} parent=1 // pred_fallthru
      _
    // Predicated region
    $region34: #{_lambda_.1} parent=1 // pred_check
      _
    $region35: #{_lambda_.1} parent=1 // pred_check_branch
      %51 = sbr.rel (0) target = $region37
    $region36: #{_lambda_.1} parent=1 // pred_region
      _
    $region37: #{_lambda_.1} parent=1 // pred_fallthru
      _
    // Predicated region
    $region38: #{_lambda_.1} parent=1 // pred_check
      _
    $region39: #{_lambda_.1} parent=1 // pred_check_branch
      %53 = sbr.rel (0) target = $region41
    $region40: #{_lambda_.1} parent=1 // pred_region
      _
    $region41: #{_lambda_.1} parent=1 // pred_fallthru
      _
    // Predicated region
    $region42: #{_lambda_.1} parent=1 // pred_check
      _
    $region43: #{_lambda_.1} parent=1 // pred_check_branch
      %55 = sbr.rel (0) target = $region45
    $region44: #{_lambda_.1} parent=1 // pred_region
      _
    $region45: #{_lambda_.1} parent=1 // pred_fallthru
      _
    // Predicated region
    $region46: #{_lambda_.1} parent=1 // pred_check
      _
    $region47: #{_lambda_.1} parent=1 // pred_check_branch
      %57 = sbr.rel (0) target = $region49
    $region48: #{_lambda_.1} parent=1 // pred_region
      _
    $region49: #{_lambda_.1} parent=1 // pred_fallthru
      _
    // Predicated region
    $region50: #{_lambda_.1} parent=1 // pred_check
      _
    $region51: #{_lambda_.1} parent=1 // pred_check_branch
      %59 = sbr.rel (0) target = $region53
    $region52: #{_lambda_.1} parent=1 // pred_region
      _
    $region53: #{_lambda_.1} parent=1 // pred_fallthru
      _
    // Predicated region
    $region54: #{_lambda_.1} parent=1 // pred_check
      _
    $region55: #{_lambda_.1} parent=1 // pred_check_branch
      %61 = sbr.rel (0) target = $region57
    $region56: #{_lambda_.1} parent=1 // pred_region
      _
    $region57: #{_lambda_.1} parent=1 // pred_fallthru
      _
    // Predicated region
    $region58: #{_lambda_.1} parent=1 // pred_check
      _
    $region59: #{_lambda_.1} parent=1 // pred_check_branch
      %63 = sbr.rel (0) target = $region61
    $region60: #{_lambda_.1} parent=1 // pred_region
      _
    $region61: #{_lambda_.1} parent=1 // pred_fallthru
      _
    // Predicated region
    $region62: #{_lambda_.1} parent=1 // pred_check
      _
    $region63: #{_lambda_.1} parent=1 // pred_check_branch
      %65 = sbr.rel (0) target = $region65
    $region64: #{_lambda_.1} parent=1 // pred_region
      _
    $region65: #{_lambda_.1} parent=1 // pred_fallthru
      _
    // Predicated region
    $region66: #{_lambda_.1} parent=1 // pred_check
      _
    $region67: #{_lambda_.1} parent=1 // pred_check_branch
      %67 = sbr.rel (0) target = $region69
    $region68: #{_lambda_.1} parent=1 // pred_region
      _
    $region69: #{_lambda_.1} parent=1 // pred_fallthru
      _
    // Predicated region
    $region70: #{_lambda_.1} parent=1 // pred_check
      _
    $region71: #{_lambda_.1} parent=1 // pred_check_branch
      %69 = sbr.rel (0) target = $region73
    $region72: #{_lambda_.1} parent=1 // pred_region
      _
    $region73: #{_lambda_.1} parent=1 // pred_fallthru
      _
    // Predicated region
    $region74: #{_lambda_.1} parent=1 // pred_check
      _
    $region75: #{_lambda_.1} parent=1 // pred_check_branch
      %71 = sbr.rel (0) target = $region77
    $region76: #{_lambda_.1} parent=1 // pred_region
      _
    $region77: #{_lambda_.1} parent=1 // pred_fallthru
      _
    // Predicated region
    $region78: #{_lambda_.1} parent=1 // pred_check
      _
    $region79: #{_lambda_.1} parent=1 // pred_check_branch
      %73 = sbr.rel (0) target = $region81
    $region80: #{_lambda_.1} parent=1 // pred_region
      _
    $region81: #{_lambda_.1} parent=1 // pred_fallthru
      _
    // Predicated region
    $region82: #{_lambda_.1} parent=1 // pred_check
      _
    $region83: #{_lambda_.1} parent=1 // pred_check_branch
      %75 = sbr.rel (0) target = $region85
    $region84: #{_lambda_.1} parent=1 // pred_region
      _
    $region85: #{_lambda_.1} parent=1 // pred_fallthru
      _
    // Predicated region
    $region86: #{_lambda_.1} parent=1 // pred_check
      _
    $region87: #{_lambda_.1} parent=1 // pred_check_branch
      %77 = sbr.rel (0) target = $region89
    $region88: #{_lambda_.1} parent=1 // pred_region
      _
    $region89: #{_lambda_.1} parent=1 // pred_fallthru
      _
    // Predicated region
    $region90: #{_lambda_.1} parent=1 // pred_check
      _
    $region91: #{_lambda_.1} parent=1 // pred_check_branch
      %79 = sbr.rel (0) target = $region93
    $region92: #{_lambda_.1} parent=1 // pred_region
      _
    $region93: #{_lambda_.1} parent=1 // pred_fallthru
      _
    // Predicated region
    $region94: #{_lambda_.1} parent=1 // pred_check
      _
    $region95: #{_lambda_.1} parent=1 // pred_check_branch
      %81 = sbr.rel (0) target = $region97
    $region96: #{_lambda_.1} parent=1 // pred_region
      _
    $region97: #{_lambda_.1} parent=1 // pred_fallthru
      _
    // Predicated region
    $region98: #{_lambda_.1} parent=1 // pred_check
      _
    $region99: #{_lambda_.1} parent=1 // pred_check_branch
      %83 = sbr.rel (0) target = $region101
    $region100: #{_lambda_.1} parent=1 // pred_region
      _
    $region101: #{_lambda_.1} parent=1 // pred_fallthru
      _
    // Predicated region
    $region102: #{_lambda_.1} parent=1 // pred_check
      _
    $region103: #{_lambda_.1} parent=1 // pred_check_branch
      %85 = sbr.rel (0) target = $region105
    $region104: #{_lambda_.1} parent=1 // pred_region
      _
    $region105: #{_lambda_.1} parent=1 // pred_fallthru
      _
    // Predicated region
    $region106: #{_lambda_.1} parent=1 // pred_check
      _
    $region107: #{_lambda_.1} parent=1 // pred_check_branch
      %87 = sbr.rel (0) target = $region109
    $region108: #{_lambda_.1} parent=1 // pred_region
      _
    $region109: #{_lambda_.1} parent=1 // pred_fallthru
      _
    // Predicated region
    $region110: #{_lambda_.1} parent=1 // pred_check
      _
    $region111: #{_lambda_.1} parent=1 // pred_check_branch
      %89 = sbr.rel (0) target = $region113
    $region112: #{_lambda_.1} parent=1 // pred_region
      _
    $region113: #{_lambda_.1} parent=1 // pred_fallthru
      _
    %v91 = vld [vmem:[%s5] sm:$0xf]
    %v92 = vld [vmem:[%s2] sm:$0xff]
    %v93 = vld [vmem:[%s2 + $0x8] sm:$0xff]
    %v94 = vld [vmem:[%s3] sm:$0xff]
    %v95 = vld [vmem:[%s3 + $0x8] sm:$0xff]
    %v96 = vld [vmem:[%s4] sm:$0x1]
    %v97 = vld [vmem:[%s4 + $0x1] sm:$0x1]
    %v98 = vld [vmem:[%s6] sm:$0xff]
    %v99 = vld [vmem:[%s6 + $0x8] sm:$0xff]
    %v100 = vld [vmem:[%s6 + $0x10] sm:$0xff]
    %v101 = vld [vmem:[%s6 + $0x18] sm:$0xff]
    %v102 = vld [vmem:[%s7] sm:$0xff]
    %v103 = vld [vmem:[%s7 + $0x8] sm:$0xff]
    %v104 = vld [vmem:[%s7 + $0x10] sm:$0xff]
    %v105 = vld [vmem:[%s7 + $0x18] sm:$0xff]
    %v106 = vld [vmem:[%s0] sm:$0xff]
    %v107 = vld [vmem:[%s0 + $0x8] sm:$0xff]
    %v108 = vld [vmem:[%s8] sm:$0x1]
    %v109 = vmul.f32 %v106, %v106
    %v110 = vmul.f32 %v107, %v107
    %vm111 = vcmask 261120
    %v112 = vsel %vm111, %v109, 0.0
    %113 = vadd.xlane.f32.xlu0 %v112
    %v114 = vpop.xlane.xlu0 %113
    %v115 = vsel %vm111, %v110, 0.0
    %116 = vadd.xlane.f32.xlu0 %v115
    %v117 = vpop.xlane.xlu0 %116
    %v118 = vrcp.pop 32.0
    %v119 = vmul.f32 %v114, %v118
    %v120 = vmul.f32 %v117, %v118
    %v121 = vadd.f32 %v119, 1e-06
    %v122 = vadd.f32 %v120, 1e-06
    %v123 = vrsqrt.pop %v121
    %v124 = vrsqrt.pop %v122
    %v125 = vmul.f32 %v106, %v123
    %v126 = vmul.f32 %v107, %v124
    %v128 = vlaneseq
    %v129 = vshrl.u32 %v128, 7
    %v130 = vsub.s32 0, %v129
    %v131 = vrot.slane %v108, %v130
    %v133 = vmul.f32 %v125, %v131
    %v134 = vmul.f32 %v126, %v131
    %v135 = vld [vmem:[%s9] sm:$0xf]
    %v136 = vld [vmem:[%s9 + $0x4] sm:$0xf]
    %v137 = vld [vmem:[%s9 + $0x8] sm:$0xf]
    %v138 = vld [vmem:[%s9 + $0xc] sm:$0xf]
    %v139 = vpack.c.bf16 %v134, %v133
    %v144 = vunpack.c.l.b16 %v135
    %v145 = vunpack.c.l.b16 %v136
    %v146 = vunpack.c.l.b16 %v137
    %v147 = vunpack.c.l.b16 %v138
    %v148 = vpack.c.b16 %v145, %v144
    %v149 = vpack.c.b16 %v147, %v146
    %v153 = vsel %vm111, %v139, 0
    %155 = vmatprep.subr.bf16.mxu0 0
    %156 = vmatpush1.bf16.msra.mxu0 0
    %157 = vmatprep.subr.bf16.mxu0 0
    %158 = vmatpush1.bf16.msra.mxu0 0
    %159 = vmatprep.subr.bf16.mxu0 0
    %160 = vmatpush1.bf16.msra.mxu0 0
    %161 = vmatprep.subr.bf16.mxu0 0
    %162 = vmatpush1.bf16.msra.mxu0 0
    %163 = vmatprep.subr.bf16.mxu0 0
    %164 = vmatpush1.bf16.msra.mxu0 0
    %165 = vmatprep.subr.bf16.mxu0 0
    %166 = vmatpush1.bf16.msra.mxu0 0
    %167 = vmatprep.subr.bf16.mxu0 0
    %168 = vmatpush1.bf16.msra.mxu0 %v149
    %169 = vmatprep.subr.bf16.mxu0 0
    %170 = vmatpush1.bf16.msra.mxu0 %v148
    %171 = vmatprep.subr.bf16.mxu0 0
    %172 = vmatpush2.bf16.msra.mxu0 0
    %173 = vmatprep.subr.bf16.mxu0 0
    %174 = vmatpush2.bf16.msra.mxu0 0
    %175 = vmatprep.subr.bf16.mxu0 0
    %176 = vmatpush2.bf16.msra.mxu0 0
    %177 = vmatprep.subr.bf16.mxu0 0
    %178 = vmatpush2.bf16.msra.mxu0 0
    %179 = vmatprep.subr.bf16.mxu0 0
    %180 = vmatpush2.bf16.msra.mxu0 0
    %181 = vmatprep.subr.bf16.mxu0 0
    %182 = vmatpush2.bf16.msra.mxu0 0
    %183 = vmatprep.subr.bf16.mxu0 0
    %184 = vmatpush2.bf16.msra.mxu0 0
    %185 = vmatprep.subr.bf16.mxu0 0
    %186 = vmatpush2.bf16.msra.mxu0 0
    %187 = vmatprep.mubr.bf16.mxu0 0
    %188 = vmatmul.mubr.bf16.gmra.mxu0 %v153
    %v189 = vpop.f32.mrf.mxu0
    %v190 = vadd.f32 0.0, %v189
    %v191 = vpop.f32.mrf.mxu0
    %v192 = vpop.f32.mrf.mxu0
    %v193 = vadd.f32 0.0, %v192
    %v194 = vpop.f32.mrf.mxu0
    %195 = vdwg.mxu0
    %s196 = scalar_lea.vmem %s9, 16
    %v197 = vld [vmem:[%s196] sm:$0xf]
    %v198 = vld [vmem:[%s196 + $0x4] sm:$0xf]
    %v199 = vld [vmem:[%s196 + $0x8] sm:$0xf]
    %v200 = vld [vmem:[%s196 + $0xc] sm:$0xf]
    %v205 = vunpack.c.l.b16 %v197
    %v206 = vunpack.c.l.b16 %v198
    %v207 = vunpack.c.l.b16 %v199
    %v208 = vunpack.c.l.b16 %v200
    %v209 = vpack.c.b16 %v206, %v205
    %v210 = vpack.c.b16 %v208, %v207
    %213 = vmatprep.subr.bf16.mxu0 0
    %214 = vmatpush1.bf16.msra.mxu0 0
    %215 = vmatprep.subr.bf16.mxu0 0
    %216 = vmatpush1.bf16.msra.mxu0 0
    %217 = vmatprep.subr.bf16.mxu0 0
    %218 = vmatpush1.bf16.msra.mxu0 0
    %219 = vmatprep.subr.bf16.mxu0 0
    %220 = vmatpush1.bf16.msra.mxu0 0
    %221 = vmatprep.subr.bf16.mxu0 0
    %222 = vmatpush1.bf16.msra.mxu0 0
    %223 = vmatprep.subr.bf16.mxu0 0
    %224 = vmatpush1.bf16.msra.mxu0 0
    %225 = vmatprep.subr.bf16.mxu0 0
    %226 = vmatpush1.bf16.msra.mxu0 %v210
    %227 = vmatprep.subr.bf16.mxu0 0
    %228 = vmatpush1.bf16.msra.mxu0 %v209
    %229 = vmatprep.subr.bf16.mxu0 0
    %230 = vmatpush2.bf16.msra.mxu0 0
    %231 = vmatprep.subr.bf16.mxu0 0
    %232 = vmatpush2.bf16.msra.mxu0 0
    %233 = vmatprep.subr.bf16.mxu0 0
    %234 = vmatpush2.bf16.msra.mxu0 0
    %235 = vmatprep.subr.bf16.mxu0 0
    %236 = vmatpush2.bf16.msra.mxu0 0
    %237 = vmatprep.subr.bf16.mxu0 0
    %238 = vmatpush2.bf16.msra.mxu0 0
    %239 = vmatprep.subr.bf16.mxu0 0
    %240 = vmatpush2.bf16.msra.mxu0 0
    %241 = vmatprep.subr.bf16.mxu0 0
    %242 = vmatpush2.bf16.msra.mxu0 0
    %243 = vmatprep.subr.bf16.mxu0 0
    %244 = vmatpush2.bf16.msra.mxu0 0
    %245 = vmatprep.mubr.bf16.mxu0 0
    %246 = vmatmul.mubr.bf16.gmra.mxu0 %v153
    %v247 = vpop.f32.mrf.mxu0
    %v248 = vadd.f32 0.0, %v247
    %v249 = vpop.f32.mrf.mxu0
    %v250 = vpop.f32.mrf.mxu0
    %v251 = vadd.f32 0.0, %v250
    %v252 = vpop.f32.mrf.mxu0
    %253 = vdwg.mxu0
    %s254 = scalar_lea.vmem %s9, 32
    %v255 = vld [vmem:[%s254] sm:$0xf]
    %v256 = vld [vmem:[%s254 + $0x4] sm:$0xf]
    %v257 = vld [vmem:[%s254 + $0x8] sm:$0xf]
    %v258 = vld [vmem:[%s254 + $0xc] sm:$0xf]
    %v263 = vunpack.c.l.b16 %v255
    %v264 = vunpack.c.l.b16 %v256
    %v265 = vunpack.c.l.b16 %v257
    %v266 = vunpack.c.l.b16 %v258
    %v267 = vpack.c.b16 %v264, %v263
    %v268 = vpack.c.b16 %v266, %v265
    %271 = vmatprep.subr.bf16.mxu0 0
    %272 = vmatpush1.bf16.msra.mxu0 0
    %273 = vmatprep.subr.bf16.mxu0 0
    %274 = vmatpush1.bf16.msra.mxu0 0
    %275 = vmatprep.subr.bf16.mxu0 0
    %276 = vmatpush1.bf16.msra.mxu0 0
    %277 = vmatprep.subr.bf16.mxu0 0
    %278 = vmatpush1.bf16.msra.mxu0 0
    %279 = vmatprep.subr.bf16.mxu0 0
    %280 = vmatpush1.bf16.msra.mxu0 0
    %281 = vmatprep.subr.bf16.mxu0 0
    %282 = vmatpush1.bf16.msra.mxu0 0
    %283 = vmatprep.subr.bf16.mxu0 0
    %284 = vmatpush1.bf16.msra.mxu0 %v268
    %285 = vmatprep.subr.bf16.mxu0 0
    %286 = vmatpush1.bf16.msra.mxu0 %v267
    %287 = vmatprep.subr.bf16.mxu0 0
    %288 = vmatpush2.bf16.msra.mxu0 0
    %289 = vmatprep.subr.bf16.mxu0 0
    %290 = vmatpush2.bf16.msra.mxu0 0
    %291 = vmatprep.subr.bf16.mxu0 0
    %292 = vmatpush2.bf16.msra.mxu0 0
    %293 = vmatprep.subr.bf16.mxu0 0
    %294 = vmatpush2.bf16.msra.mxu0 0
    %295 = vmatprep.subr.bf16.mxu0 0
    %296 = vmatpush2.bf16.msra.mxu0 0
    %297 = vmatprep.subr.bf16.mxu0 0
    %298 = vmatpush2.bf16.msra.mxu0 0
    %299 = vmatprep.subr.bf16.mxu0 0
    %300 = vmatpush2.bf16.msra.mxu0 0
    %301 = vmatprep.subr.bf16.mxu0 0
    %302 = vmatpush2.bf16.msra.mxu0 0
    %303 = vmatprep.mubr.bf16.mxu0 0
    %304 = vmatmul.mubr.bf16.gmra.mxu0 %v153
    %v305 = vpop.f32.mrf.mxu0
    %v306 = vadd.f32 0.0, %v305
    %v307 = vpop.f32.mrf.mxu0
    %v308 = vpop.f32.mrf.mxu0
    %v309 = vadd.f32 0.0, %v308
    %v310 = vpop.f32.mrf.mxu0
    %311 = vdwg.mxu0
    %v312 = vld [vmem:[%s10] sm:$0xf]
    %v313 = vld [vmem:[%s10 + $0x4] sm:$0xf]
    %v314 = vld [vmem:[%s10 + $0x8] sm:$0xf]
    %v315 = vld [vmem:[%s10 + $0xc] sm:$0xf]
    %v318 = vunpack.c.l.s4 1966171168
    %v319 = vunpack.c.0.s8 %v318
    %v320 = vlaneseq
    %v321 = vshrl.u32 %v320, 7
    %v322 = vsub.s32 %v319, %v321
    %v323 = vrot.slane %v91, %v322
    %v324 = vcombine.high %v323, %v323
    %v326 = vunpack.c.l.s4 1966171168
    %v327 = vunpack.c.0.s8 %v326
    %v328 = vlaneseq
    %v329 = vshrl.u32 %v328, 7
    %v330 = vsub.s32 %v327, %v329
    %v331 = vrot.slane %v323, %v330
    %v333 = vunpack.c.l.s4 1966171168
    %v334 = vunpack.c.0.s8 %v333
    %v335 = vlaneseq
    %v336 = vshrl.u32 %v335, 7
    %v337 = vsub.s32 %v334, %v336
    %v338 = vrot.slane %v324, %v337
    %v339 = vcombine.high %v331, %v331
    %v340 = vcombine.high %v338, %v338
    %v341 = vlaneseq
    %v342 = vshrl.u32 %v341, 7
    %v343 = vsub.s32 0, %v342
    %v344 = vrot.slane %v331, %v343
    %v345 = vlaneseq
    %v346 = vshrl.u32 %v345, 7
    %v347 = vsub.s32 0, %v346
    %v348 = vrot.slane %v338, %v347
    %v349 = vlaneseq
    %v350 = vshrl.u32 %v349, 7
    %v351 = vsub.s32 0, %v350
    %v352 = vrot.slane %v339, %v351
    %v353 = vlaneseq
    %v354 = vshrl.u32 %v353, 7
    %v355 = vsub.s32 0, %v354
    %v356 = vrot.slane %v340, %v355
    %v361 = vmul.f32 %v248, %v344
    %v362 = vmul.f32 %v248, %v348
    %v363 = vmul.f32 %v248, %v352
    %v364 = vmul.f32 %v248, %v356
    %v365 = vmul.f32 %v251, %v344
    %v366 = vmul.f32 %v251, %v348
    %v367 = vmul.f32 %v251, %v352
    %v368 = vmul.f32 %v251, %v356
    %v369 = vmul.f32 %v306, %v344
    %v370 = vmul.f32 %v306, %v348
    %v371 = vmul.f32 %v306, %v352
    %v372 = vmul.f32 %v306, %v356
    %v373 = vmul.f32 %v309, %v344
    %v374 = vmul.f32 %v309, %v348
    %v375 = vmul.f32 %v309, %v352
    %v376 = vmul.f32 %v309, %v356
    %v377 = vpack.c.bf16 %v190, %v190
    %v378 = vpack.c.bf16 %v193, %v193
    %v379 = vpack.c.bf16 %v362, %v361
    %v380 = vpack.c.bf16 %v364, %v363
    %v381 = vpack.c.bf16 %v366, %v365
    %v382 = vpack.c.bf16 %v368, %v367
    %v384 = vsel %vm111, %v377, 0
    %v387 = vsel %vm111, %v379, 0
    %v390 = vsel %vm111, %v380, 0
    %392 = vmatprep.subr.bf16.mxu0 0
    %393 = vmatpush1.bf16.xpose.msra.mxu0 0
    %394 = vmatprep.subr.bf16.mxu0 0
    %395 = vmatpush1.bf16.xpose.msra.mxu0 0
    %396 = vmatprep.subr.bf16.mxu0 0
    %397 = vmatpush1.bf16.xpose.msra.mxu0 0
    %398 = vmatprep.subr.bf16.mxu0 0
    %399 = vmatpush1.bf16.xpose.msra.mxu0 0
    %400 = vmatprep.subr.bf16.mxu0 0
    %401 = vmatpush1.bf16.xpose.msra.mxu0 0
    %402 = vmatprep.subr.bf16.mxu0 0
    %403 = vmatpush1.bf16.xpose.msra.mxu0 0
    %404 = vmatprep.subr.bf16.mxu0 0
    %405 = vmatpush1.bf16.xpose.msra.mxu0 %v390
    %406 = vmatprep.subr.bf16.mxu0 0
    %407 = vmatpush1.bf16.xpose.msra.mxu0 %v387
    %408 = vmatprep.subr.bf16.mxu0 0
    %409 = vmatpush2.bf16.xpose.msra.mxu0 0
    %410 = vmatprep.subr.bf16.mxu0 0
    %411 = vmatpush2.bf16.xpose.msra.mxu0 0
    %412 = vmatprep.subr.bf16.mxu0 0
    %413 = vmatpush2.bf16.xpose.msra.mxu0 0
    %414 = vmatprep.subr.bf16.mxu0 0
    %415 = vmatpush2.bf16.xpose.msra.mxu0 0
    %416 = vmatprep.subr.bf16.mxu0 0
    %417 = vmatpush2.bf16.xpose.msra.mxu0 0
    %418 = vmatprep.subr.bf16.mxu0 0
    %419 = vmatpush2.bf16.xpose.msra.mxu0 0
    %420 = vmatprep.subr.bf16.mxu0 0
    %421 = vmatpush2.bf16.xpose.msra.mxu0 0
    %422 = vmatprep.subr.bf16.mxu0 0
    %423 = vmatpush2.bf16.xpose.msra.mxu0 0
    %424 = vmatprep.mubr.bf16.mxu0 0
    %425 = vmatmul.mubr.bf16.gmra.mxu0 %v384
    %v426 = vpop.f32.mrf.mxu0
    %v427 = vadd.f32 %v92, %v426
    %v428 = vpop.f32.mrf.mxu0
    %v429 = vpop.f32.mrf.mxu0
    %v430 = vpop.f32.mrf.mxu0
    %431 = vdwg.mxu0
    %v433 = vsel %vm111, %v378, 0
    %v436 = vsel %vm111, %v381, 0
    %v439 = vsel %vm111, %v382, 0
    %441 = vmatprep.subr.bf16.mxu0 0
    %442 = vmatpush1.bf16.xpose.msra.mxu0 0
    %443 = vmatprep.subr.bf16.mxu0 0
    %444 = vmatpush1.bf16.xpose.msra.mxu0 0
    %445 = vmatprep.subr.bf16.mxu0 0
    %446 = vmatpush1.bf16.xpose.msra.mxu0 0
    %447 = vmatprep.subr.bf16.mxu0 0
    %448 = vmatpush1.bf16.xpose.msra.mxu0 0
    %449 = vmatprep.subr.bf16.mxu0 0
    %450 = vmatpush1.bf16.xpose.msra.mxu0 0
    %451 = vmatprep.subr.bf16.mxu0 0
    %452 = vmatpush1.bf16.xpose.msra.mxu0 0
    %453 = vmatprep.subr.bf16.mxu0 0
    %454 = vmatpush1.bf16.xpose.msra.mxu0 %v439
    %455 = vmatprep.subr.bf16.mxu0 0
    %456 = vmatpush1.bf16.xpose.msra.mxu0 %v436
    %457 = vmatprep.subr.bf16.mxu0 0
    %458 = vmatpush2.bf16.xpose.msra.mxu0 0
    %459 = vmatprep.subr.bf16.mxu0 0
    %460 = vmatpush2.bf16.xpose.msra.mxu0 0
    %461 = vmatprep.subr.bf16.mxu0 0
    %462 = vmatpush2.bf16.xpose.msra.mxu0 0
    %463 = vmatprep.subr.bf16.mxu0 0
    %464 = vmatpush2.bf16.xpose.msra.mxu0 0
    %465 = vmatprep.subr.bf16.mxu0 0
    %466 = vmatpush2.bf16.xpose.msra.mxu0 0
    %467 = vmatprep.subr.bf16.mxu0 0
    %468 = vmatpush2.bf16.xpose.msra.mxu0 0
    %469 = vmatprep.subr.bf16.mxu0 0
    %470 = vmatpush2.bf16.xpose.msra.mxu0 0
    %471 = vmatprep.subr.bf16.mxu0 0
    %472 = vmatpush2.bf16.xpose.msra.mxu0 0
    %473 = vmatprep.mubr.bf16.mxu0 0
    %474 = vmatmul.mubr.bf16.gmra.mxu0 %v433
    %v475 = vpop.f32.mrf.mxu0
    %v476 = vadd.f32 %v93, %v475
    %v477 = vpop.f32.mrf.mxu0
    %v478 = vpop.f32.mrf.mxu0
    %v479 = vpop.f32.mrf.mxu0
    %480 = vdwg.mxu0
    %v481 = vsel %vm111, %v427, -inf
    %482 = vmax.xlane.f32.xlu0 %v481
    %v483 = vpop.xlane.xlu0 %482
    %v484 = vsel %vm111, %v476, -inf
    %485 = vmax.xlane.f32.xlu0 %v484
    %v486 = vpop.xlane.xlu0 %485
    %v487 = vsub.f32 %v427, %v483
    %v488 = vsub.f32 %v476, %v486
    %v489 = vmul.f32 %v487, 1.442695
    %v490 = vpow.pop %v489
    %v491 = vmul.f32 %v488, 1.442695
    %v492 = vpow.pop %v491
    %v494 = vsel %vm111, %v490, 0
    %v497 = vsel %vm111, %v492, 0
    %499 = vmatprep.subr.mxu0 0.0
    %500 = vmatpush1.msra.mxu0 0.0
    %501 = vmatprep.subr.mxu0 0.0
    %502 = vmatpush1.msra.mxu0 0.0
    %503 = vmatprep.subr.mxu0 0.0
    %504 = vmatpush1.msra.mxu0 0.0
    %505 = vmatprep.subr.mxu0 0.0
    %506 = vmatpush1.msra.mxu0 0.0
    %507 = vmatprep.subr.mxu0 0.0
    %508 = vmatpush1.msra.mxu0 0.0
    %509 = vmatprep.subr.mxu0 0.0
    %510 = vmatpush1.msra.mxu0 0.0
    %511 = vmatprep.subr.mxu0 0.0
    %512 = vmatpush1.msra.mxu0 0.0
    %513 = vmatprep.subr.mxu0 0.0
    %514 = vmatpush1.msra.mxu0 0.0
    %515 = vmatprep.subr.mxu0 0.0
    %516 = vmatpush1.msra.mxu0 0.0
    %517 = vmatprep.subr.mxu0 0.0
    %518 = vmatpush1.msra.mxu0 0.0
    %519 = vmatprep.subr.mxu0 0.0
    %520 = vmatpush1.msra.mxu0 0.0
    %521 = vmatprep.subr.mxu0 0.0
    %522 = vmatpush1.msra.mxu0 0.0
    %523 = vmatprep.subr.mxu0 0.0
    %524 = vmatpush1.msra.mxu0 %v101
    %525 = vmatprep.subr.mxu0 0.0
    %526 = vmatpush1.msra.mxu0 %v100
    %527 = vmatprep.subr.mxu0 0.0
    %528 = vmatpush1.msra.mxu0 %v99
    %529 = vmatprep.subr.mxu0 0.0
    %530 = vmatpush1.msra.mxu0 %v98
    %531 = vmatprep.subr.mxu0 0.0
    %532 = vmatpush2.msra.mxu0 0.0
    %533 = vmatprep.subr.mxu0 0.0
    %534 = vmatpush2.msra.mxu0 0.0
    %535 = vmatprep.subr.mxu0 0.0
    %536 = vmatpush2.msra.mxu0 0.0
    %537 = vmatprep.subr.mxu0 0.0
    %538 = vmatpush2.msra.mxu0 0.0
    %539 = vmatprep.subr.mxu0 0.0
    %540 = vmatpush2.msra.mxu0 0.0
    %541 = vmatprep.subr.mxu0 0.0
    %542 = vmatpush2.msra.mxu0 0.0
    %543 = vmatprep.subr.mxu0 0.0
    %544 = vmatpush2.msra.mxu0 0.0
    %545 = vmatprep.subr.mxu0 0.0
    %546 = vmatpush2.msra.mxu0 0.0
    %547 = vmatprep.subr.mxu0 0.0
    %548 = vmatpush2.msra.mxu0 0.0
    %549 = vmatprep.subr.mxu0 0.0
    %550 = vmatpush2.msra.mxu0 0.0
    %551 = vmatprep.subr.mxu0 0.0
    %552 = vmatpush2.msra.mxu0 0.0
    %553 = vmatprep.subr.mxu0 0.0
    %554 = vmatpush2.msra.mxu0 0.0
    %555 = vmatprep.subr.mxu0 0.0
    %556 = vmatpush2.msra.mxu0 0.0
    %557 = vmatprep.subr.mxu0 0.0
    %558 = vmatpush2.msra.mxu0 0.0
    %559 = vmatprep.subr.mxu0 0.0
    %560 = vmatpush2.msra.mxu0 0.0
    %561 = vmatprep.subr.mxu0 0.0
    %562 = vmatpush2.msra.mxu0 0.0
    %563 = vmatprep.mubr.f32.mxu0 0.0
    %564 = vmatmul.mubr.f32.gmra.mxu0 %v494
    %v565 = vpop.f32.mrf.mxu0
    %v566 = vadd.f32 0.0, %v565
    %v567 = vpop.f32.mrf.mxu0
    %568 = vmatprep.mubr.f32.mxu0 0.0
    %569 = vmatmul.mubr.f32.gmra.mxu0 %v497
    %v570 = vpop.f32.mrf.mxu0
    %v571 = vadd.f32 0.0, %v570
    %v572 = vpop.f32.mrf.mxu0
    %573 = vdwg.mxu0
    %v574 = vrcp.pop %v566
    %v575 = vrcp.pop %v571
    %v576 = vmul.f32 %v490, %v574
    %v577 = vmul.f32 %v492, %v575
    %v578 = vpack.c.bf16 %v576, %v576
    %v579 = vpack.c.bf16 %v577, %v577
    %v580 = vpack.c.bf16 %v370, %v369
    %v581 = vpack.c.bf16 %v372, %v371
    %v582 = vpack.c.bf16 %v374, %v373
    %v583 = vpack.c.bf16 %v376, %v375
    %v585 = vsel %vm111, %v578, 0
    %587 = vmatprep.subr.bf16.mxu0 0
    %588 = vmatpush1.bf16.msra.mxu0 0
    %589 = vmatprep.subr.bf16.mxu0 0
    %590 = vmatpush1.bf16.msra.mxu0 0
    %591 = vmatprep.subr.bf16.mxu0 0
    %592 = vmatpush1.bf16.msra.mxu0 0
    %593 = vmatprep.subr.bf16.mxu0 0
    %594 = vmatpush1.bf16.msra.mxu0 0
    %595 = vmatprep.subr.bf16.mxu0 0
    %596 = vmatpush1.bf16.msra.mxu0 0
    %597 = vmatprep.subr.bf16.mxu0 0
    %598 = vmatpush1.bf16.msra.mxu0 0
    %599 = vmatprep.subr.bf16.mxu0 0
    %600 = vmatpush1.bf16.msra.mxu0 %v581
    %601 = vmatprep.subr.bf16.mxu0 0
    %602 = vmatpush1.bf16.msra.mxu0 %v580
    %603 = vmatprep.subr.bf16.mxu0 0
    %604 = vmatpush2.bf16.msra.mxu0 0
    %605 = vmatprep.subr.bf16.mxu0 0
    %606 = vmatpush2.bf16.msra.mxu0 0
    %607 = vmatprep.subr.bf16.mxu0 0
    %608 = vmatpush2.bf16.msra.mxu0 0
    %609 = vmatprep.subr.bf16.mxu0 0
    %610 = vmatpush2.bf16.msra.mxu0 0
    %611 = vmatprep.subr.bf16.mxu0 0
    %612 = vmatpush2.bf16.msra.mxu0 0
    %613 = vmatprep.subr.bf16.mxu0 0
    %614 = vmatpush2.bf16.msra.mxu0 0
    %615 = vmatprep.subr.bf16.mxu0 0
    %616 = vmatpush2.bf16.msra.mxu0 0
    %617 = vmatprep.subr.bf16.mxu0 0
    %618 = vmatpush2.bf16.msra.mxu0 0
    %619 = vmatprep.mubr.bf16.mxu0 0
    %620 = vmatmul.mubr.bf16.gmra.mxu0 %v585
    %v621 = vpop.f32.mrf.mxu0
    %v622 = vadd.f32 0.0, %v621
    %v623 = vpop.f32.mrf.mxu0
    %v624 = vpop.f32.mrf.mxu0
    %v625 = vpop.f32.mrf.mxu0
    %626 = vdwg.mxu0
    %v628 = vsel %vm111, %v579, 0
    %630 = vmatprep.subr.bf16.mxu0 0
    %631 = vmatpush1.bf16.msra.mxu0 0
    %632 = vmatprep.subr.bf16.mxu0 0
    %633 = vmatpush1.bf16.msra.mxu0 0
    %634 = vmatprep.subr.bf16.mxu0 0
    %635 = vmatpush1.bf16.msra.mxu0 0
    %636 = vmatprep.subr.bf16.mxu0 0
    %637 = vmatpush1.bf16.msra.mxu0 0
    %638 = vmatprep.subr.bf16.mxu0 0
    %639 = vmatpush1.bf16.msra.mxu0 0
    %640 = vmatprep.subr.bf16.mxu0 0
    %641 = vmatpush1.bf16.msra.mxu0 0
    %642 = vmatprep.subr.bf16.mxu0 0
    %643 = vmatpush1.bf16.msra.mxu0 %v583
    %644 = vmatprep.subr.bf16.mxu0 0
    %645 = vmatpush1.bf16.msra.mxu0 %v582
    %646 = vmatprep.subr.bf16.mxu0 0
    %647 = vmatpush2.bf16.msra.mxu0 0
    %648 = vmatprep.subr.bf16.mxu0 0
    %649 = vmatpush2.bf16.msra.mxu0 0
    %650 = vmatprep.subr.bf16.mxu0 0
    %651 = vmatpush2.bf16.msra.mxu0 0
    %652 = vmatprep.subr.bf16.mxu0 0
    %653 = vmatpush2.bf16.msra.mxu0 0
    %654 = vmatprep.subr.bf16.mxu0 0
    %655 = vmatpush2.bf16.msra.mxu0 0
    %656 = vmatprep.subr.bf16.mxu0 0
    %657 = vmatpush2.bf16.msra.mxu0 0
    %658 = vmatprep.subr.bf16.mxu0 0
    %659 = vmatpush2.bf16.msra.mxu0 0
    %660 = vmatprep.subr.bf16.mxu0 0
    %661 = vmatpush2.bf16.msra.mxu0 0
    %662 = vmatprep.mubr.bf16.mxu0 0
    %663 = vmatmul.mubr.bf16.gmra.mxu0 %v628
    %v664 = vpop.f32.mrf.mxu0
    %v665 = vadd.f32 0.0, %v664
    %v666 = vpop.f32.mrf.mxu0
    %v667 = vpop.f32.mrf.mxu0
    %v668 = vpop.f32.mrf.mxu0
    %669 = vdwg.mxu0
    %v670 = vpack.c.bf16 %v665, %v622
    %v675 = vunpack.c.l.b16 %v312
    %v676 = vunpack.c.l.b16 %v313
    %v677 = vunpack.c.l.b16 %v314
    %v678 = vunpack.c.l.b16 %v315
    %v679 = vpack.c.b16 %v676, %v675
    %v680 = vpack.c.b16 %v678, %v677
    %v684 = vsel %vm111, %v670, 0
    %686 = vmatprep.subr.bf16.mxu0 0
    %687 = vmatpush1.bf16.msra.mxu0 0
    %688 = vmatprep.subr.bf16.mxu0 0
    %689 = vmatpush1.bf16.msra.mxu0 0
    %690 = vmatprep.subr.bf16.mxu0 0
    %691 = vmatpush1.bf16.msra.mxu0 0
    %692 = vmatprep.subr.bf16.mxu0 0
    %693 = vmatpush1.bf16.msra.mxu0 0
    %694 = vmatprep.subr.bf16.mxu0 0
    %695 = vmatpush1.bf16.msra.mxu0 0
    %696 = vmatprep.subr.bf16.mxu0 0
    %697 = vmatpush1.bf16.msra.mxu0 0
    %698 = vmatprep.subr.bf16.mxu0 0
    %699 = vmatpush1.bf16.msra.mxu0 %v680
    %700 = vmatprep.subr.bf16.mxu0 0
    %701 = vmatpush1.bf16.msra.mxu0 %v679
    %702 = vmatprep.subr.bf16.mxu0 0
    %703 = vmatpush2.bf16.msra.mxu0 0
    %704 = vmatprep.subr.bf16.mxu0 0
    %705 = vmatpush2.bf16.msra.mxu0 0
    %706 = vmatprep.subr.bf16.mxu0 0
    %707 = vmatpush2.bf16.msra.mxu0 0
    %708 = vmatprep.subr.bf16.mxu0 0
    %709 = vmatpush2.bf16.msra.mxu0 0
    %710 = vmatprep.subr.bf16.mxu0 0
    %711 = vmatpush2.bf16.msra.mxu0 0
    %712 = vmatprep.subr.bf16.mxu0 0
    %713 = vmatpush2.bf16.msra.mxu0 0
    %714 = vmatprep.subr.bf16.mxu0 0
    %715 = vmatpush2.bf16.msra.mxu0 0
    %716 = vmatprep.subr.bf16.mxu0 0
    %717 = vmatpush2.bf16.msra.mxu0 0
    %718 = vmatprep.mubr.bf16.mxu0 0
    %719 = vmatmul.mubr.bf16.gmra.mxu0 %v684
    %v720 = vpop.f32.mrf.mxu0
    %v721 = vadd.f32 0.0, %v720
    %v722 = vpop.f32.mrf.mxu0
    %v723 = vpop.f32.mrf.mxu0
    %v724 = vadd.f32 0.0, %v723
    %v725 = vpop.f32.mrf.mxu0
    %726 = vdwg.mxu0
    %v727 = vadd.f32 %v106, %v721
    %v728 = vadd.f32 %v107, %v724
    %v729 = vld [vmem:[%s11] sm:$0x1]
    %v730 = vmul.f32 %v727, %v727
    %v731 = vmul.f32 %v728, %v728
    %v732 = vsel %vm111, %v730, 0.0
    %733 = vadd.xlane.f32.xlu0 %v732
    %v734 = vpop.xlane.xlu0 %733
    %v735 = vsel %vm111, %v731, 0.0
    %736 = vadd.xlane.f32.xlu0 %v735
    %v737 = vpop.xlane.xlu0 %736
    %v738 = vmul.f32 %v734, %v118
    %v739 = vmul.f32 %v737, %v118
    %v740 = vadd.f32 %v738, 1e-06
    %v741 = vadd.f32 %v739, 1e-06
    %v742 = vrsqrt.pop %v740
    %v743 = vrsqrt.pop %v741
    %v744 = vmul.f32 %v727, %v742
    %v745 = vmul.f32 %v728, %v743
    %v747 = vlaneseq
    %v748 = vshrl.u32 %v747, 7
    %v749 = vsub.s32 0, %v748
    %v750 = vrot.slane %v729, %v749
    %v752 = vmul.f32 %v744, %v750
    %v753 = vmul.f32 %v745, %v750
    %v754 = vld [vmem:[%s12] sm:$0xf]
    %v755 = vld [vmem:[%s12 + $0x4] sm:$0xf]
    %v756 = vld [vmem:[%s12 + $0x8] sm:$0xf]
    %v757 = vld [vmem:[%s12 + $0xc] sm:$0xf]
    %v758 = vpack.c.bf16 %v753, %v752
    %v763 = vunpack.c.l.b16 %v754
    %v764 = vunpack.c.l.b16 %v755
    %v765 = vunpack.c.l.b16 %v756
    %v766 = vunpack.c.l.b16 %v757
    %v767 = vpack.c.b16 %v764, %v763
    %v768 = vpack.c.b16 %v766, %v765
    %v772 = vsel %vm111, %v758, 0
    %774 = vmatprep.subr.bf16.mxu0 0
    %775 = vmatpush1.bf16.msra.mxu0 0
    %776 = vmatprep.subr.bf16.mxu0 0
    %777 = vmatpush1.bf16.msra.mxu0 0
    %778 = vmatprep.subr.bf16.mxu0 0
    %779 = vmatpush1.bf16.msra.mxu0 0
    %780 = vmatprep.subr.bf16.mxu0 0
    %781 = vmatpush1.bf16.msra.mxu0 0
    %782 = vmatprep.subr.bf16.mxu0 0
    %783 = vmatpush1.bf16.msra.mxu0 0
    %784 = vmatprep.subr.bf16.mxu0 0
    %785 = vmatpush1.bf16.msra.mxu0 0
    %786 = vmatprep.subr.bf16.mxu0 0
    %787 = vmatpush1.bf16.msra.mxu0 %v768
    %788 = vmatprep.subr.bf16.mxu0 0
    %789 = vmatpush1.bf16.msra.mxu0 %v767
    %790 = vmatprep.subr.bf16.mxu0 0
    %791 = vmatpush2.bf16.msra.mxu0 0
    %792 = vmatprep.subr.bf16.mxu0 0
    %793 = vmatpush2.bf16.msra.mxu0 0
    %794 = vmatprep.subr.bf16.mxu0 0
    %795 = vmatpush2.bf16.msra.mxu0 0
    %796 = vmatprep.subr.bf16.mxu0 0
    %797 = vmatpush2.bf16.msra.mxu0 0
    %798 = vmatprep.subr.bf16.mxu0 0
    %799 = vmatpush2.bf16.msra.mxu0 0
    %800 = vmatprep.subr.bf16.mxu0 0
    %801 = vmatpush2.bf16.msra.mxu0 0
    %802 = vmatprep.subr.bf16.mxu0 0
    %803 = vmatpush2.bf16.msra.mxu0 0
    %804 = vmatprep.subr.bf16.mxu0 0
    %805 = vmatpush2.bf16.msra.mxu0 0
    %806 = vmatprep.mubr.bf16.mxu0 0
    %807 = vmatmul.mubr.bf16.gmra.mxu0 %v772
    %v808 = vpop.f32.mrf.mxu0
    %v809 = vadd.f32 0.0, %v808
    %v810 = vpop.f32.mrf.mxu0
    %v811 = vpop.f32.mrf.mxu0
    %v812 = vadd.f32 0.0, %v811
    %v813 = vpop.f32.mrf.mxu0
    %814 = vdwg.mxu0
    %v815 = vmax.f32 %v809, 0.0
    %v816 = vmax.f32 %v812, 0.0
    %v817 = vld [vmem:[%s13] sm:$0xf]
    %v818 = vld [vmem:[%s13 + $0x4] sm:$0xf]
    %v819 = vld [vmem:[%s13 + $0x8] sm:$0xf]
    %v820 = vld [vmem:[%s13 + $0xc] sm:$0xf]
    %v821 = vld [vmem:[%s13 + $0x10] sm:$0xf]
    %v822 = vld [vmem:[%s13 + $0x14] sm:$0xf]
    %v823 = vld [vmem:[%s13 + $0x18] sm:$0xf]
    %v824 = vld [vmem:[%s13 + $0x1c] sm:$0xf]
    %v825 = vpack.c.bf16 %v816, %v815
    %v834 = vunpack.c.l.b16 %v817
    %v835 = vunpack.c.l.b16 %v818
    %v836 = vunpack.c.l.b16 %v819
    %v837 = vunpack.c.l.b16 %v820
    %v838 = vunpack.c.l.b16 %v821
    %v839 = vunpack.c.l.b16 %v822
    %v840 = vunpack.c.l.b16 %v823
    %v841 = vunpack.c.l.b16 %v824
    %v842 = vpack.c.b16 %v835, %v834
    %v843 = vpack.c.b16 %v837, %v836
    %v844 = vpack.c.b16 %v839, %v838
    %v845 = vpack.c.b16 %v841, %v840
    %vm850 = vcmask 523264
    %v852 = vsel %vm850, %v825, 0
    %854 = vmatprep.subr.bf16.mxu0 0
    %855 = vmatpush1.bf16.msra.mxu0 0
    %856 = vmatprep.subr.bf16.mxu0 0
    %857 = vmatpush1.bf16.msra.mxu0 0
    %858 = vmatprep.subr.bf16.mxu0 0
    %859 = vmatpush1.bf16.msra.mxu0 0
    %860 = vmatprep.subr.bf16.mxu0 0
    %861 = vmatpush1.bf16.msra.mxu0 0
    %862 = vmatprep.subr.bf16.mxu0 0
    %863 = vmatpush1.bf16.msra.mxu0 %v845
    %864 = vmatprep.subr.bf16.mxu0 0
    %865 = vmatpush1.bf16.msra.mxu0 %v844
    %866 = vmatprep.subr.bf16.mxu0 0
    %867 = vmatpush1.bf16.msra.mxu0 %v843
    %868 = vmatprep.subr.bf16.mxu0 0
    %869 = vmatpush1.bf16.msra.mxu0 %v842
    %870 = vmatprep.subr.bf16.mxu0 0
    %871 = vmatpush2.bf16.msra.mxu0 0
    %872 = vmatprep.subr.bf16.mxu0 0
    %873 = vmatpush2.bf16.msra.mxu0 0
    %874 = vmatprep.subr.bf16.mxu0 0
    %875 = vmatpush2.bf16.msra.mxu0 0
    %876 = vmatprep.subr.bf16.mxu0 0
    %877 = vmatpush2.bf16.msra.mxu0 0
    %878 = vmatprep.subr.bf16.mxu0 0
    %879 = vmatpush2.bf16.msra.mxu0 0
    %880 = vmatprep.subr.bf16.mxu0 0
    %881 = vmatpush2.bf16.msra.mxu0 0
    %882 = vmatprep.subr.bf16.mxu0 0
    %883 = vmatpush2.bf16.msra.mxu0 0
    %884 = vmatprep.subr.bf16.mxu0 0
    %885 = vmatpush2.bf16.msra.mxu0 0
    %886 = vmatprep.mubr.bf16.mxu0 0
    %887 = vmatmul.mubr.bf16.gmra.mxu0 %v852
    %v888 = vpop.f32.mrf.mxu0
    %v889 = vadd.f32 0.0, %v888
    %v890 = vpop.f32.mrf.mxu0
    %v891 = vpop.f32.mrf.mxu0
    %v892 = vadd.f32 0.0, %v891
    %v893 = vpop.f32.mrf.mxu0
    %894 = vdwg.mxu0
    %v895 = vadd.f32 %v727, %v889
    %v896 = vadd.f32 %v728, %v892
    %s897 = scalar_lea.vmem %s8, 1
    %v898 = vld [vmem:[%s897] sm:$0x1]
    %v899 = vmul.f32 %v895, %v895
    %v900 = vmul.f32 %v896, %v896
    %v901 = vsel %vm111, %v899, 0.0
    %902 = vadd.xlane.f32.xlu0 %v901
    %v903 = vpop.xlane.xlu0 %902
    %v904 = vsel %vm111, %v900, 0.0
    %905 = vadd.xlane.f32.xlu0 %v904
    %v906 = vpop.xlane.xlu0 %905
    %v907 = vmul.f32 %v903, %v118
    %v908 = vmul.f32 %v906, %v118
    %v909 = vadd.f32 %v907, 1e-06
    %v910 = vadd.f32 %v908, 1e-06
    %v911 = vrsqrt.pop %v909
    %v912 = vrsqrt.pop %v910
    %v913 = vmul.f32 %v895, %v911
    %v914 = vmul.f32 %v896, %v912
    %v916 = vlaneseq
    %v917 = vshrl.u32 %v916, 7
    %v918 = vsub.s32 0, %v917
    %v919 = vrot.slane %v898, %v918
    %v921 = vmul.f32 %v913, %v919
    %v922 = vmul.f32 %v914, %v919
    %s923 = scalar_lea.vmem %s9, 48
    %v924 = vld [vmem:[%s923] sm:$0xf]
    %v925 = vld [vmem:[%s923 + $0x4] sm:$0xf]
    %v926 = vld [vmem:[%s923 + $0x8] sm:$0xf]
    %v927 = vld [vmem:[%s923 + $0xc] sm:$0xf]
    %v928 = vpack.c.bf16 %v922, %v921
    %v933 = vunpack.c.l.b16 %v924
    %v934 = vunpack.c.l.b16 %v925
    %v935 = vunpack.c.l.b16 %v926
    %v936 = vunpack.c.l.b16 %v927
    %v937 = vpack.c.b16 %v934, %v933
    %v938 = vpack.c.b16 %v936, %v935
    %v942 = vsel %vm111, %v928, 0
    %944 = vmatprep.subr.bf16.mxu0 0
    %945 = vmatpush1.bf16.msra.mxu0 0
    %946 = vmatprep.subr.bf16.mxu0 0
    %947 = vmatpush1.bf16.msra.mxu0 0
    %948 = vmatprep.subr.bf16.mxu0 0
    %949 = vmatpush1.bf16.msra.mxu0 0
    %950 = vmatprep.subr.bf16.mxu0 0
    %951 = vmatpush1.bf16.msra.mxu0 0
    %952 = vmatprep.subr.bf16.mxu0 0
    %953 = vmatpush1.bf16.msra.mxu0 0
    %954 = vmatprep.subr.bf16.mxu0 0
    %955 = vmatpush1.bf16.msra.mxu0 0
    %956 = vmatprep.subr.bf16.mxu0 0
    %957 = vmatpush1.bf16.msra.mxu0 %v938
    %958 = vmatprep.subr.bf16.mxu0 0
    %959 = vmatpush1.bf16.msra.mxu0 %v937
    %960 = vmatprep.subr.bf16.mxu0 0
    %961 = vmatpush2.bf16.msra.mxu0 0
    %962 = vmatprep.subr.bf16.mxu0 0
    %963 = vmatpush2.bf16.msra.mxu0 0
    %964 = vmatprep.subr.bf16.mxu0 0
    %965 = vmatpush2.bf16.msra.mxu0 0
    %966 = vmatprep.subr.bf16.mxu0 0
    %967 = vmatpush2.bf16.msra.mxu0 0
    %968 = vmatprep.subr.bf16.mxu0 0
    %969 = vmatpush2.bf16.msra.mxu0 0
    %970 = vmatprep.subr.bf16.mxu0 0
    %971 = vmatpush2.bf16.msra.mxu0 0
    %972 = vmatprep.subr.bf16.mxu0 0
    %973 = vmatpush2.bf16.msra.mxu0 0
    %974 = vmatprep.subr.bf16.mxu0 0
    %975 = vmatpush2.bf16.msra.mxu0 0
    %976 = vmatprep.mubr.bf16.mxu0 0
    %977 = vmatmul.mubr.bf16.gmra.mxu0 %v942
    %v978 = vpop.f32.mrf.mxu0
    %v979 = vadd.f32 0.0, %v978
    %v980 = vpop.f32.mrf.mxu0
    %v981 = vpop.f32.mrf.mxu0
    %v982 = vadd.f32 0.0, %v981
    %v983 = vpop.f32.mrf.mxu0
    %984 = vdwg.mxu0
    %s985 = scalar_lea.vmem %s9, 64
    %v986 = vld [vmem:[%s985] sm:$0xf]
    %v987 = vld [vmem:[%s985 + $0x4] sm:$0xf]
    %v988 = vld [vmem:[%s985 + $0x8] sm:$0xf]
    %v989 = vld [vmem:[%s985 + $0xc] sm:$0xf]
    %v994 = vunpack.c.l.b16 %v986
    %v995 = vunpack.c.l.b16 %v987
    %v996 = vunpack.c.l.b16 %v988
    %v997 = vunpack.c.l.b16 %v989
    %v998 = vpack.c.b16 %v995, %v994
    %v999 = vpack.c.b16 %v997, %v996
    %1002 = vmatprep.subr.bf16.mxu0 0
    %1003 = vmatpush1.bf16.msra.mxu0 0
    %1004 = vmatprep.subr.bf16.mxu0 0
    %1005 = vmatpush1.bf16.msra.mxu0 0
    %1006 = vmatprep.subr.bf16.mxu0 0
    %1007 = vmatpush1.bf16.msra.mxu0 0
    %1008 = vmatprep.subr.bf16.mxu0 0
    %1009 = vmatpush1.bf16.msra.mxu0 0
    %1010 = vmatprep.subr.bf16.mxu0 0
    %1011 = vmatpush1.bf16.msra.mxu0 0
    %1012 = vmatprep.subr.bf16.mxu0 0
    %1013 = vmatpush1.bf16.msra.mxu0 0
    %1014 = vmatprep.subr.bf16.mxu0 0
    %1015 = vmatpush1.bf16.msra.mxu0 %v999
    %1016 = vmatprep.subr.bf16.mxu0 0
    %1017 = vmatpush1.bf16.msra.mxu0 %v998
    %1018 = vmatprep.subr.bf16.mxu0 0
    %1019 = vmatpush2.bf16.msra.mxu0 0
    %1020 = vmatprep.subr.bf16.mxu0 0
    %1021 = vmatpush2.bf16.msra.mxu0 0
    %1022 = vmatprep.subr.bf16.mxu0 0
    %1023 = vmatpush2.bf16.msra.mxu0 0
    %1024 = vmatprep.subr.bf16.mxu0 0
    %1025 = vmatpush2.bf16.msra.mxu0 0
    %1026 = vmatprep.subr.bf16.mxu0 0
    %1027 = vmatpush2.bf16.msra.mxu0 0
    %1028 = vmatprep.subr.bf16.mxu0 0
    %1029 = vmatpush2.bf16.msra.mxu0 0
    %1030 = vmatprep.subr.bf16.mxu0 0
    %1031 = vmatpush2.bf16.msra.mxu0 0
    %1032 = vmatprep.subr.bf16.mxu0 0
    %1033 = vmatpush2.bf16.msra.mxu0 0
    %1034 = vmatprep.mubr.bf16.mxu0 0
    %1035 = vmatmul.mubr.bf16.gmra.mxu0 %v942
    %v1036 = vpop.f32.mrf.mxu0
    %v1037 = vadd.f32 0.0, %v1036
    %v1038 = vpop.f32.mrf.mxu0
    %v1039 = vpop.f32.mrf.mxu0
    %v1040 = vadd.f32 0.0, %v1039
    %v1041 = vpop.f32.mrf.mxu0
    %1042 = vdwg.mxu0
    %s1043 = scalar_lea.vmem %s9, 80
    %v1044 = vld [vmem:[%s1043] sm:$0xf]
    %v1045 = vld [vmem:[%s1043 + $0x4] sm:$0xf]
    %v1046 = vld [vmem:[%s1043 + $0x8] sm:$0xf]
    %v1047 = vld [vmem:[%s1043 + $0xc] sm:$0xf]
    %v1052 = vunpack.c.l.b16 %v1044
    %v1053 = vunpack.c.l.b16 %v1045
    %v1054 = vunpack.c.l.b16 %v1046
    %v1055 = vunpack.c.l.b16 %v1047
    %v1056 = vpack.c.b16 %v1053, %v1052
    %v1057 = vpack.c.b16 %v1055, %v1054
    %1060 = vmatprep.subr.bf16.mxu0 0
    %1061 = vmatpush1.bf16.msra.mxu0 0
    %1062 = vmatprep.subr.bf16.mxu0 0
    %1063 = vmatpush1.bf16.msra.mxu0 0
    %1064 = vmatprep.subr.bf16.mxu0 0
    %1065 = vmatpush1.bf16.msra.mxu0 0
    %1066 = vmatprep.subr.bf16.mxu0 0
    %1067 = vmatpush1.bf16.msra.mxu0 0
    %1068 = vmatprep.subr.bf16.mxu0 0
    %1069 = vmatpush1.bf16.msra.mxu0 0
    %1070 = vmatprep.subr.bf16.mxu0 0
    %1071 = vmatpush1.bf16.msra.mxu0 0
    %1072 = vmatprep.subr.bf16.mxu0 0
    %1073 = vmatpush1.bf16.msra.mxu0 %v1057
    %1074 = vmatprep.subr.bf16.mxu0 0
    %1075 = vmatpush1.bf16.msra.mxu0 %v1056
    %1076 = vmatprep.subr.bf16.mxu0 0
    %1077 = vmatpush2.bf16.msra.mxu0 0
    %1078 = vmatprep.subr.bf16.mxu0 0
    %1079 = vmatpush2.bf16.msra.mxu0 0
    %1080 = vmatprep.subr.bf16.mxu0 0
    %1081 = vmatpush2.bf16.msra.mxu0 0
    %1082 = vmatprep.subr.bf16.mxu0 0
    %1083 = vmatpush2.bf16.msra.mxu0 0
    %1084 = vmatprep.subr.bf16.mxu0 0
    %1085 = vmatpush2.bf16.msra.mxu0 0
    %1086 = vmatprep.subr.bf16.mxu0 0
    %1087 = vmatpush2.bf16.msra.mxu0 0
    %1088 = vmatprep.subr.bf16.mxu0 0
    %1089 = vmatpush2.bf16.msra.mxu0 0
    %1090 = vmatprep.subr.bf16.mxu0 0
    %1091 = vmatpush2.bf16.msra.mxu0 0
    %1092 = vmatprep.mubr.bf16.mxu0 0
    %1093 = vmatmul.mubr.bf16.gmra.mxu0 %v942
    %v1094 = vpop.f32.mrf.mxu0
    %v1095 = vadd.f32 0.0, %v1094
    %v1096 = vpop.f32.mrf.mxu0
    %v1097 = vpop.f32.mrf.mxu0
    %v1098 = vadd.f32 0.0, %v1097
    %v1099 = vpop.f32.mrf.mxu0
    %1100 = vdwg.mxu0
    %s1101 = scalar_lea.vmem %s10, 16
    %v1102 = vld [vmem:[%s1101] sm:$0xf]
    %v1103 = vld [vmem:[%s1101 + $0x4] sm:$0xf]
    %v1104 = vld [vmem:[%s1101 + $0x8] sm:$0xf]
    %v1105 = vld [vmem:[%s1101 + $0xc] sm:$0xf]
    %v1106 = vmul.f32 %v1037, %v344
    %v1107 = vmul.f32 %v1037, %v348
    %v1108 = vmul.f32 %v1037, %v352
    %v1109 = vmul.f32 %v1037, %v356
    %v1110 = vmul.f32 %v1040, %v344
    %v1111 = vmul.f32 %v1040, %v348
    %v1112 = vmul.f32 %v1040, %v352
    %v1113 = vmul.f32 %v1040, %v356
    %v1114 = vmul.f32 %v1095, %v344
    %v1115 = vmul.f32 %v1095, %v348
    %v1116 = vmul.f32 %v1095, %v352
    %v1117 = vmul.f32 %v1095, %v356
    %v1118 = vmul.f32 %v1098, %v344
    %v1119 = vmul.f32 %v1098, %v348
    %v1120 = vmul.f32 %v1098, %v352
    %v1121 = vmul.f32 %v1098, %v356
    %v1122 = vpack.c.bf16 %v979, %v979
    %v1123 = vpack.c.bf16 %v982, %v982
    %v1124 = vpack.c.bf16 %v1107, %v1106
    %v1125 = vpack.c.bf16 %v1109, %v1108
    %v1126 = vpack.c.bf16 %v1111, %v1110
    %v1127 = vpack.c.bf16 %v1113, %v1112
    %v1129 = vsel %vm111, %v1122, 0
    %v1132 = vsel %vm111, %v1124, 0
    %v1135 = vsel %vm111, %v1125, 0
    %1137 = vmatprep.subr.bf16.mxu0 0
    %1138 = vmatpush1.bf16.xpose.msra.mxu0 0
    %1139 = vmatprep.subr.bf16.mxu0 0
    %1140 = vmatpush1.bf16.xpose.msra.mxu0 0
    %1141 = vmatprep.subr.bf16.mxu0 0
    %1142 = vmatpush1.bf16.xpose.msra.mxu0 0
    %1143 = vmatprep.subr.bf16.mxu0 0
    %1144 = vmatpush1.bf16.xpose.msra.mxu0 0
    %1145 = vmatprep.subr.bf16.mxu0 0
    %1146 = vmatpush1.bf16.xpose.msra.mxu0 0
    %1147 = vmatprep.subr.bf16.mxu0 0
    %1148 = vmatpush1.bf16.xpose.msra.mxu0 0
    %1149 = vmatprep.subr.bf16.mxu0 0
    %1150 = vmatpush1.bf16.xpose.msra.mxu0 %v1135
    %1151 = vmatprep.subr.bf16.mxu0 0
    %1152 = vmatpush1.bf16.xpose.msra.mxu0 %v1132
    %1153 = vmatprep.subr.bf16.mxu0 0
    %1154 = vmatpush2.bf16.xpose.msra.mxu0 0
    %1155 = vmatprep.subr.bf16.mxu0 0
    %1156 = vmatpush2.bf16.xpose.msra.mxu0 0
    %1157 = vmatprep.subr.bf16.mxu0 0
    %1158 = vmatpush2.bf16.xpose.msra.mxu0 0
    %1159 = vmatprep.subr.bf16.mxu0 0
    %1160 = vmatpush2.bf16.xpose.msra.mxu0 0
    %1161 = vmatprep.subr.bf16.mxu0 0
    %1162 = vmatpush2.bf16.xpose.msra.mxu0 0
    %1163 = vmatprep.subr.bf16.mxu0 0
    %1164 = vmatpush2.bf16.xpose.msra.mxu0 0
    %1165 = vmatprep.subr.bf16.mxu0 0
    %1166 = vmatpush2.bf16.xpose.msra.mxu0 0
    %1167 = vmatprep.subr.bf16.mxu0 0
    %1168 = vmatpush2.bf16.xpose.msra.mxu0 0
    %1169 = vmatprep.mubr.bf16.mxu0 0
    %1170 = vmatmul.mubr.bf16.gmra.mxu0 %v1129
    %v1171 = vpop.f32.mrf.mxu0
    %v1172 = vadd.f32 %v92, %v1171
    %v1173 = vpop.f32.mrf.mxu0
    %v1174 = vpop.f32.mrf.mxu0
    %v1175 = vpop.f32.mrf.mxu0
    %1176 = vdwg.mxu0
    %v1178 = vsel %vm111, %v1123, 0
    %v1181 = vsel %vm111, %v1126, 0
    %v1184 = vsel %vm111, %v1127, 0
    %1186 = vmatprep.subr.bf16.mxu0 0
    %1187 = vmatpush1.bf16.xpose.msra.mxu0 0
    %1188 = vmatprep.subr.bf16.mxu0 0
    %1189 = vmatpush1.bf16.xpose.msra.mxu0 0
    %1190 = vmatprep.subr.bf16.mxu0 0
    %1191 = vmatpush1.bf16.xpose.msra.mxu0 0
    %1192 = vmatprep.subr.bf16.mxu0 0
    %1193 = vmatpush1.bf16.xpose.msra.mxu0 0
    %1194 = vmatprep.subr.bf16.mxu0 0
    %1195 = vmatpush1.bf16.xpose.msra.mxu0 0
    %1196 = vmatprep.subr.bf16.mxu0 0
    %1197 = vmatpush1.bf16.xpose.msra.mxu0 0
    %1198 = vmatprep.subr.bf16.mxu0 0
    %1199 = vmatpush1.bf16.xpose.msra.mxu0 %v1184
    %1200 = vmatprep.subr.bf16.mxu0 0
    %1201 = vmatpush1.bf16.xpose.msra.mxu0 %v1181
    %1202 = vmatprep.subr.bf16.mxu0 0
    %1203 = vmatpush2.bf16.xpose.msra.mxu0 0
    %1204 = vmatprep.subr.bf16.mxu0 0
    %1205 = vmatpush2.bf16.xpose.msra.mxu0 0
    %1206 = vmatprep.subr.bf16.mxu0 0
    %1207 = vmatpush2.bf16.xpose.msra.mxu0 0
    %1208 = vmatprep.subr.bf16.mxu0 0
    %1209 = vmatpush2.bf16.xpose.msra.mxu0 0
    %1210 = vmatprep.subr.bf16.mxu0 0
    %1211 = vmatpush2.bf16.xpose.msra.mxu0 0
    %1212 = vmatprep.subr.bf16.mxu0 0
    %1213 = vmatpush2.bf16.xpose.msra.mxu0 0
    %1214 = vmatprep.subr.bf16.mxu0 0
    %1215 = vmatpush2.bf16.xpose.msra.mxu0 0
    %1216 = vmatprep.subr.bf16.mxu0 0
    %1217 = vmatpush2.bf16.xpose.msra.mxu0 0
    %1218 = vmatprep.mubr.bf16.mxu0 0
    %1219 = vmatmul.mubr.bf16.gmra.mxu0 %v1178
    %v1220 = vpop.f32.mrf.mxu0
    %v1221 = vadd.f32 %v93, %v1220
    %v1222 = vpop.f32.mrf.mxu0
    %v1223 = vpop.f32.mrf.mxu0
    %v1224 = vpop.f32.mrf.mxu0
    %1225 = vdwg.mxu0
    %v1226 = vsel %vm111, %v1172, -inf
    %1227 = vmax.xlane.f32.xlu0 %v1226
    %v1228 = vpop.xlane.xlu0 %1227
    %v1229 = vsel %vm111, %v1221, -inf
    %1230 = vmax.xlane.f32.xlu0 %v1229
    %v1231 = vpop.xlane.xlu0 %1230
    %v1232 = vsub.f32 %v1172, %v1228
    %v1233 = vsub.f32 %v1221, %v1231
    %v1234 = vmul.f32 %v1232, 1.442695
    %v1235 = vpow.pop %v1234
    %v1236 = vmul.f32 %v1233, 1.442695
    %v1237 = vpow.pop %v1236
    %v1239 = vsel %vm111, %v1235, 0
    %v1242 = vsel %vm111, %v1237, 0
    %1244 = vmatprep.subr.mxu0 0.0
    %1245 = vmatpush1.msra.mxu0 0.0
    %1246 = vmatprep.subr.mxu0 0.0
    %1247 = vmatpush1.msra.mxu0 0.0
    %1248 = vmatprep.subr.mxu0 0.0
    %1249 = vmatpush1.msra.mxu0 0.0
    %1250 = vmatprep.subr.mxu0 0.0
    %1251 = vmatpush1.msra.mxu0 0.0
    %1252 = vmatprep.subr.mxu0 0.0
    %1253 = vmatpush1.msra.mxu0 0.0
    %1254 = vmatprep.subr.mxu0 0.0
    %1255 = vmatpush1.msra.mxu0 0.0
    %1256 = vmatprep.subr.mxu0 0.0
    %1257 = vmatpush1.msra.mxu0 0.0
    %1258 = vmatprep.subr.mxu0 0.0
    %1259 = vmatpush1.msra.mxu0 0.0
    %1260 = vmatprep.subr.mxu0 0.0
    %1261 = vmatpush1.msra.mxu0 0.0
    %1262 = vmatprep.subr.mxu0 0.0
    %1263 = vmatpush1.msra.mxu0 0.0
    %1264 = vmatprep.subr.mxu0 0.0
    %1265 = vmatpush1.msra.mxu0 0.0
    %1266 = vmatprep.subr.mxu0 0.0
    %1267 = vmatpush1.msra.mxu0 0.0
    %1268 = vmatprep.subr.mxu0 0.0
    %1269 = vmatpush1.msra.mxu0 %v101
    %1270 = vmatprep.subr.mxu0 0.0
    %1271 = vmatpush1.msra.mxu0 %v100
    %1272 = vmatprep.subr.mxu0 0.0
    %1273 = vmatpush1.msra.mxu0 %v99
    %1274 = vmatprep.subr.mxu0 0.0
    %1275 = vmatpush1.msra.mxu0 %v98
    %1276 = vmatprep.subr.mxu0 0.0
    %1277 = vmatpush2.msra.mxu0 0.0
    %1278 = vmatprep.subr.mxu0 0.0
    %1279 = vmatpush2.msra.mxu0 0.0
    %1280 = vmatprep.subr.mxu0 0.0
    %1281 = vmatpush2.msra.mxu0 0.0
    %1282 = vmatprep.subr.mxu0 0.0
    %1283 = vmatpush2.msra.mxu0 0.0
    %1284 = vmatprep.subr.mxu0 0.0
    %1285 = vmatpush2.msra.mxu0 0.0
    %1286 = vmatprep.subr.mxu0 0.0
    %1287 = vmatpush2.msra.mxu0 0.0
    %1288 = vmatprep.subr.mxu0 0.0
    %1289 = vmatpush2.msra.mxu0 0.0
    %1290 = vmatprep.subr.mxu0 0.0
    %1291 = vmatpush2.msra.mxu0 0.0
    %1292 = vmatprep.subr.mxu0 0.0
    %1293 = vmatpush2.msra.mxu0 0.0
    %1294 = vmatprep.subr.mxu0 0.0
    %1295 = vmatpush2.msra.mxu0 0.0
    %1296 = vmatprep.subr.mxu0 0.0
    %1297 = vmatpush2.msra.mxu0 0.0
    %1298 = vmatprep.subr.mxu0 0.0
    %1299 = vmatpush2.msra.mxu0 0.0
    %1300 = vmatprep.subr.mxu0 0.0
    %1301 = vmatpush2.msra.mxu0 0.0
    %1302 = vmatprep.subr.mxu0 0.0
    %1303 = vmatpush2.msra.mxu0 0.0
    %1304 = vmatprep.subr.mxu0 0.0
    %1305 = vmatpush2.msra.mxu0 0.0
    %1306 = vmatprep.subr.mxu0 0.0
    %1307 = vmatpush2.msra.mxu0 0.0
    %1308 = vmatprep.mubr.f32.mxu0 0.0
    %1309 = vmatmul.mubr.f32.gmra.mxu0 %v1239
    %v1310 = vpop.f32.mrf.mxu0
    %v1311 = vadd.f32 0.0, %v1310
    %v1312 = vpop.f32.mrf.mxu0
    %1313 = vmatprep.mubr.f32.mxu0 0.0
    %1314 = vmatmul.mubr.f32.gmra.mxu0 %v1242
    %v1315 = vpop.f32.mrf.mxu0
    %v1316 = vadd.f32 0.0, %v1315
    %v1317 = vpop.f32.mrf.mxu0
    %1318 = vdwg.mxu0
    %v1319 = vrcp.pop %v1311
    %v1320 = vrcp.pop %v1316
    %v1321 = vmul.f32 %v1235, %v1319
    %v1322 = vmul.f32 %v1237, %v1320
    %v1323 = vpack.c.bf16 %v1321, %v1321
    %v1324 = vpack.c.bf16 %v1322, %v1322
    %v1325 = vpack.c.bf16 %v1115, %v1114
    %v1326 = vpack.c.bf16 %v1117, %v1116
    %v1327 = vpack.c.bf16 %v1119, %v1118
    %v1328 = vpack.c.bf16 %v1121, %v1120
    %v1330 = vsel %vm111, %v1323, 0
    %1332 = vmatprep.subr.bf16.mxu0 0
    %1333 = vmatpush1.bf16.msra.mxu0 0
    %1334 = vmatprep.subr.bf16.mxu0 0
    %1335 = vmatpush1.bf16.msra.mxu0 0
    %1336 = vmatprep.subr.bf16.mxu0 0
    %1337 = vmatpush1.bf16.msra.mxu0 0
    %1338 = vmatprep.subr.bf16.mxu0 0
    %1339 = vmatpush1.bf16.msra.mxu0 0
    %1340 = vmatprep.subr.bf16.mxu0 0
    %1341 = vmatpush1.bf16.msra.mxu0 0
    %1342 = vmatprep.subr.bf16.mxu0 0
    %1343 = vmatpush1.bf16.msra.mxu0 0
    %1344 = vmatprep.subr.bf16.mxu0 0
    %1345 = vmatpush1.bf16.msra.mxu0 %v1326
    %1346 = vmatprep.subr.bf16.mxu0 0
    %1347 = vmatpush1.bf16.msra.mxu0 %v1325
    %1348 = vmatprep.subr.bf16.mxu0 0
    %1349 = vmatpush2.bf16.msra.mxu0 0
    %1350 = vmatprep.subr.bf16.mxu0 0
    %1351 = vmatpush2.bf16.msra.mxu0 0
    %1352 = vmatprep.subr.bf16.mxu0 0
    %1353 = vmatpush2.bf16.msra.mxu0 0
    %1354 = vmatprep.subr.bf16.mxu0 0
    %1355 = vmatpush2.bf16.msra.mxu0 0
    %1356 = vmatprep.subr.bf16.mxu0 0
    %1357 = vmatpush2.bf16.msra.mxu0 0
    %1358 = vmatprep.subr.bf16.mxu0 0
    %1359 = vmatpush2.bf16.msra.mxu0 0
    %1360 = vmatprep.subr.bf16.mxu0 0
    %1361 = vmatpush2.bf16.msra.mxu0 0
    %1362 = vmatprep.subr.bf16.mxu0 0
    %1363 = vmatpush2.bf16.msra.mxu0 0
    %1364 = vmatprep.mubr.bf16.mxu0 0
    %1365 = vmatmul.mubr.bf16.gmra.mxu0 %v1330
    %v1366 = vpop.f32.mrf.mxu0
    %v1367 = vadd.f32 0.0, %v1366
    %v1368 = vpop.f32.mrf.mxu0
    %v1369 = vpop.f32.mrf.mxu0
    %v1370 = vpop.f32.mrf.mxu0
    %1371 = vdwg.mxu0
    %v1373 = vsel %vm111, %v1324, 0
    %1375 = vmatprep.subr.bf16.mxu0 0
    %1376 = vmatpush1.bf16.msra.mxu0 0
    %1377 = vmatprep.subr.bf16.mxu0 0
    %1378 = vmatpush1.bf16.msra.mxu0 0
    %1379 = vmatprep.subr.bf16.mxu0 0
    %1380 = vmatpush1.bf16.msra.mxu0 0
    %1381 = vmatprep.subr.bf16.mxu0 0
    %1382 = vmatpush1.bf16.msra.mxu0 0
    %1383 = vmatprep.subr.bf16.mxu0 0
    %1384 = vmatpush1.bf16.msra.mxu0 0
    %1385 = vmatprep.subr.bf16.mxu0 0
    %1386 = vmatpush1.bf16.msra.mxu0 0
    %1387 = vmatprep.subr.bf16.mxu0 0
    %1388 = vmatpush1.bf16.msra.mxu0 %v1328
    %1389 = vmatprep.subr.bf16.mxu0 0
    %1390 = vmatpush1.bf16.msra.mxu0 %v1327
    %1391 = vmatprep.subr.bf16.mxu0 0
    %1392 = vmatpush2.bf16.msra.mxu0 0
    %1393 = vmatprep.subr.bf16.mxu0 0
    %1394 = vmatpush2.bf16.msra.mxu0 0
    %1395 = vmatprep.subr.bf16.mxu0 0
    %1396 = vmatpush2.bf16.msra.mxu0 0
    %1397 = vmatprep.subr.bf16.mxu0 0
    %1398 = vmatpush2.bf16.msra.mxu0 0
    %1399 = vmatprep.subr.bf16.mxu0 0
    %1400 = vmatpush2.bf16.msra.mxu0 0
    %1401 = vmatprep.subr.bf16.mxu0 0
    %1402 = vmatpush2.bf16.msra.mxu0 0
    %1403 = vmatprep.subr.bf16.mxu0 0
    %1404 = vmatpush2.bf16.msra.mxu0 0
    %1405 = vmatprep.subr.bf16.mxu0 0
    %1406 = vmatpush2.bf16.msra.mxu0 0
    %1407 = vmatprep.mubr.bf16.mxu0 0
    %1408 = vmatmul.mubr.bf16.gmra.mxu0 %v1373
    %v1409 = vpop.f32.mrf.mxu0
    %v1410 = vadd.f32 0.0, %v1409
    %v1411 = vpop.f32.mrf.mxu0
    %v1412 = vpop.f32.mrf.mxu0
    %v1413 = vpop.f32.mrf.mxu0
    %1414 = vdwg.mxu0
    %v1415 = vpack.c.bf16 %v1410, %v1367
    %v1420 = vunpack.c.l.b16 %v1102
    %v1421 = vunpack.c.l.b16 %v1103
    %v1422 = vunpack.c.l.b16 %v1104
    %v1423 = vunpack.c.l.b16 %v1105
    %v1424 = vpack.c.b16 %v1421, %v1420
    %v1425 = vpack.c.b16 %v1423, %v1422
    %v1429 = vsel %vm111, %v1415, 0
    %1431 = vmatprep.subr.bf16.mxu0 0
    %1432 = vmatpush1.bf16.msra.mxu0 0
    %1433 = vmatprep.subr.bf16.mxu0 0
    %1434 = vmatpush1.bf16.msra.mxu0 0
    %1435 = vmatprep.subr.bf16.mxu0 0
    %1436 = vmatpush1.bf16.msra.mxu0 0
    %1437 = vmatprep.subr.bf16.mxu0 0
    %1438 = vmatpush1.bf16.msra.mxu0 0
    %1439 = vmatprep.subr.bf16.mxu0 0
    %1440 = vmatpush1.bf16.msra.mxu0 0
    %1441 = vmatprep.subr.bf16.mxu0 0
    %1442 = vmatpush1.bf16.msra.mxu0 0
    %1443 = vmatprep.subr.bf16.mxu0 0
    %1444 = vmatpush1.bf16.msra.mxu0 %v1425
    %1445 = vmatprep.subr.bf16.mxu0 0
    %1446 = vmatpush1.bf16.msra.mxu0 %v1424
    %1447 = vmatprep.subr.bf16.mxu0 0
    %1448 = vmatpush2.bf16.msra.mxu0 0
    %1449 = vmatprep.subr.bf16.mxu0 0
    %1450 = vmatpush2.bf16.msra.mxu0 0
    %1451 = vmatprep.subr.bf16.mxu0 0
    %1452 = vmatpush2.bf16.msra.mxu0 0
    %1453 = vmatprep.subr.bf16.mxu0 0
    %1454 = vmatpush2.bf16.msra.mxu0 0
    %1455 = vmatprep.subr.bf16.mxu0 0
    %1456 = vmatpush2.bf16.msra.mxu0 0
    %1457 = vmatprep.subr.bf16.mxu0 0
    %1458 = vmatpush2.bf16.msra.mxu0 0
    %1459 = vmatprep.subr.bf16.mxu0 0
    %1460 = vmatpush2.bf16.msra.mxu0 0
    %1461 = vmatprep.subr.bf16.mxu0 0
    %1462 = vmatpush2.bf16.msra.mxu0 0
    %1463 = vmatprep.mubr.bf16.mxu0 0
    %1464 = vmatmul.mubr.bf16.gmra.mxu0 %v1429
    %v1465 = vpop.f32.mrf.mxu0
    %v1466 = vadd.f32 0.0, %v1465
    %v1467 = vpop.f32.mrf.mxu0
    %v1468 = vpop.f32.mrf.mxu0
    %v1469 = vadd.f32 0.0, %v1468
    %v1470 = vpop.f32.mrf.mxu0
    %1471 = vdwg.mxu0
    %v1472 = vadd.f32 %v895, %v1466
    %v1473 = vadd.f32 %v896, %v1469
    %s1474 = scalar_lea.vmem %s11, 1
    %v1475 = vld [vmem:[%s1474] sm:$0x1]
    %v1476 = vmul.f32 %v1472, %v1472
    %v1477 = vmul.f32 %v1473, %v1473
    %v1478 = vsel %vm111, %v1476, 0.0
    %1479 = vadd.xlane.f32.xlu0 %v1478
    %v1480 = vpop.xlane.xlu0 %1479
    %v1481 = vsel %vm111, %v1477, 0.0
    %1482 = vadd.xlane.f32.xlu0 %v1481
    %v1483 = vpop.xlane.xlu0 %1482
    %v1484 = vmul.f32 %v1480, %v118
    %v1485 = vmul.f32 %v1483, %v118
    %v1486 = vadd.f32 %v1484, 1e-06
    %v1487 = vadd.f32 %v1485, 1e-06
    %v1488 = vrsqrt.pop %v1486
    %v1489 = vrsqrt.pop %v1487
    %v1490 = vmul.f32 %v1472, %v1488
    %v1491 = vmul.f32 %v1473, %v1489
    %v1493 = vlaneseq
    %v1494 = vshrl.u32 %v1493, 7
    %v1495 = vsub.s32 0, %v1494
    %v1496 = vrot.slane %v1475, %v1495
    %v1498 = vmul.f32 %v1490, %v1496
    %v1499 = vmul.f32 %v1491, %v1496
    %s1500 = scalar_lea.vmem %s12, 16
    %v1501 = vld [vmem:[%s1500] sm:$0xf]
    %v1502 = vld [vmem:[%s1500 + $0x4] sm:$0xf]
    %v1503 = vld [vmem:[%s1500 + $0x8] sm:$0xf]
    %v1504 = vld [vmem:[%s1500 + $0xc] sm:$0xf]
    %v1505 = vpack.c.bf16 %v1499, %v1498
    %v1510 = vunpack.c.l.b16 %v1501
    %v1511 = vunpack.c.l.b16 %v1502
    %v1512 = vunpack.c.l.b16 %v1503
    %v1513 = vunpack.c.l.b16 %v1504
    %v1514 = vpack.c.b16 %v1511, %v1510
    %v1515 = vpack.c.b16 %v1513, %v1512
    %v1519 = vsel %vm111, %v1505, 0
    %1521 = vmatprep.subr.bf16.mxu0 0
    %1522 = vmatpush1.bf16.msra.mxu0 0
    %1523 = vmatprep.subr.bf16.mxu0 0
    %1524 = vmatpush1.bf16.msra.mxu0 0
    %1525 = vmatprep.subr.bf16.mxu0 0
    %1526 = vmatpush1.bf16.msra.mxu0 0
    %1527 = vmatprep.subr.bf16.mxu0 0
    %1528 = vmatpush1.bf16.msra.mxu0 0
    %1529 = vmatprep.subr.bf16.mxu0 0
    %1530 = vmatpush1.bf16.msra.mxu0 0
    %1531 = vmatprep.subr.bf16.mxu0 0
    %1532 = vmatpush1.bf16.msra.mxu0 0
    %1533 = vmatprep.subr.bf16.mxu0 0
    %1534 = vmatpush1.bf16.msra.mxu0 %v1515
    %1535 = vmatprep.subr.bf16.mxu0 0
    %1536 = vmatpush1.bf16.msra.mxu0 %v1514
    %1537 = vmatprep.subr.bf16.mxu0 0
    %1538 = vmatpush2.bf16.msra.mxu0 0
    %1539 = vmatprep.subr.bf16.mxu0 0
    %1540 = vmatpush2.bf16.msra.mxu0 0
    %1541 = vmatprep.subr.bf16.mxu0 0
    %1542 = vmatpush2.bf16.msra.mxu0 0
    %1543 = vmatprep.subr.bf16.mxu0 0
    %1544 = vmatpush2.bf16.msra.mxu0 0
    %1545 = vmatprep.subr.bf16.mxu0 0
    %1546 = vmatpush2.bf16.msra.mxu0 0
    %1547 = vmatprep.subr.bf16.mxu0 0
    %1548 = vmatpush2.bf16.msra.mxu0 0
    %1549 = vmatprep.subr.bf16.mxu0 0
    %1550 = vmatpush2.bf16.msra.mxu0 0
    %1551 = vmatprep.subr.bf16.mxu0 0
    %1552 = vmatpush2.bf16.msra.mxu0 0
    %1553 = vmatprep.mubr.bf16.mxu0 0
    %1554 = vmatmul.mubr.bf16.gmra.mxu0 %v1519
    %v1555 = vpop.f32.mrf.mxu0
    %v1556 = vadd.f32 0.0, %v1555
    %v1557 = vpop.f32.mrf.mxu0
    %v1558 = vpop.f32.mrf.mxu0
    %v1559 = vadd.f32 0.0, %v1558
    %v1560 = vpop.f32.mrf.mxu0
    %1561 = vdwg.mxu0
    %v1562 = vmax.f32 %v1556, 0.0
    %v1563 = vmax.f32 %v1559, 0.0
    %s1564 = scalar_lea.vmem %s13, 32
    %v1565 = vld [vmem:[%s1564] sm:$0xf]
    %v1566 = vld [vmem:[%s1564 + $0x4] sm:$0xf]
    %v1567 = vld [vmem:[%s1564 + $0x8] sm:$0xf]
    %v1568 = vld [vmem:[%s1564 + $0xc] sm:$0xf]
    %v1569 = vld [vmem:[%s1564 + $0x10] sm:$0xf]
    %v1570 = vld [vmem:[%s1564 + $0x14] sm:$0xf]
    %v1571 = vld [vmem:[%s1564 + $0x18] sm:$0xf]
    %v1572 = vld [vmem:[%s1564 + $0x1c] sm:$0xf]
    %v1573 = vpack.c.bf16 %v1563, %v1562
    %v1582 = vunpack.c.l.b16 %v1565
    %v1583 = vunpack.c.l.b16 %v1566
    %v1584 = vunpack.c.l.b16 %v1567
    %v1585 = vunpack.c.l.b16 %v1568
    %v1586 = vunpack.c.l.b16 %v1569
    %v1587 = vunpack.c.l.b16 %v1570
    %v1588 = vunpack.c.l.b16 %v1571
    %v1589 = vunpack.c.l.b16 %v1572
    %v1590 = vpack.c.b16 %v1583, %v1582
    %v1591 = vpack.c.b16 %v1585, %v1584
    %v1592 = vpack.c.b16 %v1587, %v1586
    %v1593 = vpack.c.b16 %v1589, %v1588
    %v1599 = vsel %vm850, %v1573, 0
    %1601 = vmatprep.subr.bf16.mxu0 0
    %1602 = vmatpush1.bf16.msra.mxu0 0
    %1603 = vmatprep.subr.bf16.mxu0 0
    %1604 = vmatpush1.bf16.msra.mxu0 0
    %1605 = vmatprep.subr.bf16.mxu0 0
    %1606 = vmatpush1.bf16.msra.mxu0 0
    %1607 = vmatprep.subr.bf16.mxu0 0
    %1608 = vmatpush1.bf16.msra.mxu0 0
    %1609 = vmatprep.subr.bf16.mxu0 0
    %1610 = vmatpush1.bf16.msra.mxu0 %v1593
    %1611 = vmatprep.subr.bf16.mxu0 0
    %1612 = vmatpush1.bf16.msra.mxu0 %v1592
    %1613 = vmatprep.subr.bf16.mxu0 0
    %1614 = vmatpush1.bf16.msra.mxu0 %v1591
    %1615 = vmatprep.subr.bf16.mxu0 0
    %1616 = vmatpush1.bf16.msra.mxu0 %v1590
    %1617 = vmatprep.subr.bf16.mxu0 0
    %1618 = vmatpush2.bf16.msra.mxu0 0
    %1619 = vmatprep.subr.bf16.mxu0 0
    %1620 = vmatpush2.bf16.msra.mxu0 0
    %1621 = vmatprep.subr.bf16.mxu0 0
    %1622 = vmatpush2.bf16.msra.mxu0 0
    %1623 = vmatprep.subr.bf16.mxu0 0
    %1624 = vmatpush2.bf16.msra.mxu0 0
    %1625 = vmatprep.subr.bf16.mxu0 0
    %1626 = vmatpush2.bf16.msra.mxu0 0
    %1627 = vmatprep.subr.bf16.mxu0 0
    %1628 = vmatpush2.bf16.msra.mxu0 0
    %1629 = vmatprep.subr.bf16.mxu0 0
    %1630 = vmatpush2.bf16.msra.mxu0 0
    %1631 = vmatprep.subr.bf16.mxu0 0
    %1632 = vmatpush2.bf16.msra.mxu0 0
    %1633 = vmatprep.mubr.bf16.mxu0 0
    %1634 = vmatmul.mubr.bf16.gmra.mxu0 %v1599
    %v1635 = vpop.f32.mrf.mxu0
    %v1636 = vadd.f32 0.0, %v1635
    %v1637 = vpop.f32.mrf.mxu0
    %v1638 = vpop.f32.mrf.mxu0
    %v1639 = vadd.f32 0.0, %v1638
    %v1640 = vpop.f32.mrf.mxu0
    %1641 = vdwg.mxu0
    %v1642 = vadd.f32 %v1472, %v1636
    %v1643 = vadd.f32 %v1473, %v1639
    %v1644 = vld [vmem:[%s14] sm:$0x1]
    %v1645 = vmul.f32 %v1642, %v1642
    %v1646 = vmul.f32 %v1643, %v1643
    %v1647 = vsel %vm111, %v1645, 0.0
    %1648 = vadd.xlane.f32.xlu0 %v1647
    %v1649 = vpop.xlane.xlu0 %1648
    %v1650 = vsel %vm111, %v1646, 0.0
    %1651 = vadd.xlane.f32.xlu0 %v1650
    %v1652 = vpop.xlane.xlu0 %1651
    %v1653 = vmul.f32 %v1649, %v118
    %v1654 = vmul.f32 %v1652, %v118
    %v1655 = vadd.f32 %v1653, 1e-06
    %v1656 = vadd.f32 %v1654, 1e-06
    %v1657 = vrsqrt.pop %v1655
    %v1658 = vrsqrt.pop %v1656
    %v1659 = vmul.f32 %v1642, %v1657
    %v1660 = vmul.f32 %v1643, %v1658
    %v1662 = vlaneseq
    %v1663 = vshrl.u32 %v1662, 7
    %v1664 = vsub.s32 0, %v1663
    %v1665 = vrot.slane %v1644, %v1664
    %v1667 = vmul.f32 %v1659, %v1665
    %v1668 = vmul.f32 %v1660, %v1665
    %v1669 = vld [vmem:[%s1] sm:$0xff]
    %v1670 = vld [vmem:[%s1 + $0x8] sm:$0xff]
    %v1671 = vld [vmem:[%s15] sm:$0x1]
    %v1672 = vmul.f32 %v1669, %v1669
    %v1673 = vmul.f32 %v1670, %v1670
    %v1674 = vsel %vm111, %v1672, 0.0
    %1675 = vadd.xlane.f32.xlu0 %v1674
    %v1676 = vpop.xlane.xlu0 %1675
    %v1677 = vsel %vm111, %v1673, 0.0
    %1678 = vadd.xlane.f32.xlu0 %v1677
    %v1679 = vpop.xlane.xlu0 %1678
    %v1680 = vmul.f32 %v1676, %v118
    %v1681 = vmul.f32 %v1679, %v118
    %v1682 = vadd.f32 %v1680, 1e-06
    %v1683 = vadd.f32 %v1681, 1e-06
    %v1684 = vrsqrt.pop %v1682
    %v1685 = vrsqrt.pop %v1683
    %v1686 = vmul.f32 %v1669, %v1684
    %v1687 = vmul.f32 %v1670, %v1685
    %v1689 = vlaneseq
    %v1690 = vshrl.u32 %v1689, 7
    %v1691 = vsub.s32 0, %v1690
    %v1692 = vrot.slane %v1671, %v1691
    %v1694 = vmul.f32 %v1686, %v1692
    %v1695 = vmul.f32 %v1687, %v1692
    %v1696 = vld [vmem:[%s16] sm:$0xf]
    %v1697 = vld [vmem:[%s16 + $0x4] sm:$0xf]
    %v1698 = vld [vmem:[%s16 + $0x8] sm:$0xf]
    %v1699 = vld [vmem:[%s16 + $0xc] sm:$0xf]
    %v1700 = vpack.c.bf16 %v1695, %v1694
    %v1705 = vunpack.c.l.b16 %v1696
    %v1706 = vunpack.c.l.b16 %v1697
    %v1707 = vunpack.c.l.b16 %v1698
    %v1708 = vunpack.c.l.b16 %v1699
    %v1709 = vpack.c.b16 %v1706, %v1705
    %v1710 = vpack.c.b16 %v1708, %v1707
    %v1714 = vsel %vm111, %v1700, 0
    %1716 = vmatprep.subr.bf16.mxu0 0
    %1717 = vmatpush1.bf16.msra.mxu0 0
    %1718 = vmatprep.subr.bf16.mxu0 0
    %1719 = vmatpush1.bf16.msra.mxu0 0
    %1720 = vmatprep.subr.bf16.mxu0 0
    %1721 = vmatpush1.bf16.msra.mxu0 0
    %1722 = vmatprep.subr.bf16.mxu0 0
    %1723 = vmatpush1.bf16.msra.mxu0 0
    %1724 = vmatprep.subr.bf16.mxu0 0
    %1725 = vmatpush1.bf16.msra.mxu0 0
    %1726 = vmatprep.subr.bf16.mxu0 0
    %1727 = vmatpush1.bf16.msra.mxu0 0
    %1728 = vmatprep.subr.bf16.mxu0 0
    %1729 = vmatpush1.bf16.msra.mxu0 %v1710
    %1730 = vmatprep.subr.bf16.mxu0 0
    %1731 = vmatpush1.bf16.msra.mxu0 %v1709
    %1732 = vmatprep.subr.bf16.mxu0 0
    %1733 = vmatpush2.bf16.msra.mxu0 0
    %1734 = vmatprep.subr.bf16.mxu0 0
    %1735 = vmatpush2.bf16.msra.mxu0 0
    %1736 = vmatprep.subr.bf16.mxu0 0
    %1737 = vmatpush2.bf16.msra.mxu0 0
    %1738 = vmatprep.subr.bf16.mxu0 0
    %1739 = vmatpush2.bf16.msra.mxu0 0
    %1740 = vmatprep.subr.bf16.mxu0 0
    %1741 = vmatpush2.bf16.msra.mxu0 0
    %1742 = vmatprep.subr.bf16.mxu0 0
    %1743 = vmatpush2.bf16.msra.mxu0 0
    %1744 = vmatprep.subr.bf16.mxu0 0
    %1745 = vmatpush2.bf16.msra.mxu0 0
    %1746 = vmatprep.subr.bf16.mxu0 0
    %1747 = vmatpush2.bf16.msra.mxu0 0
    %1748 = vmatprep.mubr.bf16.mxu0 0
    %1749 = vmatmul.mubr.bf16.gmra.mxu0 %v1714
    %v1750 = vpop.f32.mrf.mxu0
    %v1751 = vadd.f32 0.0, %v1750
    %v1752 = vpop.f32.mrf.mxu0
    %v1753 = vpop.f32.mrf.mxu0
    %v1754 = vadd.f32 0.0, %v1753
    %v1755 = vpop.f32.mrf.mxu0
    %1756 = vdwg.mxu0
    %s1757 = scalar_lea.vmem %s16, 16
    %v1758 = vld [vmem:[%s1757] sm:$0xf]
    %v1759 = vld [vmem:[%s1757 + $0x4] sm:$0xf]
    %v1760 = vld [vmem:[%s1757 + $0x8] sm:$0xf]
    %v1761 = vld [vmem:[%s1757 + $0xc] sm:$0xf]
    %v1766 = vunpack.c.l.b16 %v1758
    %v1767 = vunpack.c.l.b16 %v1759
    %v1768 = vunpack.c.l.b16 %v1760
    %v1769 = vunpack.c.l.b16 %v1761
    %v1770 = vpack.c.b16 %v1767, %v1766
    %v1771 = vpack.c.b16 %v1769, %v1768
    %1774 = vmatprep.subr.bf16.mxu0 0
    %1775 = vmatpush1.bf16.msra.mxu0 0
    %1776 = vmatprep.subr.bf16.mxu0 0
    %1777 = vmatpush1.bf16.msra.mxu0 0
    %1778 = vmatprep.subr.bf16.mxu0 0
    %1779 = vmatpush1.bf16.msra.mxu0 0
    %1780 = vmatprep.subr.bf16.mxu0 0
    %1781 = vmatpush1.bf16.msra.mxu0 0
    %1782 = vmatprep.subr.bf16.mxu0 0
    %1783 = vmatpush1.bf16.msra.mxu0 0
    %1784 = vmatprep.subr.bf16.mxu0 0
    %1785 = vmatpush1.bf16.msra.mxu0 0
    %1786 = vmatprep.subr.bf16.mxu0 0
    %1787 = vmatpush1.bf16.msra.mxu0 %v1771
    %1788 = vmatprep.subr.bf16.mxu0 0
    %1789 = vmatpush1.bf16.msra.mxu0 %v1770
    %1790 = vmatprep.subr.bf16.mxu0 0
    %1791 = vmatpush2.bf16.msra.mxu0 0
    %1792 = vmatprep.subr.bf16.mxu0 0
    %1793 = vmatpush2.bf16.msra.mxu0 0
    %1794 = vmatprep.subr.bf16.mxu0 0
    %1795 = vmatpush2.bf16.msra.mxu0 0
    %1796 = vmatprep.subr.bf16.mxu0 0
    %1797 = vmatpush2.bf16.msra.mxu0 0
    %1798 = vmatprep.subr.bf16.mxu0 0
    %1799 = vmatpush2.bf16.msra.mxu0 0
    %1800 = vmatprep.subr.bf16.mxu0 0
    %1801 = vmatpush2.bf16.msra.mxu0 0
    %1802 = vmatprep.subr.bf16.mxu0 0
    %1803 = vmatpush2.bf16.msra.mxu0 0
    %1804 = vmatprep.subr.bf16.mxu0 0
    %1805 = vmatpush2.bf16.msra.mxu0 0
    %1806 = vmatprep.mubr.bf16.mxu0 0
    %1807 = vmatmul.mubr.bf16.gmra.mxu0 %v1714
    %v1808 = vpop.f32.mrf.mxu0
    %v1809 = vadd.f32 0.0, %v1808
    %v1810 = vpop.f32.mrf.mxu0
    %v1811 = vpop.f32.mrf.mxu0
    %v1812 = vadd.f32 0.0, %v1811
    %v1813 = vpop.f32.mrf.mxu0
    %1814 = vdwg.mxu0
    %s1815 = scalar_lea.vmem %s16, 32
    %v1816 = vld [vmem:[%s1815] sm:$0xf]
    %v1817 = vld [vmem:[%s1815 + $0x4] sm:$0xf]
    %v1818 = vld [vmem:[%s1815 + $0x8] sm:$0xf]
    %v1819 = vld [vmem:[%s1815 + $0xc] sm:$0xf]
    %v1824 = vunpack.c.l.b16 %v1816
    %v1825 = vunpack.c.l.b16 %v1817
    %v1826 = vunpack.c.l.b16 %v1818
    %v1827 = vunpack.c.l.b16 %v1819
    %v1828 = vpack.c.b16 %v1825, %v1824
    %v1829 = vpack.c.b16 %v1827, %v1826
    %1832 = vmatprep.subr.bf16.mxu0 0
    %1833 = vmatpush1.bf16.msra.mxu0 0
    %1834 = vmatprep.subr.bf16.mxu0 0
    %1835 = vmatpush1.bf16.msra.mxu0 0
    %1836 = vmatprep.subr.bf16.mxu0 0
    %1837 = vmatpush1.bf16.msra.mxu0 0
    %1838 = vmatprep.subr.bf16.mxu0 0
    %1839 = vmatpush1.bf16.msra.mxu0 0
    %1840 = vmatprep.subr.bf16.mxu0 0
    %1841 = vmatpush1.bf16.msra.mxu0 0
    %1842 = vmatprep.subr.bf16.mxu0 0
    %1843 = vmatpush1.bf16.msra.mxu0 0
    %1844 = vmatprep.subr.bf16.mxu0 0
    %1845 = vmatpush1.bf16.msra.mxu0 %v1829
    %1846 = vmatprep.subr.bf16.mxu0 0
    %1847 = vmatpush1.bf16.msra.mxu0 %v1828
    %1848 = vmatprep.subr.bf16.mxu0 0
    %1849 = vmatpush2.bf16.msra.mxu0 0
    %1850 = vmatprep.subr.bf16.mxu0 0
    %1851 = vmatpush2.bf16.msra.mxu0 0
    %1852 = vmatprep.subr.bf16.mxu0 0
    %1853 = vmatpush2.bf16.msra.mxu0 0
    %1854 = vmatprep.subr.bf16.mxu0 0
    %1855 = vmatpush2.bf16.msra.mxu0 0
    %1856 = vmatprep.subr.bf16.mxu0 0
    %1857 = vmatpush2.bf16.msra.mxu0 0
    %1858 = vmatprep.subr.bf16.mxu0 0
    %1859 = vmatpush2.bf16.msra.mxu0 0
    %1860 = vmatprep.subr.bf16.mxu0 0
    %1861 = vmatpush2.bf16.msra.mxu0 0
    %1862 = vmatprep.subr.bf16.mxu0 0
    %1863 = vmatpush2.bf16.msra.mxu0 0
    %1864 = vmatprep.mubr.bf16.mxu0 0
    %1865 = vmatmul.mubr.bf16.gmra.mxu0 %v1714
    %v1866 = vpop.f32.mrf.mxu0
    %v1867 = vadd.f32 0.0, %v1866
    %v1868 = vpop.f32.mrf.mxu0
    %v1869 = vpop.f32.mrf.mxu0
    %v1870 = vadd.f32 0.0, %v1869
    %v1871 = vpop.f32.mrf.mxu0
    %1872 = vdwg.mxu0
    %v1873 = vld [vmem:[%s17] sm:$0xf]
    %v1874 = vld [vmem:[%s17 + $0x4] sm:$0xf]
    %v1875 = vld [vmem:[%s17 + $0x8] sm:$0xf]
    %v1876 = vld [vmem:[%s17 + $0xc] sm:$0xf]
    %v1877 = vmul.f32 %v1809, %v344
    %v1878 = vmul.f32 %v1809, %v348
    %v1879 = vmul.f32 %v1809, %v352
    %v1880 = vmul.f32 %v1809, %v356
    %v1881 = vmul.f32 %v1812, %v344
    %v1882 = vmul.f32 %v1812, %v348
    %v1883 = vmul.f32 %v1812, %v352
    %v1884 = vmul.f32 %v1812, %v356
    %v1885 = vmul.f32 %v1867, %v344
    %v1886 = vmul.f32 %v1867, %v348
    %v1887 = vmul.f32 %v1867, %v352
    %v1888 = vmul.f32 %v1867, %v356
    %v1889 = vmul.f32 %v1870, %v344
    %v1890 = vmul.f32 %v1870, %v348
    %v1891 = vmul.f32 %v1870, %v352
    %v1892 = vmul.f32 %v1870, %v356
    %v1893 = vpack.c.bf16 %v1751, %v1751
    %v1894 = vpack.c.bf16 %v1754, %v1754
    %v1895 = vpack.c.bf16 %v1878, %v1877
    %v1896 = vpack.c.bf16 %v1880, %v1879
    %v1897 = vpack.c.bf16 %v1882, %v1881
    %v1898 = vpack.c.bf16 %v1884, %v1883
    %v1900 = vsel %vm111, %v1893, 0
    %v1903 = vsel %vm111, %v1895, 0
    %v1906 = vsel %vm111, %v1896, 0
    %1908 = vmatprep.subr.bf16.mxu0 0
    %1909 = vmatpush1.bf16.xpose.msra.mxu0 0
    %1910 = vmatprep.subr.bf16.mxu0 0
    %1911 = vmatpush1.bf16.xpose.msra.mxu0 0
    %1912 = vmatprep.subr.bf16.mxu0 0
    %1913 = vmatpush1.bf16.xpose.msra.mxu0 0
    %1914 = vmatprep.subr.bf16.mxu0 0
    %1915 = vmatpush1.bf16.xpose.msra.mxu0 0
    %1916 = vmatprep.subr.bf16.mxu0 0
    %1917 = vmatpush1.bf16.xpose.msra.mxu0 0
    %1918 = vmatprep.subr.bf16.mxu0 0
    %1919 = vmatpush1.bf16.xpose.msra.mxu0 0
    %1920 = vmatprep.subr.bf16.mxu0 0
    %1921 = vmatpush1.bf16.xpose.msra.mxu0 %v1906
    %1922 = vmatprep.subr.bf16.mxu0 0
    %1923 = vmatpush1.bf16.xpose.msra.mxu0 %v1903
    %1924 = vmatprep.subr.bf16.mxu0 0
    %1925 = vmatpush2.bf16.xpose.msra.mxu0 0
    %1926 = vmatprep.subr.bf16.mxu0 0
    %1927 = vmatpush2.bf16.xpose.msra.mxu0 0
    %1928 = vmatprep.subr.bf16.mxu0 0
    %1929 = vmatpush2.bf16.xpose.msra.mxu0 0
    %1930 = vmatprep.subr.bf16.mxu0 0
    %1931 = vmatpush2.bf16.xpose.msra.mxu0 0
    %1932 = vmatprep.subr.bf16.mxu0 0
    %1933 = vmatpush2.bf16.xpose.msra.mxu0 0
    %1934 = vmatprep.subr.bf16.mxu0 0
    %1935 = vmatpush2.bf16.xpose.msra.mxu0 0
    %1936 = vmatprep.subr.bf16.mxu0 0
    %1937 = vmatpush2.bf16.xpose.msra.mxu0 0
    %1938 = vmatprep.subr.bf16.mxu0 0
    %1939 = vmatpush2.bf16.xpose.msra.mxu0 0
    %1940 = vmatprep.mubr.bf16.mxu0 0
    %1941 = vmatmul.mubr.bf16.gmra.mxu0 %v1900
    %v1942 = vpop.f32.mrf.mxu0
    %v1943 = vadd.f32 %v94, %v1942
    %v1944 = vpop.f32.mrf.mxu0
    %v1945 = vpop.f32.mrf.mxu0
    %v1946 = vpop.f32.mrf.mxu0
    %1947 = vdwg.mxu0
    %v1949 = vsel %vm111, %v1894, 0
    %v1952 = vsel %vm111, %v1897, 0
    %v1955 = vsel %vm111, %v1898, 0
    %1957 = vmatprep.subr.bf16.mxu0 0
    %1958 = vmatpush1.bf16.xpose.msra.mxu0 0
    %1959 = vmatprep.subr.bf16.mxu0 0
    %1960 = vmatpush1.bf16.xpose.msra.mxu0 0
    %1961 = vmatprep.subr.bf16.mxu0 0
    %1962 = vmatpush1.bf16.xpose.msra.mxu0 0
    %1963 = vmatprep.subr.bf16.mxu0 0
    %1964 = vmatpush1.bf16.xpose.msra.mxu0 0
    %1965 = vmatprep.subr.bf16.mxu0 0
    %1966 = vmatpush1.bf16.xpose.msra.mxu0 0
    %1967 = vmatprep.subr.bf16.mxu0 0
    %1968 = vmatpush1.bf16.xpose.msra.mxu0 0
    %1969 = vmatprep.subr.bf16.mxu0 0
    %1970 = vmatpush1.bf16.xpose.msra.mxu0 %v1955
    %1971 = vmatprep.subr.bf16.mxu0 0
    %1972 = vmatpush1.bf16.xpose.msra.mxu0 %v1952
    %1973 = vmatprep.subr.bf16.mxu0 0
    %1974 = vmatpush2.bf16.xpose.msra.mxu0 0
    %1975 = vmatprep.subr.bf16.mxu0 0
    %1976 = vmatpush2.bf16.xpose.msra.mxu0 0
    %1977 = vmatprep.subr.bf16.mxu0 0
    %1978 = vmatpush2.bf16.xpose.msra.mxu0 0
    %1979 = vmatprep.subr.bf16.mxu0 0
    %1980 = vmatpush2.bf16.xpose.msra.mxu0 0
    %1981 = vmatprep.subr.bf16.mxu0 0
    %1982 = vmatpush2.bf16.xpose.msra.mxu0 0
    %1983 = vmatprep.subr.bf16.mxu0 0
    %1984 = vmatpush2.bf16.xpose.msra.mxu0 0
    %1985 = vmatprep.subr.bf16.mxu0 0
    %1986 = vmatpush2.bf16.xpose.msra.mxu0 0
    %1987 = vmatprep.subr.bf16.mxu0 0
    %1988 = vmatpush2.bf16.xpose.msra.mxu0 0
    %1989 = vmatprep.mubr.bf16.mxu0 0
    %1990 = vmatmul.mubr.bf16.gmra.mxu0 %v1949
    %v1991 = vpop.f32.mrf.mxu0
    %v1992 = vadd.f32 %v95, %v1991
    %v1993 = vpop.f32.mrf.mxu0
    %v1994 = vpop.f32.mrf.mxu0
    %v1995 = vpop.f32.mrf.mxu0
    %1996 = vdwg.mxu0
    %v1997 = vsel %vm111, %v1943, -inf
    %1998 = vmax.xlane.f32.xlu0 %v1997
    %v1999 = vpop.xlane.xlu0 %1998
    %v2000 = vsel %vm111, %v1992, -inf
    %2001 = vmax.xlane.f32.xlu0 %v2000
    %v2002 = vpop.xlane.xlu0 %2001
    %v2003 = vsub.f32 %v1943, %v1999
    %v2004 = vsub.f32 %v1992, %v2002
    %v2005 = vmul.f32 %v2003, 1.442695
    %v2006 = vpow.pop %v2005
    %v2007 = vmul.f32 %v2004, 1.442695
    %v2008 = vpow.pop %v2007
    %v2010 = vsel %vm111, %v2006, 0
    %v2013 = vsel %vm111, %v2008, 0
    %2015 = vmatprep.subr.mxu0 0.0
    %2016 = vmatpush1.msra.mxu0 0.0
    %2017 = vmatprep.subr.mxu0 0.0
    %2018 = vmatpush1.msra.mxu0 0.0
    %2019 = vmatprep.subr.mxu0 0.0
    %2020 = vmatpush1.msra.mxu0 0.0
    %2021 = vmatprep.subr.mxu0 0.0
    %2022 = vmatpush1.msra.mxu0 0.0
    %2023 = vmatprep.subr.mxu0 0.0
    %2024 = vmatpush1.msra.mxu0 0.0
    %2025 = vmatprep.subr.mxu0 0.0
    %2026 = vmatpush1.msra.mxu0 0.0
    %2027 = vmatprep.subr.mxu0 0.0
    %2028 = vmatpush1.msra.mxu0 0.0
    %2029 = vmatprep.subr.mxu0 0.0
    %2030 = vmatpush1.msra.mxu0 0.0
    %2031 = vmatprep.subr.mxu0 0.0
    %2032 = vmatpush1.msra.mxu0 0.0
    %2033 = vmatprep.subr.mxu0 0.0
    %2034 = vmatpush1.msra.mxu0 0.0
    %2035 = vmatprep.subr.mxu0 0.0
    %2036 = vmatpush1.msra.mxu0 0.0
    %2037 = vmatprep.subr.mxu0 0.0
    %2038 = vmatpush1.msra.mxu0 0.0
    %2039 = vmatprep.subr.mxu0 0.0
    %2040 = vmatpush1.msra.mxu0 %v105
    %2041 = vmatprep.subr.mxu0 0.0
    %2042 = vmatpush1.msra.mxu0 %v104
    %2043 = vmatprep.subr.mxu0 0.0
    %2044 = vmatpush1.msra.mxu0 %v103
    %2045 = vmatprep.subr.mxu0 0.0
    %2046 = vmatpush1.msra.mxu0 %v102
    %2047 = vmatprep.subr.mxu0 0.0
    %2048 = vmatpush2.msra.mxu0 0.0
    %2049 = vmatprep.subr.mxu0 0.0
    %2050 = vmatpush2.msra.mxu0 0.0
    %2051 = vmatprep.subr.mxu0 0.0
    %2052 = vmatpush2.msra.mxu0 0.0
    %2053 = vmatprep.subr.mxu0 0.0
    %2054 = vmatpush2.msra.mxu0 0.0
    %2055 = vmatprep.subr.mxu0 0.0
    %2056 = vmatpush2.msra.mxu0 0.0
    %2057 = vmatprep.subr.mxu0 0.0
    %2058 = vmatpush2.msra.mxu0 0.0
    %2059 = vmatprep.subr.mxu0 0.0
    %2060 = vmatpush2.msra.mxu0 0.0
    %2061 = vmatprep.subr.mxu0 0.0
    %2062 = vmatpush2.msra.mxu0 0.0
    %2063 = vmatprep.subr.mxu0 0.0
    %2064 = vmatpush2.msra.mxu0 0.0
    %2065 = vmatprep.subr.mxu0 0.0
    %2066 = vmatpush2.msra.mxu0 0.0
    %2067 = vmatprep.subr.mxu0 0.0
    %2068 = vmatpush2.msra.mxu0 0.0
    %2069 = vmatprep.subr.mxu0 0.0
    %2070 = vmatpush2.msra.mxu0 0.0
    %2071 = vmatprep.subr.mxu0 0.0
    %2072 = vmatpush2.msra.mxu0 0.0
    %2073 = vmatprep.subr.mxu0 0.0
    %2074 = vmatpush2.msra.mxu0 0.0
    %2075 = vmatprep.subr.mxu0 0.0
    %2076 = vmatpush2.msra.mxu0 0.0
    %2077 = vmatprep.subr.mxu0 0.0
    %2078 = vmatpush2.msra.mxu0 0.0
    %2079 = vmatprep.mubr.f32.mxu0 0.0
    %2080 = vmatmul.mubr.f32.gmra.mxu0 %v2010
    %v2081 = vpop.f32.mrf.mxu0
    %v2082 = vadd.f32 0.0, %v2081
    %v2083 = vpop.f32.mrf.mxu0
    %2084 = vmatprep.mubr.f32.mxu0 0.0
    %2085 = vmatmul.mubr.f32.gmra.mxu0 %v2013
    %v2086 = vpop.f32.mrf.mxu0
    %v2087 = vadd.f32 0.0, %v2086
    %v2088 = vpop.f32.mrf.mxu0
    %2089 = vdwg.mxu0
    %v2090 = vrcp.pop %v2082
    %v2091 = vrcp.pop %v2087
    %v2092 = vmul.f32 %v2006, %v2090
    %v2093 = vmul.f32 %v2008, %v2091
    %v2094 = vpack.c.bf16 %v2092, %v2092
    %v2095 = vpack.c.bf16 %v2093, %v2093
    %v2096 = vpack.c.bf16 %v1886, %v1885
    %v2097 = vpack.c.bf16 %v1888, %v1887
    %v2098 = vpack.c.bf16 %v1890, %v1889
    %v2099 = vpack.c.bf16 %v1892, %v1891
    %v2101 = vsel %vm111, %v2094, 0
    %2103 = vmatprep.subr.bf16.mxu0 0
    %2104 = vmatpush1.bf16.msra.mxu0 0
    %2105 = vmatprep.subr.bf16.mxu0 0
    %2106 = vmatpush1.bf16.msra.mxu0 0
    %2107 = vmatprep.subr.bf16.mxu0 0
    %2108 = vmatpush1.bf16.msra.mxu0 0
    %2109 = vmatprep.subr.bf16.mxu0 0
    %2110 = vmatpush1.bf16.msra.mxu0 0
    %2111 = vmatprep.subr.bf16.mxu0 0
    %2112 = vmatpush1.bf16.msra.mxu0 0
    %2113 = vmatprep.subr.bf16.mxu0 0
    %2114 = vmatpush1.bf16.msra.mxu0 0
    %2115 = vmatprep.subr.bf16.mxu0 0
    %2116 = vmatpush1.bf16.msra.mxu0 %v2097
    %2117 = vmatprep.subr.bf16.mxu0 0
    %2118 = vmatpush1.bf16.msra.mxu0 %v2096
    %2119 = vmatprep.subr.bf16.mxu0 0
    %2120 = vmatpush2.bf16.msra.mxu0 0
    %2121 = vmatprep.subr.bf16.mxu0 0
    %2122 = vmatpush2.bf16.msra.mxu0 0
    %2123 = vmatprep.subr.bf16.mxu0 0
    %2124 = vmatpush2.bf16.msra.mxu0 0
    %2125 = vmatprep.subr.bf16.mxu0 0
    %2126 = vmatpush2.bf16.msra.mxu0 0
    %2127 = vmatprep.subr.bf16.mxu0 0
    %2128 = vmatpush2.bf16.msra.mxu0 0
    %2129 = vmatprep.subr.bf16.mxu0 0
    %2130 = vmatpush2.bf16.msra.mxu0 0
    %2131 = vmatprep.subr.bf16.mxu0 0
    %2132 = vmatpush2.bf16.msra.mxu0 0
    %2133 = vmatprep.subr.bf16.mxu0 0
    %2134 = vmatpush2.bf16.msra.mxu0 0
    %2135 = vmatprep.mubr.bf16.mxu0 0
    %2136 = vmatmul.mubr.bf16.gmra.mxu0 %v2101
    %v2137 = vpop.f32.mrf.mxu0
    %v2138 = vadd.f32 0.0, %v2137
    %v2139 = vpop.f32.mrf.mxu0
    %v2140 = vpop.f32.mrf.mxu0
    %v2141 = vpop.f32.mrf.mxu0
    %2142 = vdwg.mxu0
    %v2144 = vsel %vm111, %v2095, 0
    %2146 = vmatprep.subr.bf16.mxu0 0
    %2147 = vmatpush1.bf16.msra.mxu0 0
    %2148 = vmatprep.subr.bf16.mxu0 0
    %2149 = vmatpush1.bf16.msra.mxu0 0
    %2150 = vmatprep.subr.bf16.mxu0 0
    %2151 = vmatpush1.bf16.msra.mxu0 0
    %2152 = vmatprep.subr.bf16.mxu0 0
    %2153 = vmatpush1.bf16.msra.mxu0 0
    %2154 = vmatprep.subr.bf16.mxu0 0
    %2155 = vmatpush1.bf16.msra.mxu0 0
    %2156 = vmatprep.subr.bf16.mxu0 0
    %2157 = vmatpush1.bf16.msra.mxu0 0
    %2158 = vmatprep.subr.bf16.mxu0 0
    %2159 = vmatpush1.bf16.msra.mxu0 %v2099
    %2160 = vmatprep.subr.bf16.mxu0 0
    %2161 = vmatpush1.bf16.msra.mxu0 %v2098
    %2162 = vmatprep.subr.bf16.mxu0 0
    %2163 = vmatpush2.bf16.msra.mxu0 0
    %2164 = vmatprep.subr.bf16.mxu0 0
    %2165 = vmatpush2.bf16.msra.mxu0 0
    %2166 = vmatprep.subr.bf16.mxu0 0
    %2167 = vmatpush2.bf16.msra.mxu0 0
    %2168 = vmatprep.subr.bf16.mxu0 0
    %2169 = vmatpush2.bf16.msra.mxu0 0
    %2170 = vmatprep.subr.bf16.mxu0 0
    %2171 = vmatpush2.bf16.msra.mxu0 0
    %2172 = vmatprep.subr.bf16.mxu0 0
    %2173 = vmatpush2.bf16.msra.mxu0 0
    %2174 = vmatprep.subr.bf16.mxu0 0
    %2175 = vmatpush2.bf16.msra.mxu0 0
    %2176 = vmatprep.subr.bf16.mxu0 0
    %2177 = vmatpush2.bf16.msra.mxu0 0
    %2178 = vmatprep.mubr.bf16.mxu0 0
    %2179 = vmatmul.mubr.bf16.gmra.mxu0 %v2144
    %v2180 = vpop.f32.mrf.mxu0
    %v2181 = vadd.f32 0.0, %v2180
    %v2182 = vpop.f32.mrf.mxu0
    %v2183 = vpop.f32.mrf.mxu0
    %v2184 = vpop.f32.mrf.mxu0
    %2185 = vdwg.mxu0
    %v2186 = vpack.c.bf16 %v2181, %v2138
    %v2191 = vunpack.c.l.b16 %v1873
    %v2192 = vunpack.c.l.b16 %v1874
    %v2193 = vunpack.c.l.b16 %v1875
    %v2194 = vunpack.c.l.b16 %v1876
    %v2195 = vpack.c.b16 %v2192, %v2191
    %v2196 = vpack.c.b16 %v2194, %v2193
    %v2200 = vsel %vm111, %v2186, 0
    %2202 = vmatprep.subr.bf16.mxu0 0
    %2203 = vmatpush1.bf16.msra.mxu0 0
    %2204 = vmatprep.subr.bf16.mxu0 0
    %2205 = vmatpush1.bf16.msra.mxu0 0
    %2206 = vmatprep.subr.bf16.mxu0 0
    %2207 = vmatpush1.bf16.msra.mxu0 0
    %2208 = vmatprep.subr.bf16.mxu0 0
    %2209 = vmatpush1.bf16.msra.mxu0 0
    %2210 = vmatprep.subr.bf16.mxu0 0
    %2211 = vmatpush1.bf16.msra.mxu0 0
    %2212 = vmatprep.subr.bf16.mxu0 0
    %2213 = vmatpush1.bf16.msra.mxu0 0
    %2214 = vmatprep.subr.bf16.mxu0 0
    %2215 = vmatpush1.bf16.msra.mxu0 %v2196
    %2216 = vmatprep.subr.bf16.mxu0 0
    %2217 = vmatpush1.bf16.msra.mxu0 %v2195
    %2218 = vmatprep.subr.bf16.mxu0 0
    %2219 = vmatpush2.bf16.msra.mxu0 0
    %2220 = vmatprep.subr.bf16.mxu0 0
    %2221 = vmatpush2.bf16.msra.mxu0 0
    %2222 = vmatprep.subr.bf16.mxu0 0
    %2223 = vmatpush2.bf16.msra.mxu0 0
    %2224 = vmatprep.subr.bf16.mxu0 0
    %2225 = vmatpush2.bf16.msra.mxu0 0
    %2226 = vmatprep.subr.bf16.mxu0 0
    %2227 = vmatpush2.bf16.msra.mxu0 0
    %2228 = vmatprep.subr.bf16.mxu0 0
    %2229 = vmatpush2.bf16.msra.mxu0 0
    %2230 = vmatprep.subr.bf16.mxu0 0
    %2231 = vmatpush2.bf16.msra.mxu0 0
    %2232 = vmatprep.subr.bf16.mxu0 0
    %2233 = vmatpush2.bf16.msra.mxu0 0
    %2234 = vmatprep.mubr.bf16.mxu0 0
    %2235 = vmatmul.mubr.bf16.gmra.mxu0 %v2200
    %v2236 = vpop.f32.mrf.mxu0
    %v2237 = vadd.f32 0.0, %v2236
    %v2238 = vpop.f32.mrf.mxu0
    %v2239 = vpop.f32.mrf.mxu0
    %v2240 = vadd.f32 0.0, %v2239
    %v2241 = vpop.f32.mrf.mxu0
    %2242 = vdwg.mxu0
    %v2243 = vadd.f32 %v1669, %v2237
    %v2244 = vadd.f32 %v1670, %v2240
    %v2245 = vld [vmem:[%s18] sm:$0x1]
    %v2246 = vmul.f32 %v2243, %v2243
    %v2247 = vmul.f32 %v2244, %v2244
    %v2248 = vsel %vm111, %v2246, 0.0
    %2249 = vadd.xlane.f32.xlu0 %v2248
    %v2250 = vpop.xlane.xlu0 %2249
    %v2251 = vsel %vm111, %v2247, 0.0
    %2252 = vadd.xlane.f32.xlu0 %v2251
    %v2253 = vpop.xlane.xlu0 %2252
    %v2254 = vmul.f32 %v2250, %v118
    %v2255 = vmul.f32 %v2253, %v118
    %v2256 = vadd.f32 %v2254, 1e-06
    %v2257 = vadd.f32 %v2255, 1e-06
    %v2258 = vrsqrt.pop %v2256
    %v2259 = vrsqrt.pop %v2257
    %v2260 = vmul.f32 %v2243, %v2258
    %v2261 = vmul.f32 %v2244, %v2259
    %v2263 = vlaneseq
    %v2264 = vshrl.u32 %v2263, 7
    %v2265 = vsub.s32 0, %v2264
    %v2266 = vrot.slane %v2245, %v2265
    %v2268 = vmul.f32 %v2260, %v2266
    %v2269 = vmul.f32 %v2261, %v2266
    %v2270 = vld [vmem:[%s19] sm:$0xf]
    %v2271 = vld [vmem:[%s19 + $0x4] sm:$0xf]
    %v2272 = vld [vmem:[%s19 + $0x8] sm:$0xf]
    %v2273 = vld [vmem:[%s19 + $0xc] sm:$0xf]
    %v2274 = vpack.c.bf16 %v2269, %v2268
    %v2279 = vunpack.c.l.b16 %v2270
    %v2280 = vunpack.c.l.b16 %v2271
    %v2281 = vunpack.c.l.b16 %v2272
    %v2282 = vunpack.c.l.b16 %v2273
    %v2283 = vpack.c.b16 %v2280, %v2279
    %v2284 = vpack.c.b16 %v2282, %v2281
    %v2288 = vsel %vm111, %v2274, 0
    %2290 = vmatprep.subr.bf16.mxu0 0
    %2291 = vmatpush1.bf16.msra.mxu0 0
    %2292 = vmatprep.subr.bf16.mxu0 0
    %2293 = vmatpush1.bf16.msra.mxu0 0
    %2294 = vmatprep.subr.bf16.mxu0 0
    %2295 = vmatpush1.bf16.msra.mxu0 0
    %2296 = vmatprep.subr.bf16.mxu0 0
    %2297 = vmatpush1.bf16.msra.mxu0 0
    %2298 = vmatprep.subr.bf16.mxu0 0
    %2299 = vmatpush1.bf16.msra.mxu0 0
    %2300 = vmatprep.subr.bf16.mxu0 0
    %2301 = vmatpush1.bf16.msra.mxu0 0
    %2302 = vmatprep.subr.bf16.mxu0 0
    %2303 = vmatpush1.bf16.msra.mxu0 %v2284
    %2304 = vmatprep.subr.bf16.mxu0 0
    %2305 = vmatpush1.bf16.msra.mxu0 %v2283
    %2306 = vmatprep.subr.bf16.mxu0 0
    %2307 = vmatpush2.bf16.msra.mxu0 0
    %2308 = vmatprep.subr.bf16.mxu0 0
    %2309 = vmatpush2.bf16.msra.mxu0 0
    %2310 = vmatprep.subr.bf16.mxu0 0
    %2311 = vmatpush2.bf16.msra.mxu0 0
    %2312 = vmatprep.subr.bf16.mxu0 0
    %2313 = vmatpush2.bf16.msra.mxu0 0
    %2314 = vmatprep.subr.bf16.mxu0 0
    %2315 = vmatpush2.bf16.msra.mxu0 0
    %2316 = vmatprep.subr.bf16.mxu0 0
    %2317 = vmatpush2.bf16.msra.mxu0 0
    %2318 = vmatprep.subr.bf16.mxu0 0
    %2319 = vmatpush2.bf16.msra.mxu0 0
    %2320 = vmatprep.subr.bf16.mxu0 0
    %2321 = vmatpush2.bf16.msra.mxu0 0
    %2322 = vmatprep.mubr.bf16.mxu0 0
    %2323 = vmatmul.mubr.bf16.gmra.mxu0 %v2288
    %v2324 = vpop.f32.mrf.mxu0
    %v2325 = vadd.f32 0.0, %v2324
    %v2326 = vpop.f32.mrf.mxu0
    %v2327 = vpop.f32.mrf.mxu0
    %v2328 = vadd.f32 0.0, %v2327
    %v2329 = vpop.f32.mrf.mxu0
    %2330 = vdwg.mxu0
    %v2331 = vld [vmem:[%s20] sm:$0xf]
    %v2332 = vld [vmem:[%s20 + $0x4] sm:$0xf]
    %v2333 = vld [vmem:[%s20 + $0x8] sm:$0xf]
    %v2334 = vld [vmem:[%s20 + $0xc] sm:$0xf]
    %v2335 = vpack.c.bf16 %v1668, %v1667
    %v2340 = vunpack.c.l.b16 %v2331
    %v2341 = vunpack.c.l.b16 %v2332
    %v2342 = vunpack.c.l.b16 %v2333
    %v2343 = vunpack.c.l.b16 %v2334
    %v2344 = vpack.c.b16 %v2341, %v2340
    %v2345 = vpack.c.b16 %v2343, %v2342
    %v2349 = vsel %vm111, %v2335, 0
    %2351 = vmatprep.subr.bf16.mxu0 0
    %2352 = vmatpush1.bf16.msra.mxu0 0
    %2353 = vmatprep.subr.bf16.mxu0 0
    %2354 = vmatpush1.bf16.msra.mxu0 0
    %2355 = vmatprep.subr.bf16.mxu0 0
    %2356 = vmatpush1.bf16.msra.mxu0 0
    %2357 = vmatprep.subr.bf16.mxu0 0
    %2358 = vmatpush1.bf16.msra.mxu0 0
    %2359 = vmatprep.subr.bf16.mxu0 0
    %2360 = vmatpush1.bf16.msra.mxu0 0
    %2361 = vmatprep.subr.bf16.mxu0 0
    %2362 = vmatpush1.bf16.msra.mxu0 0
    %2363 = vmatprep.subr.bf16.mxu0 0
    %2364 = vmatpush1.bf16.msra.mxu0 %v2345
    %2365 = vmatprep.subr.bf16.mxu0 0
    %2366 = vmatpush1.bf16.msra.mxu0 %v2344
    %2367 = vmatprep.subr.bf16.mxu0 0
    %2368 = vmatpush2.bf16.msra.mxu0 0
    %2369 = vmatprep.subr.bf16.mxu0 0
    %2370 = vmatpush2.bf16.msra.mxu0 0
    %2371 = vmatprep.subr.bf16.mxu0 0
    %2372 = vmatpush2.bf16.msra.mxu0 0
    %2373 = vmatprep.subr.bf16.mxu0 0
    %2374 = vmatpush2.bf16.msra.mxu0 0
    %2375 = vmatprep.subr.bf16.mxu0 0
    %2376 = vmatpush2.bf16.msra.mxu0 0
    %2377 = vmatprep.subr.bf16.mxu0 0
    %2378 = vmatpush2.bf16.msra.mxu0 0
    %2379 = vmatprep.subr.bf16.mxu0 0
    %2380 = vmatpush2.bf16.msra.mxu0 0
    %2381 = vmatprep.subr.bf16.mxu0 0
    %2382 = vmatpush2.bf16.msra.mxu0 0
    %2383 = vmatprep.mubr.bf16.mxu0 0
    %2384 = vmatmul.mubr.bf16.gmra.mxu0 %v2349
    %v2385 = vpop.f32.mrf.mxu0
    %v2386 = vadd.f32 0.0, %v2385
    %v2387 = vpop.f32.mrf.mxu0
    %v2388 = vpop.f32.mrf.mxu0
    %v2389 = vadd.f32 0.0, %v2388
    %v2390 = vpop.f32.mrf.mxu0
    %2391 = vdwg.mxu0
    %s2392 = scalar_lea.vmem %s20, 16
    %v2393 = vld [vmem:[%s2392] sm:$0xf]
    %v2394 = vld [vmem:[%s2392 + $0x4] sm:$0xf]
    %v2395 = vld [vmem:[%s2392 + $0x8] sm:$0xf]
    %v2396 = vld [vmem:[%s2392 + $0xc] sm:$0xf]
    %v2401 = vunpack.c.l.b16 %v2393
    %v2402 = vunpack.c.l.b16 %v2394
    %v2403 = vunpack.c.l.b16 %v2395
    %v2404 = vunpack.c.l.b16 %v2396
    %v2405 = vpack.c.b16 %v2402, %v2401
    %v2406 = vpack.c.b16 %v2404, %v2403
    %2409 = vmatprep.subr.bf16.mxu0 0
    %2410 = vmatpush1.bf16.msra.mxu0 0
    %2411 = vmatprep.subr.bf16.mxu0 0
    %2412 = vmatpush1.bf16.msra.mxu0 0
    %2413 = vmatprep.subr.bf16.mxu0 0
    %2414 = vmatpush1.bf16.msra.mxu0 0
    %2415 = vmatprep.subr.bf16.mxu0 0
    %2416 = vmatpush1.bf16.msra.mxu0 0
    %2417 = vmatprep.subr.bf16.mxu0 0
    %2418 = vmatpush1.bf16.msra.mxu0 0
    %2419 = vmatprep.subr.bf16.mxu0 0
    %2420 = vmatpush1.bf16.msra.mxu0 0
    %2421 = vmatprep.subr.bf16.mxu0 0
    %2422 = vmatpush1.bf16.msra.mxu0 %v2406
    %2423 = vmatprep.subr.bf16.mxu0 0
    %2424 = vmatpush1.bf16.msra.mxu0 %v2405
    %2425 = vmatprep.subr.bf16.mxu0 0
    %2426 = vmatpush2.bf16.msra.mxu0 0
    %2427 = vmatprep.subr.bf16.mxu0 0
    %2428 = vmatpush2.bf16.msra.mxu0 0
    %2429 = vmatprep.subr.bf16.mxu0 0
    %2430 = vmatpush2.bf16.msra.mxu0 0
    %2431 = vmatprep.subr.bf16.mxu0 0
    %2432 = vmatpush2.bf16.msra.mxu0 0
    %2433 = vmatprep.subr.bf16.mxu0 0
    %2434 = vmatpush2.bf16.msra.mxu0 0
    %2435 = vmatprep.subr.bf16.mxu0 0
    %2436 = vmatpush2.bf16.msra.mxu0 0
    %2437 = vmatprep.subr.bf16.mxu0 0
    %2438 = vmatpush2.bf16.msra.mxu0 0
    %2439 = vmatprep.subr.bf16.mxu0 0
    %2440 = vmatpush2.bf16.msra.mxu0 0
    %2441 = vmatprep.mubr.bf16.mxu0 0
    %2442 = vmatmul.mubr.bf16.gmra.mxu0 %v2349
    %v2443 = vpop.f32.mrf.mxu0
    %v2444 = vadd.f32 0.0, %v2443
    %v2445 = vpop.f32.mrf.mxu0
    %v2446 = vpop.f32.mrf.mxu0
    %v2447 = vadd.f32 0.0, %v2446
    %v2448 = vpop.f32.mrf.mxu0
    %2449 = vdwg.mxu0
    %v2450 = vld [vmem:[%s21] sm:$0xf]
    %v2451 = vld [vmem:[%s21 + $0x4] sm:$0xf]
    %v2452 = vld [vmem:[%s21 + $0x8] sm:$0xf]
    %v2453 = vld [vmem:[%s21 + $0xc] sm:$0xf]
    %v2454 = vmul.f32 %v2386, %v344
    %v2455 = vmul.f32 %v2386, %v348
    %v2456 = vmul.f32 %v2386, %v352
    %v2457 = vmul.f32 %v2386, %v356
    %v2458 = vmul.f32 %v2389, %v344
    %v2459 = vmul.f32 %v2389, %v348
    %v2460 = vmul.f32 %v2389, %v352
    %v2461 = vmul.f32 %v2389, %v356
    %v2462 = vmul.f32 %v2444, %v344
    %v2463 = vmul.f32 %v2444, %v348
    %v2464 = vmul.f32 %v2444, %v352
    %v2465 = vmul.f32 %v2444, %v356
    %v2466 = vmul.f32 %v2447, %v344
    %v2467 = vmul.f32 %v2447, %v348
    %v2468 = vmul.f32 %v2447, %v352
    %v2469 = vmul.f32 %v2447, %v356
    %v2470 = vpack.c.bf16 %v2325, %v2325
    %v2471 = vpack.c.bf16 %v2328, %v2328
    %v2472 = vpack.c.bf16 %v2455, %v2454
    %v2473 = vpack.c.bf16 %v2457, %v2456
    %v2474 = vpack.c.bf16 %v2459, %v2458
    %v2475 = vpack.c.bf16 %v2461, %v2460
    %v2478 = vlaneseq
    %v2479 = vshrl.u32 %v2478, 7
    %v2480 = vsub.s32 0, %v2479
    %v2481 = vrot.slane %v96, %v2480
    %v2482 = vlaneseq
    %v2483 = vshrl.u32 %v2482, 7
    %v2484 = vsub.s32 0, %v2483
    %v2485 = vrot.slane %v97, %v2484
    %v2489 = vsel %vm111, %v2470, 0
    %v2492 = vsel %vm111, %v2472, 0
    %v2495 = vsel %vm111, %v2473, 0
    %2497 = vmatprep.subr.bf16.mxu0 0
    %2498 = vmatpush1.bf16.xpose.msra.mxu0 0
    %2499 = vmatprep.subr.bf16.mxu0 0
    %2500 = vmatpush1.bf16.xpose.msra.mxu0 0
    %2501 = vmatprep.subr.bf16.mxu0 0
    %2502 = vmatpush1.bf16.xpose.msra.mxu0 0
    %2503 = vmatprep.subr.bf16.mxu0 0
    %2504 = vmatpush1.bf16.xpose.msra.mxu0 0
    %2505 = vmatprep.subr.bf16.mxu0 0
    %2506 = vmatpush1.bf16.xpose.msra.mxu0 0
    %2507 = vmatprep.subr.bf16.mxu0 0
    %2508 = vmatpush1.bf16.xpose.msra.mxu0 0
    %2509 = vmatprep.subr.bf16.mxu0 0
    %2510 = vmatpush1.bf16.xpose.msra.mxu0 %v2495
    %2511 = vmatprep.subr.bf16.mxu0 0
    %2512 = vmatpush1.bf16.xpose.msra.mxu0 %v2492
    %2513 = vmatprep.subr.bf16.mxu0 0
    %2514 = vmatpush2.bf16.xpose.msra.mxu0 0
    %2515 = vmatprep.subr.bf16.mxu0 0
    %2516 = vmatpush2.bf16.xpose.msra.mxu0 0
    %2517 = vmatprep.subr.bf16.mxu0 0
    %2518 = vmatpush2.bf16.xpose.msra.mxu0 0
    %2519 = vmatprep.subr.bf16.mxu0 0
    %2520 = vmatpush2.bf16.xpose.msra.mxu0 0
    %2521 = vmatprep.subr.bf16.mxu0 0
    %2522 = vmatpush2.bf16.xpose.msra.mxu0 0
    %2523 = vmatprep.subr.bf16.mxu0 0
    %2524 = vmatpush2.bf16.xpose.msra.mxu0 0
    %2525 = vmatprep.subr.bf16.mxu0 0
    %2526 = vmatpush2.bf16.xpose.msra.mxu0 0
    %2527 = vmatprep.subr.bf16.mxu0 0
    %2528 = vmatpush2.bf16.xpose.msra.mxu0 0
    %2529 = vmatprep.mubr.bf16.mxu0 0
    %2530 = vmatmul.mubr.bf16.gmra.mxu0 %v2489
    %v2531 = vpop.f32.mrf.mxu0
    %v2532 = vadd.f32 %v2481, %v2531
    %v2533 = vpop.f32.mrf.mxu0
    %v2534 = vpop.f32.mrf.mxu0
    %v2535 = vpop.f32.mrf.mxu0
    %2536 = vdwg.mxu0
    %v2538 = vsel %vm111, %v2471, 0
    %v2541 = vsel %vm111, %v2474, 0
    %v2544 = vsel %vm111, %v2475, 0
    %2546 = vmatprep.subr.bf16.mxu0 0
    %2547 = vmatpush1.bf16.xpose.msra.mxu0 0
    %2548 = vmatprep.subr.bf16.mxu0 0
    %2549 = vmatpush1.bf16.xpose.msra.mxu0 0
    %2550 = vmatprep.subr.bf16.mxu0 0
    %2551 = vmatpush1.bf16.xpose.msra.mxu0 0
    %2552 = vmatprep.subr.bf16.mxu0 0
    %2553 = vmatpush1.bf16.xpose.msra.mxu0 0
    %2554 = vmatprep.subr.bf16.mxu0 0
    %2555 = vmatpush1.bf16.xpose.msra.mxu0 0
    %2556 = vmatprep.subr.bf16.mxu0 0
    %2557 = vmatpush1.bf16.xpose.msra.mxu0 0
    %2558 = vmatprep.subr.bf16.mxu0 0
    %2559 = vmatpush1.bf16.xpose.msra.mxu0 %v2544
    %2560 = vmatprep.subr.bf16.mxu0 0
    %2561 = vmatpush1.bf16.xpose.msra.mxu0 %v2541
    %2562 = vmatprep.subr.bf16.mxu0 0
    %2563 = vmatpush2.bf16.xpose.msra.mxu0 0
    %2564 = vmatprep.subr.bf16.mxu0 0
    %2565 = vmatpush2.bf16.xpose.msra.mxu0 0
    %2566 = vmatprep.subr.bf16.mxu0 0
    %2567 = vmatpush2.bf16.xpose.msra.mxu0 0
    %2568 = vmatprep.subr.bf16.mxu0 0
    %2569 = vmatpush2.bf16.xpose.msra.mxu0 0
    %2570 = vmatprep.subr.bf16.mxu0 0
    %2571 = vmatpush2.bf16.xpose.msra.mxu0 0
    %2572 = vmatprep.subr.bf16.mxu0 0
    %2573 = vmatpush2.bf16.xpose.msra.mxu0 0
    %2574 = vmatprep.subr.bf16.mxu0 0
    %2575 = vmatpush2.bf16.xpose.msra.mxu0 0
    %2576 = vmatprep.subr.bf16.mxu0 0
    %2577 = vmatpush2.bf16.xpose.msra.mxu0 0
    %2578 = vmatprep.mubr.bf16.mxu0 0
    %2579 = vmatmul.mubr.bf16.gmra.mxu0 %v2538
    %v2580 = vpop.f32.mrf.mxu0
    %v2581 = vadd.f32 %v2485, %v2580
    %v2582 = vpop.f32.mrf.mxu0
    %v2583 = vpop.f32.mrf.mxu0
    %v2584 = vpop.f32.mrf.mxu0
    %2585 = vdwg.mxu0
    %v2586 = vsel %vm111, %v2532, -inf
    %2587 = vmax.xlane.f32.xlu0 %v2586
    %v2588 = vpop.xlane.xlu0 %2587
    %v2589 = vsel %vm111, %v2581, -inf
    %2590 = vmax.xlane.f32.xlu0 %v2589
    %v2591 = vpop.xlane.xlu0 %2590
    %v2592 = vsub.f32 %v2532, %v2588
    %v2593 = vsub.f32 %v2581, %v2591
    %v2594 = vmul.f32 %v2592, 1.442695
    %v2595 = vpow.pop %v2594
    %v2596 = vmul.f32 %v2593, 1.442695
    %v2597 = vpow.pop %v2596
    %v2599 = vsel %vm111, %v2595, 0
    %v2602 = vsel %vm111, %v2597, 0
    %2604 = vmatprep.subr.mxu0 0.0
    %2605 = vmatpush1.msra.mxu0 0.0
    %2606 = vmatprep.subr.mxu0 0.0
    %2607 = vmatpush1.msra.mxu0 0.0
    %2608 = vmatprep.subr.mxu0 0.0
    %2609 = vmatpush1.msra.mxu0 0.0
    %2610 = vmatprep.subr.mxu0 0.0
    %2611 = vmatpush1.msra.mxu0 0.0
    %2612 = vmatprep.subr.mxu0 0.0
    %2613 = vmatpush1.msra.mxu0 0.0
    %2614 = vmatprep.subr.mxu0 0.0
    %2615 = vmatpush1.msra.mxu0 0.0
    %2616 = vmatprep.subr.mxu0 0.0
    %2617 = vmatpush1.msra.mxu0 0.0
    %2618 = vmatprep.subr.mxu0 0.0
    %2619 = vmatpush1.msra.mxu0 0.0
    %2620 = vmatprep.subr.mxu0 0.0
    %2621 = vmatpush1.msra.mxu0 0.0
    %2622 = vmatprep.subr.mxu0 0.0
    %2623 = vmatpush1.msra.mxu0 0.0
    %2624 = vmatprep.subr.mxu0 0.0
    %2625 = vmatpush1.msra.mxu0 0.0
    %2626 = vmatprep.subr.mxu0 0.0
    %2627 = vmatpush1.msra.mxu0 0.0
    %2628 = vmatprep.subr.mxu0 0.0
    %2629 = vmatpush1.msra.mxu0 %v101
    %2630 = vmatprep.subr.mxu0 0.0
    %2631 = vmatpush1.msra.mxu0 %v100
    %2632 = vmatprep.subr.mxu0 0.0
    %2633 = vmatpush1.msra.mxu0 %v99
    %2634 = vmatprep.subr.mxu0 0.0
    %2635 = vmatpush1.msra.mxu0 %v98
    %2636 = vmatprep.subr.mxu0 0.0
    %2637 = vmatpush2.msra.mxu0 0.0
    %2638 = vmatprep.subr.mxu0 0.0
    %2639 = vmatpush2.msra.mxu0 0.0
    %2640 = vmatprep.subr.mxu0 0.0
    %2641 = vmatpush2.msra.mxu0 0.0
    %2642 = vmatprep.subr.mxu0 0.0
    %2643 = vmatpush2.msra.mxu0 0.0
    %2644 = vmatprep.subr.mxu0 0.0
    %2645 = vmatpush2.msra.mxu0 0.0
    %2646 = vmatprep.subr.mxu0 0.0
    %2647 = vmatpush2.msra.mxu0 0.0
    %2648 = vmatprep.subr.mxu0 0.0
    %2649 = vmatpush2.msra.mxu0 0.0
    %2650 = vmatprep.subr.mxu0 0.0
    %2651 = vmatpush2.msra.mxu0 0.0
    %2652 = vmatprep.subr.mxu0 0.0
    %2653 = vmatpush2.msra.mxu0 0.0
    %2654 = vmatprep.subr.mxu0 0.0
    %2655 = vmatpush2.msra.mxu0 0.0
    %2656 = vmatprep.subr.mxu0 0.0
    %2657 = vmatpush2.msra.mxu0 0.0
    %2658 = vmatprep.subr.mxu0 0.0
    %2659 = vmatpush2.msra.mxu0 0.0
    %2660 = vmatprep.subr.mxu0 0.0
    %2661 = vmatpush2.msra.mxu0 0.0
    %2662 = vmatprep.subr.mxu0 0.0
    %2663 = vmatpush2.msra.mxu0 0.0
    %2664 = vmatprep.subr.mxu0 0.0
    %2665 = vmatpush2.msra.mxu0 0.0
    %2666 = vmatprep.subr.mxu0 0.0
    %2667 = vmatpush2.msra.mxu0 0.0
    %2668 = vmatprep.mubr.f32.mxu0 0.0
    %2669 = vmatmul.mubr.f32.gmra.mxu0 %v2599
    %v2670 = vpop.f32.mrf.mxu0
    %v2671 = vadd.f32 0.0, %v2670
    %v2672 = vpop.f32.mrf.mxu0
    %2673 = vmatprep.mubr.f32.mxu0 0.0
    %2674 = vmatmul.mubr.f32.gmra.mxu0 %v2602
    %v2675 = vpop.f32.mrf.mxu0
    %v2676 = vadd.f32 0.0, %v2675
    %v2677 = vpop.f32.mrf.mxu0
    %2678 = vdwg.mxu0
    %v2679 = vrcp.pop %v2671
    %v2680 = vrcp.pop %v2676
    %v2681 = vmul.f32 %v2595, %v2679
    %v2682 = vmul.f32 %v2597, %v2680
    %v2683 = vpack.c.bf16 %v2681, %v2681
    %v2684 = vpack.c.bf16 %v2682, %v2682
    %v2685 = vpack.c.bf16 %v2463, %v2462
    %v2686 = vpack.c.bf16 %v2465, %v2464
    %v2687 = vpack.c.bf16 %v2467, %v2466
    %v2688 = vpack.c.bf16 %v2469, %v2468
    %v2690 = vsel %vm111, %v2683, 0
    %2692 = vmatprep.subr.bf16.mxu0 0
    %2693 = vmatpush1.bf16.msra.mxu0 0
    %2694 = vmatprep.subr.bf16.mxu0 0
    %2695 = vmatpush1.bf16.msra.mxu0 0
    %2696 = vmatprep.subr.bf16.mxu0 0
    %2697 = vmatpush1.bf16.msra.mxu0 0
    %2698 = vmatprep.subr.bf16.mxu0 0
    %2699 = vmatpush1.bf16.msra.mxu0 0
    %2700 = vmatprep.subr.bf16.mxu0 0
    %2701 = vmatpush1.bf16.msra.mxu0 0
    %2702 = vmatprep.subr.bf16.mxu0 0
    %2703 = vmatpush1.bf16.msra.mxu0 0
    %2704 = vmatprep.subr.bf16.mxu0 0
    %2705 = vmatpush1.bf16.msra.mxu0 %v2686
    %2706 = vmatprep.subr.bf16.mxu0 0
    %2707 = vmatpush1.bf16.msra.mxu0 %v2685
    %2708 = vmatprep.subr.bf16.mxu0 0
    %2709 = vmatpush2.bf16.msra.mxu0 0
    %2710 = vmatprep.subr.bf16.mxu0 0
    %2711 = vmatpush2.bf16.msra.mxu0 0
    %2712 = vmatprep.subr.bf16.mxu0 0
    %2713 = vmatpush2.bf16.msra.mxu0 0
    %2714 = vmatprep.subr.bf16.mxu0 0
    %2715 = vmatpush2.bf16.msra.mxu0 0
    %2716 = vmatprep.subr.bf16.mxu0 0
    %2717 = vmatpush2.bf16.msra.mxu0 0
    %2718 = vmatprep.subr.bf16.mxu0 0
    %2719 = vmatpush2.bf16.msra.mxu0 0
    %2720 = vmatprep.subr.bf16.mxu0 0
    %2721 = vmatpush2.bf16.msra.mxu0 0
    %2722 = vmatprep.subr.bf16.mxu0 0
    %2723 = vmatpush2.bf16.msra.mxu0 0
    %2724 = vmatprep.mubr.bf16.mxu0 0
    %2725 = vmatmul.mubr.bf16.gmra.mxu0 %v2690
    %v2726 = vpop.f32.mrf.mxu0
    %v2727 = vadd.f32 0.0, %v2726
    %v2728 = vpop.f32.mrf.mxu0
    %v2729 = vpop.f32.mrf.mxu0
    %v2730 = vpop.f32.mrf.mxu0
    %2731 = vdwg.mxu0
    %v2733 = vsel %vm111, %v2684, 0
    %2735 = vmatprep.subr.bf16.mxu0 0
    %2736 = vmatpush1.bf16.msra.mxu0 0
    %2737 = vmatprep.subr.bf16.mxu0 0
    %2738 = vmatpush1.bf16.msra.mxu0 0
    %2739 = vmatprep.subr.bf16.mxu0 0
    %2740 = vmatpush1.bf16.msra.mxu0 0
    %2741 = vmatprep.subr.bf16.mxu0 0
    %2742 = vmatpush1.bf16.msra.mxu0 0
    %2743 = vmatprep.subr.bf16.mxu0 0
    %2744 = vmatpush1.bf16.msra.mxu0 0
    %2745 = vmatprep.subr.bf16.mxu0 0
    %2746 = vmatpush1.bf16.msra.mxu0 0
    %2747 = vmatprep.subr.bf16.mxu0 0
    %2748 = vmatpush1.bf16.msra.mxu0 %v2688
    %2749 = vmatprep.subr.bf16.mxu0 0
    %2750 = vmatpush1.bf16.msra.mxu0 %v2687
    %2751 = vmatprep.subr.bf16.mxu0 0
    %2752 = vmatpush2.bf16.msra.mxu0 0
    %2753 = vmatprep.subr.bf16.mxu0 0
    %2754 = vmatpush2.bf16.msra.mxu0 0
    %2755 = vmatprep.subr.bf16.mxu0 0
    %2756 = vmatpush2.bf16.msra.mxu0 0
    %2757 = vmatprep.subr.bf16.mxu0 0
    %2758 = vmatpush2.bf16.msra.mxu0 0
    %2759 = vmatprep.subr.bf16.mxu0 0
    %2760 = vmatpush2.bf16.msra.mxu0 0
    %2761 = vmatprep.subr.bf16.mxu0 0
    %2762 = vmatpush2.bf16.msra.mxu0 0
    %2763 = vmatprep.subr.bf16.mxu0 0
    %2764 = vmatpush2.bf16.msra.mxu0 0
    %2765 = vmatprep.subr.bf16.mxu0 0
    %2766 = vmatpush2.bf16.msra.mxu0 0
    %2767 = vmatprep.mubr.bf16.mxu0 0
    %2768 = vmatmul.mubr.bf16.gmra.mxu0 %v2733
    %v2769 = vpop.f32.mrf.mxu0
    %v2770 = vadd.f32 0.0, %v2769
    %v2771 = vpop.f32.mrf.mxu0
    %v2772 = vpop.f32.mrf.mxu0
    %v2773 = vpop.f32.mrf.mxu0
    %2774 = vdwg.mxu0
    %v2775 = vpack.c.bf16 %v2770, %v2727
    %v2780 = vunpack.c.l.b16 %v2450
    %v2781 = vunpack.c.l.b16 %v2451
    %v2782 = vunpack.c.l.b16 %v2452
    %v2783 = vunpack.c.l.b16 %v2453
    %v2784 = vpack.c.b16 %v2781, %v2780
    %v2785 = vpack.c.b16 %v2783, %v2782
    %v2789 = vsel %vm111, %v2775, 0
    %2791 = vmatprep.subr.bf16.mxu0 0
    %2792 = vmatpush1.bf16.msra.mxu0 0
    %2793 = vmatprep.subr.bf16.mxu0 0
    %2794 = vmatpush1.bf16.msra.mxu0 0
    %2795 = vmatprep.subr.bf16.mxu0 0
    %2796 = vmatpush1.bf16.msra.mxu0 0
    %2797 = vmatprep.subr.bf16.mxu0 0
    %2798 = vmatpush1.bf16.msra.mxu0 0
    %2799 = vmatprep.subr.bf16.mxu0 0
    %2800 = vmatpush1.bf16.msra.mxu0 0
    %2801 = vmatprep.subr.bf16.mxu0 0
    %2802 = vmatpush1.bf16.msra.mxu0 0
    %2803 = vmatprep.subr.bf16.mxu0 0
    %2804 = vmatpush1.bf16.msra.mxu0 %v2785
    %2805 = vmatprep.subr.bf16.mxu0 0
    %2806 = vmatpush1.bf16.msra.mxu0 %v2784
    %2807 = vmatprep.subr.bf16.mxu0 0
    %2808 = vmatpush2.bf16.msra.mxu0 0
    %2809 = vmatprep.subr.bf16.mxu0 0
    %2810 = vmatpush2.bf16.msra.mxu0 0
    %2811 = vmatprep.subr.bf16.mxu0 0
    %2812 = vmatpush2.bf16.msra.mxu0 0
    %2813 = vmatprep.subr.bf16.mxu0 0
    %2814 = vmatpush2.bf16.msra.mxu0 0
    %2815 = vmatprep.subr.bf16.mxu0 0
    %2816 = vmatpush2.bf16.msra.mxu0 0
    %2817 = vmatprep.subr.bf16.mxu0 0
    %2818 = vmatpush2.bf16.msra.mxu0 0
    %2819 = vmatprep.subr.bf16.mxu0 0
    %2820 = vmatpush2.bf16.msra.mxu0 0
    %2821 = vmatprep.subr.bf16.mxu0 0
    %2822 = vmatpush2.bf16.msra.mxu0 0
    %2823 = vmatprep.mubr.bf16.mxu0 0
    %2824 = vmatmul.mubr.bf16.gmra.mxu0 %v2789
    %v2825 = vpop.f32.mrf.mxu0
    %v2826 = vadd.f32 0.0, %v2825
    %v2827 = vpop.f32.mrf.mxu0
    %v2828 = vpop.f32.mrf.mxu0
    %v2829 = vadd.f32 0.0, %v2828
    %v2830 = vpop.f32.mrf.mxu0
    %2831 = vdwg.mxu0
    %v2832 = vadd.f32 %v2243, %v2826
    %v2833 = vadd.f32 %v2244, %v2829
    %v2834 = vld [vmem:[%s22] sm:$0x1]
    %v2835 = vmul.f32 %v2832, %v2832
    %v2836 = vmul.f32 %v2833, %v2833
    %v2837 = vsel %vm111, %v2835, 0.0
    %2838 = vadd.xlane.f32.xlu0 %v2837
    %v2839 = vpop.xlane.xlu0 %2838
    %v2840 = vsel %vm111, %v2836, 0.0
    %2841 = vadd.xlane.f32.xlu0 %v2840
    %v2842 = vpop.xlane.xlu0 %2841
    %v2843 = vmul.f32 %v2839, %v118
    %v2844 = vmul.f32 %v2842, %v118
    %v2845 = vadd.f32 %v2843, 1e-06
    %v2846 = vadd.f32 %v2844, 1e-06
    %v2847 = vrsqrt.pop %v2845
    %v2848 = vrsqrt.pop %v2846
    %v2849 = vmul.f32 %v2832, %v2847
    %v2850 = vmul.f32 %v2833, %v2848
    %v2852 = vlaneseq
    %v2853 = vshrl.u32 %v2852, 7
    %v2854 = vsub.s32 0, %v2853
    %v2855 = vrot.slane %v2834, %v2854
    %v2857 = vmul.f32 %v2849, %v2855
    %v2858 = vmul.f32 %v2850, %v2855
    %v2859 = vld [vmem:[%s23] sm:$0xf]
    %v2860 = vld [vmem:[%s23 + $0x4] sm:$0xf]
    %v2861 = vld [vmem:[%s23 + $0x8] sm:$0xf]
    %v2862 = vld [vmem:[%s23 + $0xc] sm:$0xf]
    %v2863 = vpack.c.bf16 %v2858, %v2857
    %v2868 = vunpack.c.l.b16 %v2859
    %v2869 = vunpack.c.l.b16 %v2860
    %v2870 = vunpack.c.l.b16 %v2861
    %v2871 = vunpack.c.l.b16 %v2862
    %v2872 = vpack.c.b16 %v2869, %v2868
    %v2873 = vpack.c.b16 %v2871, %v2870
    %v2877 = vsel %vm111, %v2863, 0
    %2879 = vmatprep.subr.bf16.mxu0 0
    %2880 = vmatpush1.bf16.msra.mxu0 0
    %2881 = vmatprep.subr.bf16.mxu0 0
    %2882 = vmatpush1.bf16.msra.mxu0 0
    %2883 = vmatprep.subr.bf16.mxu0 0
    %2884 = vmatpush1.bf16.msra.mxu0 0
    %2885 = vmatprep.subr.bf16.mxu0 0
    %2886 = vmatpush1.bf16.msra.mxu0 0
    %2887 = vmatprep.subr.bf16.mxu0 0
    %2888 = vmatpush1.bf16.msra.mxu0 0
    %2889 = vmatprep.subr.bf16.mxu0 0
    %2890 = vmatpush1.bf16.msra.mxu0 0
    %2891 = vmatprep.subr.bf16.mxu0 0
    %2892 = vmatpush1.bf16.msra.mxu0 %v2873
    %2893 = vmatprep.subr.bf16.mxu0 0
    %2894 = vmatpush1.bf16.msra.mxu0 %v2872
    %2895 = vmatprep.subr.bf16.mxu0 0
    %2896 = vmatpush2.bf16.msra.mxu0 0
    %2897 = vmatprep.subr.bf16.mxu0 0
    %2898 = vmatpush2.bf16.msra.mxu0 0
    %2899 = vmatprep.subr.bf16.mxu0 0
    %2900 = vmatpush2.bf16.msra.mxu0 0
    %2901 = vmatprep.subr.bf16.mxu0 0
    %2902 = vmatpush2.bf16.msra.mxu0 0
    %2903 = vmatprep.subr.bf16.mxu0 0
    %2904 = vmatpush2.bf16.msra.mxu0 0
    %2905 = vmatprep.subr.bf16.mxu0 0
    %2906 = vmatpush2.bf16.msra.mxu0 0
    %2907 = vmatprep.subr.bf16.mxu0 0
    %2908 = vmatpush2.bf16.msra.mxu0 0
    %2909 = vmatprep.subr.bf16.mxu0 0
    %2910 = vmatpush2.bf16.msra.mxu0 0
    %2911 = vmatprep.mubr.bf16.mxu0 0
    %2912 = vmatmul.mubr.bf16.gmra.mxu0 %v2877
    %v2913 = vpop.f32.mrf.mxu0
    %v2914 = vadd.f32 0.0, %v2913
    %v2915 = vpop.f32.mrf.mxu0
    %v2916 = vpop.f32.mrf.mxu0
    %v2917 = vadd.f32 0.0, %v2916
    %v2918 = vpop.f32.mrf.mxu0
    %2919 = vdwg.mxu0
    %v2920 = vmax.f32 %v2914, 0.0
    %v2921 = vmax.f32 %v2917, 0.0
    %v2922 = vld [vmem:[%s24] sm:$0xf]
    %v2923 = vld [vmem:[%s24 + $0x4] sm:$0xf]
    %v2924 = vld [vmem:[%s24 + $0x8] sm:$0xf]
    %v2925 = vld [vmem:[%s24 + $0xc] sm:$0xf]
    %v2926 = vld [vmem:[%s24 + $0x10] sm:$0xf]
    %v2927 = vld [vmem:[%s24 + $0x14] sm:$0xf]
    %v2928 = vld [vmem:[%s24 + $0x18] sm:$0xf]
    %v2929 = vld [vmem:[%s24 + $0x1c] sm:$0xf]
    %v2930 = vpack.c.bf16 %v2921, %v2920
    %v2939 = vunpack.c.l.b16 %v2922
    %v2940 = vunpack.c.l.b16 %v2923
    %v2941 = vunpack.c.l.b16 %v2924
    %v2942 = vunpack.c.l.b16 %v2925
    %v2943 = vunpack.c.l.b16 %v2926
    %v2944 = vunpack.c.l.b16 %v2927
    %v2945 = vunpack.c.l.b16 %v2928
    %v2946 = vunpack.c.l.b16 %v2929
    %v2947 = vpack.c.b16 %v2940, %v2939
    %v2948 = vpack.c.b16 %v2942, %v2941
    %v2949 = vpack.c.b16 %v2944, %v2943
    %v2950 = vpack.c.b16 %v2946, %v2945
    %v2956 = vsel %vm850, %v2930, 0
    %2958 = vmatprep.subr.bf16.mxu0 0
    %2959 = vmatpush1.bf16.msra.mxu0 0
    %2960 = vmatprep.subr.bf16.mxu0 0
    %2961 = vmatpush1.bf16.msra.mxu0 0
    %2962 = vmatprep.subr.bf16.mxu0 0
    %2963 = vmatpush1.bf16.msra.mxu0 0
    %2964 = vmatprep.subr.bf16.mxu0 0
    %2965 = vmatpush1.bf16.msra.mxu0 0
    %2966 = vmatprep.subr.bf16.mxu0 0
    %2967 = vmatpush1.bf16.msra.mxu0 %v2950
    %2968 = vmatprep.subr.bf16.mxu0 0
    %2969 = vmatpush1.bf16.msra.mxu0 %v2949
    %2970 = vmatprep.subr.bf16.mxu0 0
    %2971 = vmatpush1.bf16.msra.mxu0 %v2948
    %2972 = vmatprep.subr.bf16.mxu0 0
    %2973 = vmatpush1.bf16.msra.mxu0 %v2947
    %2974 = vmatprep.subr.bf16.mxu0 0
    %2975 = vmatpush2.bf16.msra.mxu0 0
    %2976 = vmatprep.subr.bf16.mxu0 0
    %2977 = vmatpush2.bf16.msra.mxu0 0
    %2978 = vmatprep.subr.bf16.mxu0 0
    %2979 = vmatpush2.bf16.msra.mxu0 0
    %2980 = vmatprep.subr.bf16.mxu0 0
    %2981 = vmatpush2.bf16.msra.mxu0 0
    %2982 = vmatprep.subr.bf16.mxu0 0
    %2983 = vmatpush2.bf16.msra.mxu0 0
    %2984 = vmatprep.subr.bf16.mxu0 0
    %2985 = vmatpush2.bf16.msra.mxu0 0
    %2986 = vmatprep.subr.bf16.mxu0 0
    %2987 = vmatpush2.bf16.msra.mxu0 0
    %2988 = vmatprep.subr.bf16.mxu0 0
    %2989 = vmatpush2.bf16.msra.mxu0 0
    %2990 = vmatprep.mubr.bf16.mxu0 0
    %2991 = vmatmul.mubr.bf16.gmra.mxu0 %v2956
    %v2992 = vpop.f32.mrf.mxu0
    %v2993 = vadd.f32 0.0, %v2992
    %v2994 = vpop.f32.mrf.mxu0
    %v2995 = vpop.f32.mrf.mxu0
    %v2996 = vadd.f32 0.0, %v2995
    %v2997 = vpop.f32.mrf.mxu0
    %2998 = vdwg.mxu0
    %v2999 = vadd.f32 %v2832, %v2993
    %v3000 = vadd.f32 %v2833, %v2996
    %s3001 = scalar_lea.vmem %s15, 1
    %v3002 = vld [vmem:[%s3001] sm:$0x1]
    %v3003 = vmul.f32 %v2999, %v2999
    %v3004 = vmul.f32 %v3000, %v3000
    %v3005 = vsel %vm111, %v3003, 0.0
    %3006 = vadd.xlane.f32.xlu0 %v3005
    %v3007 = vpop.xlane.xlu0 %3006
    %v3008 = vsel %vm111, %v3004, 0.0
    %3009 = vadd.xlane.f32.xlu0 %v3008
    %v3010 = vpop.xlane.xlu0 %3009
    %v3011 = vmul.f32 %v3007, %v118
    %v3012 = vmul.f32 %v3010, %v118
    %v3013 = vadd.f32 %v3011, 1e-06
    %v3014 = vadd.f32 %v3012, 1e-06
    %v3015 = vrsqrt.pop %v3013
    %v3016 = vrsqrt.pop %v3014
    %v3017 = vmul.f32 %v2999, %v3015
    %v3018 = vmul.f32 %v3000, %v3016
    %v3020 = vlaneseq
    %v3021 = vshrl.u32 %v3020, 7
    %v3022 = vsub.s32 0, %v3021
    %v3023 = vrot.slane %v3002, %v3022
    %v3025 = vmul.f32 %v3017, %v3023
    %v3026 = vmul.f32 %v3018, %v3023
    %s3027 = scalar_lea.vmem %s16, 48
    %v3028 = vld [vmem:[%s3027] sm:$0xf]
    %v3029 = vld [vmem:[%s3027 + $0x4] sm:$0xf]
    %v3030 = vld [vmem:[%s3027 + $0x8] sm:$0xf]
    %v3031 = vld [vmem:[%s3027 + $0xc] sm:$0xf]
    %v3032 = vpack.c.bf16 %v3026, %v3025
    %v3037 = vunpack.c.l.b16 %v3028
    %v3038 = vunpack.c.l.b16 %v3029
    %v3039 = vunpack.c.l.b16 %v3030
    %v3040 = vunpack.c.l.b16 %v3031
    %v3041 = vpack.c.b16 %v3038, %v3037
    %v3042 = vpack.c.b16 %v3040, %v3039
    %v3046 = vsel %vm111, %v3032, 0
    %3048 = vmatprep.subr.bf16.mxu0 0
    %3049 = vmatpush1.bf16.msra.mxu0 0
    %3050 = vmatprep.subr.bf16.mxu0 0
    %3051 = vmatpush1.bf16.msra.mxu0 0
    %3052 = vmatprep.subr.bf16.mxu0 0
    %3053 = vmatpush1.bf16.msra.mxu0 0
    %3054 = vmatprep.subr.bf16.mxu0 0
    %3055 = vmatpush1.bf16.msra.mxu0 0
    %3056 = vmatprep.subr.bf16.mxu0 0
    %3057 = vmatpush1.bf16.msra.mxu0 0
    %3058 = vmatprep.subr.bf16.mxu0 0
    %3059 = vmatpush1.bf16.msra.mxu0 0
    %3060 = vmatprep.subr.bf16.mxu0 0
    %3061 = vmatpush1.bf16.msra.mxu0 %v3042
    %3062 = vmatprep.subr.bf16.mxu0 0
    %3063 = vmatpush1.bf16.msra.mxu0 %v3041
    %3064 = vmatprep.subr.bf16.mxu0 0
    %3065 = vmatpush2.bf16.msra.mxu0 0
    %3066 = vmatprep.subr.bf16.mxu0 0
    %3067 = vmatpush2.bf16.msra.mxu0 0
    %3068 = vmatprep.subr.bf16.mxu0 0
    %3069 = vmatpush2.bf16.msra.mxu0 0
    %3070 = vmatprep.subr.bf16.mxu0 0
    %3071 = vmatpush2.bf16.msra.mxu0 0
    %3072 = vmatprep.subr.bf16.mxu0 0
    %3073 = vmatpush2.bf16.msra.mxu0 0
    %3074 = vmatprep.subr.bf16.mxu0 0
    %3075 = vmatpush2.bf16.msra.mxu0 0
    %3076 = vmatprep.subr.bf16.mxu0 0
    %3077 = vmatpush2.bf16.msra.mxu0 0
    %3078 = vmatprep.subr.bf16.mxu0 0
    %3079 = vmatpush2.bf16.msra.mxu0 0
    %3080 = vmatprep.mubr.bf16.mxu0 0
    %3081 = vmatmul.mubr.bf16.gmra.mxu0 %v3046
    %v3082 = vpop.f32.mrf.mxu0
    %v3083 = vadd.f32 0.0, %v3082
    %v3084 = vpop.f32.mrf.mxu0
    %v3085 = vpop.f32.mrf.mxu0
    %v3086 = vadd.f32 0.0, %v3085
    %v3087 = vpop.f32.mrf.mxu0
    %3088 = vdwg.mxu0
    %s3089 = scalar_lea.vmem %s16, 64
    %v3090 = vld [vmem:[%s3089] sm:$0xf]
    %v3091 = vld [vmem:[%s3089 + $0x4] sm:$0xf]
    %v3092 = vld [vmem:[%s3089 + $0x8] sm:$0xf]
    %v3093 = vld [vmem:[%s3089 + $0xc] sm:$0xf]
    %v3098 = vunpack.c.l.b16 %v3090
    %v3099 = vunpack.c.l.b16 %v3091
    %v3100 = vunpack.c.l.b16 %v3092
    %v3101 = vunpack.c.l.b16 %v3093
    %v3102 = vpack.c.b16 %v3099, %v3098
    %v3103 = vpack.c.b16 %v3101, %v3100
    %3106 = vmatprep.subr.bf16.mxu0 0
    %3107 = vmatpush1.bf16.msra.mxu0 0
    %3108 = vmatprep.subr.bf16.mxu0 0
    %3109 = vmatpush1.bf16.msra.mxu0 0
    %3110 = vmatprep.subr.bf16.mxu0 0
    %3111 = vmatpush1.bf16.msra.mxu0 0
    %3112 = vmatprep.subr.bf16.mxu0 0
    %3113 = vmatpush1.bf16.msra.mxu0 0
    %3114 = vmatprep.subr.bf16.mxu0 0
    %3115 = vmatpush1.bf16.msra.mxu0 0
    %3116 = vmatprep.subr.bf16.mxu0 0
    %3117 = vmatpush1.bf16.msra.mxu0 0
    %3118 = vmatprep.subr.bf16.mxu0 0
    %3119 = vmatpush1.bf16.msra.mxu0 %v3103
    %3120 = vmatprep.subr.bf16.mxu0 0
    %3121 = vmatpush1.bf16.msra.mxu0 %v3102
    %3122 = vmatprep.subr.bf16.mxu0 0
    %3123 = vmatpush2.bf16.msra.mxu0 0
    %3124 = vmatprep.subr.bf16.mxu0 0
    %3125 = vmatpush2.bf16.msra.mxu0 0
    %3126 = vmatprep.subr.bf16.mxu0 0
    %3127 = vmatpush2.bf16.msra.mxu0 0
    %3128 = vmatprep.subr.bf16.mxu0 0
    %3129 = vmatpush2.bf16.msra.mxu0 0
    %3130 = vmatprep.subr.bf16.mxu0 0
    %3131 = vmatpush2.bf16.msra.mxu0 0
    %3132 = vmatprep.subr.bf16.mxu0 0
    %3133 = vmatpush2.bf16.msra.mxu0 0
    %3134 = vmatprep.subr.bf16.mxu0 0
    %3135 = vmatpush2.bf16.msra.mxu0 0
    %3136 = vmatprep.subr.bf16.mxu0 0
    %3137 = vmatpush2.bf16.msra.mxu0 0
    %3138 = vmatprep.mubr.bf16.mxu0 0
    %3139 = vmatmul.mubr.bf16.gmra.mxu0 %v3046
    %v3140 = vpop.f32.mrf.mxu0
    %v3141 = vadd.f32 0.0, %v3140
    %v3142 = vpop.f32.mrf.mxu0
    %v3143 = vpop.f32.mrf.mxu0
    %v3144 = vadd.f32 0.0, %v3143
    %v3145 = vpop.f32.mrf.mxu0
    %3146 = vdwg.mxu0
    %s3147 = scalar_lea.vmem %s16, 80
    %v3148 = vld [vmem:[%s3147] sm:$0xf]
    %v3149 = vld [vmem:[%s3147 + $0x4] sm:$0xf]
    %v3150 = vld [vmem:[%s3147 + $0x8] sm:$0xf]
    %v3151 = vld [vmem:[%s3147 + $0xc] sm:$0xf]
    %v3156 = vunpack.c.l.b16 %v3148
    %v3157 = vunpack.c.l.b16 %v3149
    %v3158 = vunpack.c.l.b16 %v3150
    %v3159 = vunpack.c.l.b16 %v3151
    %v3160 = vpack.c.b16 %v3157, %v3156
    %v3161 = vpack.c.b16 %v3159, %v3158
    %3164 = vmatprep.subr.bf16.mxu0 0
    %3165 = vmatpush1.bf16.msra.mxu0 0
    %3166 = vmatprep.subr.bf16.mxu0 0
    %3167 = vmatpush1.bf16.msra.mxu0 0
    %3168 = vmatprep.subr.bf16.mxu0 0
    %3169 = vmatpush1.bf16.msra.mxu0 0
    %3170 = vmatprep.subr.bf16.mxu0 0
    %3171 = vmatpush1.bf16.msra.mxu0 0
    %3172 = vmatprep.subr.bf16.mxu0 0
    %3173 = vmatpush1.bf16.msra.mxu0 0
    %3174 = vmatprep.subr.bf16.mxu0 0
    %3175 = vmatpush1.bf16.msra.mxu0 0
    %3176 = vmatprep.subr.bf16.mxu0 0
    %3177 = vmatpush1.bf16.msra.mxu0 %v3161
    %3178 = vmatprep.subr.bf16.mxu0 0
    %3179 = vmatpush1.bf16.msra.mxu0 %v3160
    %3180 = vmatprep.subr.bf16.mxu0 0
    %3181 = vmatpush2.bf16.msra.mxu0 0
    %3182 = vmatprep.subr.bf16.mxu0 0
    %3183 = vmatpush2.bf16.msra.mxu0 0
    %3184 = vmatprep.subr.bf16.mxu0 0
    %3185 = vmatpush2.bf16.msra.mxu0 0
    %3186 = vmatprep.subr.bf16.mxu0 0
    %3187 = vmatpush2.bf16.msra.mxu0 0
    %3188 = vmatprep.subr.bf16.mxu0 0
    %3189 = vmatpush2.bf16.msra.mxu0 0
    %3190 = vmatprep.subr.bf16.mxu0 0
    %3191 = vmatpush2.bf16.msra.mxu0 0
    %3192 = vmatprep.subr.bf16.mxu0 0
    %3193 = vmatpush2.bf16.msra.mxu0 0
    %3194 = vmatprep.subr.bf16.mxu0 0
    %3195 = vmatpush2.bf16.msra.mxu0 0
    %3196 = vmatprep.mubr.bf16.mxu0 0
    %3197 = vmatmul.mubr.bf16.gmra.mxu0 %v3046
    %v3198 = vpop.f32.mrf.mxu0
    %v3199 = vadd.f32 0.0, %v3198
    %v3200 = vpop.f32.mrf.mxu0
    %v3201 = vpop.f32.mrf.mxu0
    %v3202 = vadd.f32 0.0, %v3201
    %v3203 = vpop.f32.mrf.mxu0
    %3204 = vdwg.mxu0
    %s3205 = scalar_lea.vmem %s17, 16
    %v3206 = vld [vmem:[%s3205] sm:$0xf]
    %v3207 = vld [vmem:[%s3205 + $0x4] sm:$0xf]
    %v3208 = vld [vmem:[%s3205 + $0x8] sm:$0xf]
    %v3209 = vld [vmem:[%s3205 + $0xc] sm:$0xf]
    %v3210 = vmul.f32 %v3141, %v344
    %v3211 = vmul.f32 %v3141, %v348
    %v3212 = vmul.f32 %v3141, %v352
    %v3213 = vmul.f32 %v3141, %v356
    %v3214 = vmul.f32 %v3144, %v344
    %v3215 = vmul.f32 %v3144, %v348
    %v3216 = vmul.f32 %v3144, %v352
    %v3217 = vmul.f32 %v3144, %v356
    %v3218 = vmul.f32 %v3199, %v344
    %v3219 = vmul.f32 %v3199, %v348
    %v3220 = vmul.f32 %v3199, %v352
    %v3221 = vmul.f32 %v3199, %v356
    %v3222 = vmul.f32 %v3202, %v344
    %v3223 = vmul.f32 %v3202, %v348
    %v3224 = vmul.f32 %v3202, %v352
    %v3225 = vmul.f32 %v3202, %v356
    %v3226 = vpack.c.bf16 %v3083, %v3083
    %v3227 = vpack.c.bf16 %v3086, %v3086
    %v3228 = vpack.c.bf16 %v3211, %v3210
    %v3229 = vpack.c.bf16 %v3213, %v3212
    %v3230 = vpack.c.bf16 %v3215, %v3214
    %v3231 = vpack.c.bf16 %v3217, %v3216
    %v3233 = vsel %vm111, %v3226, 0
    %v3236 = vsel %vm111, %v3228, 0
    %v3239 = vsel %vm111, %v3229, 0
    %3241 = vmatprep.subr.bf16.mxu0 0
    %3242 = vmatpush1.bf16.xpose.msra.mxu0 0
    %3243 = vmatprep.subr.bf16.mxu0 0
    %3244 = vmatpush1.bf16.xpose.msra.mxu0 0
    %3245 = vmatprep.subr.bf16.mxu0 0
    %3246 = vmatpush1.bf16.xpose.msra.mxu0 0
    %3247 = vmatprep.subr.bf16.mxu0 0
    %3248 = vmatpush1.bf16.xpose.msra.mxu0 0
    %3249 = vmatprep.subr.bf16.mxu0 0
    %3250 = vmatpush1.bf16.xpose.msra.mxu0 0
    %3251 = vmatprep.subr.bf16.mxu0 0
    %3252 = vmatpush1.bf16.xpose.msra.mxu0 0
    %3253 = vmatprep.subr.bf16.mxu0 0
    %3254 = vmatpush1.bf16.xpose.msra.mxu0 %v3239
    %3255 = vmatprep.subr.bf16.mxu0 0
    %3256 = vmatpush1.bf16.xpose.msra.mxu0 %v3236
    %3257 = vmatprep.subr.bf16.mxu0 0
    %3258 = vmatpush2.bf16.xpose.msra.mxu0 0
    %3259 = vmatprep.subr.bf16.mxu0 0
    %3260 = vmatpush2.bf16.xpose.msra.mxu0 0
    %3261 = vmatprep.subr.bf16.mxu0 0
    %3262 = vmatpush2.bf16.xpose.msra.mxu0 0
    %3263 = vmatprep.subr.bf16.mxu0 0
    %3264 = vmatpush2.bf16.xpose.msra.mxu0 0
    %3265 = vmatprep.subr.bf16.mxu0 0
    %3266 = vmatpush2.bf16.xpose.msra.mxu0 0
    %3267 = vmatprep.subr.bf16.mxu0 0
    %3268 = vmatpush2.bf16.xpose.msra.mxu0 0
    %3269 = vmatprep.subr.bf16.mxu0 0
    %3270 = vmatpush2.bf16.xpose.msra.mxu0 0
    %3271 = vmatprep.subr.bf16.mxu0 0
    %3272 = vmatpush2.bf16.xpose.msra.mxu0 0
    %3273 = vmatprep.mubr.bf16.mxu0 0
    %3274 = vmatmul.mubr.bf16.gmra.mxu0 %v3233
    %v3275 = vpop.f32.mrf.mxu0
    %v3276 = vadd.f32 %v94, %v3275
    %v3277 = vpop.f32.mrf.mxu0
    %v3278 = vpop.f32.mrf.mxu0
    %v3279 = vpop.f32.mrf.mxu0
    %3280 = vdwg.mxu0
    %v3282 = vsel %vm111, %v3227, 0
    %v3285 = vsel %vm111, %v3230, 0
    %v3288 = vsel %vm111, %v3231, 0
    %3290 = vmatprep.subr.bf16.mxu0 0
    %3291 = vmatpush1.bf16.xpose.msra.mxu0 0
    %3292 = vmatprep.subr.bf16.mxu0 0
    %3293 = vmatpush1.bf16.xpose.msra.mxu0 0
    %3294 = vmatprep.subr.bf16.mxu0 0
    %3295 = vmatpush1.bf16.xpose.msra.mxu0 0
    %3296 = vmatprep.subr.bf16.mxu0 0
    %3297 = vmatpush1.bf16.xpose.msra.mxu0 0
    %3298 = vmatprep.subr.bf16.mxu0 0
    %3299 = vmatpush1.bf16.xpose.msra.mxu0 0
    %3300 = vmatprep.subr.bf16.mxu0 0
    %3301 = vmatpush1.bf16.xpose.msra.mxu0 0
    %3302 = vmatprep.subr.bf16.mxu0 0
    %3303 = vmatpush1.bf16.xpose.msra.mxu0 %v3288
    %3304 = vmatprep.subr.bf16.mxu0 0
    %3305 = vmatpush1.bf16.xpose.msra.mxu0 %v3285
    %3306 = vmatprep.subr.bf16.mxu0 0
    %3307 = vmatpush2.bf16.xpose.msra.mxu0 0
    %3308 = vmatprep.subr.bf16.mxu0 0
    %3309 = vmatpush2.bf16.xpose.msra.mxu0 0
    %3310 = vmatprep.subr.bf16.mxu0 0
    %3311 = vmatpush2.bf16.xpose.msra.mxu0 0
    %3312 = vmatprep.subr.bf16.mxu0 0
    %3313 = vmatpush2.bf16.xpose.msra.mxu0 0
    %3314 = vmatprep.subr.bf16.mxu0 0
    %3315 = vmatpush2.bf16.xpose.msra.mxu0 0
    %3316 = vmatprep.subr.bf16.mxu0 0
    %3317 = vmatpush2.bf16.xpose.msra.mxu0 0
    %3318 = vmatprep.subr.bf16.mxu0 0
    %3319 = vmatpush2.bf16.xpose.msra.mxu0 0
    %3320 = vmatprep.subr.bf16.mxu0 0
    %3321 = vmatpush2.bf16.xpose.msra.mxu0 0
    %3322 = vmatprep.mubr.bf16.mxu0 0
    %3323 = vmatmul.mubr.bf16.gmra.mxu0 %v3282
    %v3324 = vpop.f32.mrf.mxu0
    %v3325 = vadd.f32 %v95, %v3324
    %v3326 = vpop.f32.mrf.mxu0
    %v3327 = vpop.f32.mrf.mxu0
    %v3328 = vpop.f32.mrf.mxu0
    %3329 = vdwg.mxu0
    %v3330 = vsel %vm111, %v3276, -inf
    %3331 = vmax.xlane.f32.xlu0 %v3330
    %v3332 = vpop.xlane.xlu0 %3331
    %v3333 = vsel %vm111, %v3325, -inf
    %3334 = vmax.xlane.f32.xlu0 %v3333
    %v3335 = vpop.xlane.xlu0 %3334
    %v3336 = vsub.f32 %v3276, %v3332
    %v3337 = vsub.f32 %v3325, %v3335
    %v3338 = vmul.f32 %v3336, 1.442695
    %v3339 = vpow.pop %v3338
    %v3340 = vmul.f32 %v3337, 1.442695
    %v3341 = vpow.pop %v3340
    %v3343 = vsel %vm111, %v3339, 0
    %v3346 = vsel %vm111, %v3341, 0
    %3348 = vmatprep.subr.mxu0 0.0
    %3349 = vmatpush1.msra.mxu0 0.0
    %3350 = vmatprep.subr.mxu0 0.0
    %3351 = vmatpush1.msra.mxu0 0.0
    %3352 = vmatprep.subr.mxu0 0.0
    %3353 = vmatpush1.msra.mxu0 0.0
    %3354 = vmatprep.subr.mxu0 0.0
    %3355 = vmatpush1.msra.mxu0 0.0
    %3356 = vmatprep.subr.mxu0 0.0
    %3357 = vmatpush1.msra.mxu0 0.0
    %3358 = vmatprep.subr.mxu0 0.0
    %3359 = vmatpush1.msra.mxu0 0.0
    %3360 = vmatprep.subr.mxu0 0.0
    %3361 = vmatpush1.msra.mxu0 0.0
    %3362 = vmatprep.subr.mxu0 0.0
    %3363 = vmatpush1.msra.mxu0 0.0
    %3364 = vmatprep.subr.mxu0 0.0
    %3365 = vmatpush1.msra.mxu0 0.0
    %3366 = vmatprep.subr.mxu0 0.0
    %3367 = vmatpush1.msra.mxu0 0.0
    %3368 = vmatprep.subr.mxu0 0.0
    %3369 = vmatpush1.msra.mxu0 0.0
    %3370 = vmatprep.subr.mxu0 0.0
    %3371 = vmatpush1.msra.mxu0 0.0
    %3372 = vmatprep.subr.mxu0 0.0
    %3373 = vmatpush1.msra.mxu0 %v105
    %3374 = vmatprep.subr.mxu0 0.0
    %3375 = vmatpush1.msra.mxu0 %v104
    %3376 = vmatprep.subr.mxu0 0.0
    %3377 = vmatpush1.msra.mxu0 %v103
    %3378 = vmatprep.subr.mxu0 0.0
    %3379 = vmatpush1.msra.mxu0 %v102
    %3380 = vmatprep.subr.mxu0 0.0
    %3381 = vmatpush2.msra.mxu0 0.0
    %3382 = vmatprep.subr.mxu0 0.0
    %3383 = vmatpush2.msra.mxu0 0.0
    %3384 = vmatprep.subr.mxu0 0.0
    %3385 = vmatpush2.msra.mxu0 0.0
    %3386 = vmatprep.subr.mxu0 0.0
    %3387 = vmatpush2.msra.mxu0 0.0
    %3388 = vmatprep.subr.mxu0 0.0
    %3389 = vmatpush2.msra.mxu0 0.0
    %3390 = vmatprep.subr.mxu0 0.0
    %3391 = vmatpush2.msra.mxu0 0.0
    %3392 = vmatprep.subr.mxu0 0.0
    %3393 = vmatpush2.msra.mxu0 0.0
    %3394 = vmatprep.subr.mxu0 0.0
    %3395 = vmatpush2.msra.mxu0 0.0
    %3396 = vmatprep.subr.mxu0 0.0
    %3397 = vmatpush2.msra.mxu0 0.0
    %3398 = vmatprep.subr.mxu0 0.0
    %3399 = vmatpush2.msra.mxu0 0.0
    %3400 = vmatprep.subr.mxu0 0.0
    %3401 = vmatpush2.msra.mxu0 0.0
    %3402 = vmatprep.subr.mxu0 0.0
    %3403 = vmatpush2.msra.mxu0 0.0
    %3404 = vmatprep.subr.mxu0 0.0
    %3405 = vmatpush2.msra.mxu0 0.0
    %3406 = vmatprep.subr.mxu0 0.0
    %3407 = vmatpush2.msra.mxu0 0.0
    %3408 = vmatprep.subr.mxu0 0.0
    %3409 = vmatpush2.msra.mxu0 0.0
    %3410 = vmatprep.subr.mxu0 0.0
    %3411 = vmatpush2.msra.mxu0 0.0
    %3412 = vmatprep.mubr.f32.mxu0 0.0
    %3413 = vmatmul.mubr.f32.gmra.mxu0 %v3343
    %v3414 = vpop.f32.mrf.mxu0
    %v3415 = vadd.f32 0.0, %v3414
    %v3416 = vpop.f32.mrf.mxu0
    %3417 = vmatprep.mubr.f32.mxu0 0.0
    %3418 = vmatmul.mubr.f32.gmra.mxu0 %v3346
    %v3419 = vpop.f32.mrf.mxu0
    %v3420 = vadd.f32 0.0, %v3419
    %v3421 = vpop.f32.mrf.mxu0
    %3422 = vdwg.mxu0
    %v3423 = vrcp.pop %v3415
    %v3424 = vrcp.pop %v3420
    %v3425 = vmul.f32 %v3339, %v3423
    %v3426 = vmul.f32 %v3341, %v3424
    %v3427 = vpack.c.bf16 %v3425, %v3425
    %v3428 = vpack.c.bf16 %v3426, %v3426
    %v3429 = vpack.c.bf16 %v3219, %v3218
    %v3430 = vpack.c.bf16 %v3221, %v3220
    %v3431 = vpack.c.bf16 %v3223, %v3222
    %v3432 = vpack.c.bf16 %v3225, %v3224
    %v3434 = vsel %vm111, %v3427, 0
    %3436 = vmatprep.subr.bf16.mxu0 0
    %3437 = vmatpush1.bf16.msra.mxu0 0
    %3438 = vmatprep.subr.bf16.mxu0 0
    %3439 = vmatpush1.bf16.msra.mxu0 0
    %3440 = vmatprep.subr.bf16.mxu0 0
    %3441 = vmatpush1.bf16.msra.mxu0 0
    %3442 = vmatprep.subr.bf16.mxu0 0
    %3443 = vmatpush1.bf16.msra.mxu0 0
    %3444 = vmatprep.subr.bf16.mxu0 0
    %3445 = vmatpush1.bf16.msra.mxu0 0
    %3446 = vmatprep.subr.bf16.mxu0 0
    %3447 = vmatpush1.bf16.msra.mxu0 0
    %3448 = vmatprep.subr.bf16.mxu0 0
    %3449 = vmatpush1.bf16.msra.mxu0 %v3430
    %3450 = vmatprep.subr.bf16.mxu0 0
    %3451 = vmatpush1.bf16.msra.mxu0 %v3429
    %3452 = vmatprep.subr.bf16.mxu0 0
    %3453 = vmatpush2.bf16.msra.mxu0 0
    %3454 = vmatprep.subr.bf16.mxu0 0
    %3455 = vmatpush2.bf16.msra.mxu0 0
    %3456 = vmatprep.subr.bf16.mxu0 0
    %3457 = vmatpush2.bf16.msra.mxu0 0
    %3458 = vmatprep.subr.bf16.mxu0 0
    %3459 = vmatpush2.bf16.msra.mxu0 0
    %3460 = vmatprep.subr.bf16.mxu0 0
    %3461 = vmatpush2.bf16.msra.mxu0 0
    %3462 = vmatprep.subr.bf16.mxu0 0
    %3463 = vmatpush2.bf16.msra.mxu0 0
    %3464 = vmatprep.subr.bf16.mxu0 0
    %3465 = vmatpush2.bf16.msra.mxu0 0
    %3466 = vmatprep.subr.bf16.mxu0 0
    %3467 = vmatpush2.bf16.msra.mxu0 0
    %3468 = vmatprep.mubr.bf16.mxu0 0
    %3469 = vmatmul.mubr.bf16.gmra.mxu0 %v3434
    %v3470 = vpop.f32.mrf.mxu0
    %v3471 = vadd.f32 0.0, %v3470
    %v3472 = vpop.f32.mrf.mxu0
    %v3473 = vpop.f32.mrf.mxu0
    %v3474 = vpop.f32.mrf.mxu0
    %3475 = vdwg.mxu0
    %v3477 = vsel %vm111, %v3428, 0
    %3479 = vmatprep.subr.bf16.mxu0 0
    %3480 = vmatpush1.bf16.msra.mxu0 0
    %3481 = vmatprep.subr.bf16.mxu0 0
    %3482 = vmatpush1.bf16.msra.mxu0 0
    %3483 = vmatprep.subr.bf16.mxu0 0
    %3484 = vmatpush1.bf16.msra.mxu0 0
    %3485 = vmatprep.subr.bf16.mxu0 0
    %3486 = vmatpush1.bf16.msra.mxu0 0
    %3487 = vmatprep.subr.bf16.mxu0 0
    %3488 = vmatpush1.bf16.msra.mxu0 0
    %3489 = vmatprep.subr.bf16.mxu0 0
    %3490 = vmatpush1.bf16.msra.mxu0 0
    %3491 = vmatprep.subr.bf16.mxu0 0
    %3492 = vmatpush1.bf16.msra.mxu0 %v3432
    %3493 = vmatprep.subr.bf16.mxu0 0
    %3494 = vmatpush1.bf16.msra.mxu0 %v3431
    %3495 = vmatprep.subr.bf16.mxu0 0
    %3496 = vmatpush2.bf16.msra.mxu0 0
    %3497 = vmatprep.subr.bf16.mxu0 0
    %3498 = vmatpush2.bf16.msra.mxu0 0
    %3499 = vmatprep.subr.bf16.mxu0 0
    %3500 = vmatpush2.bf16.msra.mxu0 0
    %3501 = vmatprep.subr.bf16.mxu0 0
    %3502 = vmatpush2.bf16.msra.mxu0 0
    %3503 = vmatprep.subr.bf16.mxu0 0
    %3504 = vmatpush2.bf16.msra.mxu0 0
    %3505 = vmatprep.subr.bf16.mxu0 0
    %3506 = vmatpush2.bf16.msra.mxu0 0
    %3507 = vmatprep.subr.bf16.mxu0 0
    %3508 = vmatpush2.bf16.msra.mxu0 0
    %3509 = vmatprep.subr.bf16.mxu0 0
    %3510 = vmatpush2.bf16.msra.mxu0 0
    %3511 = vmatprep.mubr.bf16.mxu0 0
    %3512 = vmatmul.mubr.bf16.gmra.mxu0 %v3477
    %v3513 = vpop.f32.mrf.mxu0
    %v3514 = vadd.f32 0.0, %v3513
    %v3515 = vpop.f32.mrf.mxu0
    %v3516 = vpop.f32.mrf.mxu0
    %v3517 = vpop.f32.mrf.mxu0
    %3518 = vdwg.mxu0
    %v3519 = vpack.c.bf16 %v3514, %v3471
    %v3524 = vunpack.c.l.b16 %v3206
    %v3525 = vunpack.c.l.b16 %v3207
    %v3526 = vunpack.c.l.b16 %v3208
    %v3527 = vunpack.c.l.b16 %v3209
    %v3528 = vpack.c.b16 %v3525, %v3524
    %v3529 = vpack.c.b16 %v3527, %v3526
    %v3533 = vsel %vm111, %v3519, 0
    %3535 = vmatprep.subr.bf16.mxu0 0
    %3536 = vmatpush1.bf16.msra.mxu0 0
    %3537 = vmatprep.subr.bf16.mxu0 0
    %3538 = vmatpush1.bf16.msra.mxu0 0
    %3539 = vmatprep.subr.bf16.mxu0 0
    %3540 = vmatpush1.bf16.msra.mxu0 0
    %3541 = vmatprep.subr.bf16.mxu0 0
    %3542 = vmatpush1.bf16.msra.mxu0 0
    %3543 = vmatprep.subr.bf16.mxu0 0
    %3544 = vmatpush1.bf16.msra.mxu0 0
    %3545 = vmatprep.subr.bf16.mxu0 0
    %3546 = vmatpush1.bf16.msra.mxu0 0
    %3547 = vmatprep.subr.bf16.mxu0 0
    %3548 = vmatpush1.bf16.msra.mxu0 %v3529
    %3549 = vmatprep.subr.bf16.mxu0 0
    %3550 = vmatpush1.bf16.msra.mxu0 %v3528
    %3551 = vmatprep.subr.bf16.mxu0 0
    %3552 = vmatpush2.bf16.msra.mxu0 0
    %3553 = vmatprep.subr.bf16.mxu0 0
    %3554 = vmatpush2.bf16.msra.mxu0 0
    %3555 = vmatprep.subr.bf16.mxu0 0
    %3556 = vmatpush2.bf16.msra.mxu0 0
    %3557 = vmatprep.subr.bf16.mxu0 0
    %3558 = vmatpush2.bf16.msra.mxu0 0
    %3559 = vmatprep.subr.bf16.mxu0 0
    %3560 = vmatpush2.bf16.msra.mxu0 0
    %3561 = vmatprep.subr.bf16.mxu0 0
    %3562 = vmatpush2.bf16.msra.mxu0 0
    %3563 = vmatprep.subr.bf16.mxu0 0
    %3564 = vmatpush2.bf16.msra.mxu0 0
    %3565 = vmatprep.subr.bf16.mxu0 0
    %3566 = vmatpush2.bf16.msra.mxu0 0
    %3567 = vmatprep.mubr.bf16.mxu0 0
    %3568 = vmatmul.mubr.bf16.gmra.mxu0 %v3533
    %v3569 = vpop.f32.mrf.mxu0
    %v3570 = vadd.f32 0.0, %v3569
    %v3571 = vpop.f32.mrf.mxu0
    %v3572 = vpop.f32.mrf.mxu0
    %v3573 = vadd.f32 0.0, %v3572
    %v3574 = vpop.f32.mrf.mxu0
    %3575 = vdwg.mxu0
    %v3576 = vadd.f32 %v2999, %v3570
    %v3577 = vadd.f32 %v3000, %v3573
    %s3578 = scalar_lea.vmem %s18, 1
    %v3579 = vld [vmem:[%s3578] sm:$0x1]
    %v3580 = vmul.f32 %v3576, %v3576
    %v3581 = vmul.f32 %v3577, %v3577
    %v3582 = vsel %vm111, %v3580, 0.0
    %3583 = vadd.xlane.f32.xlu0 %v3582
    %v3584 = vpop.xlane.xlu0 %3583
    %v3585 = vsel %vm111, %v3581, 0.0
    %3586 = vadd.xlane.f32.xlu0 %v3585
    %v3587 = vpop.xlane.xlu0 %3586
    %v3588 = vmul.f32 %v3584, %v118
    %v3589 = vmul.f32 %v3587, %v118
    %v3590 = vadd.f32 %v3588, 1e-06
    %v3591 = vadd.f32 %v3589, 1e-06
    %v3592 = vrsqrt.pop %v3590
    %v3593 = vrsqrt.pop %v3591
    %v3594 = vmul.f32 %v3576, %v3592
    %v3595 = vmul.f32 %v3577, %v3593
    %v3597 = vlaneseq
    %v3598 = vshrl.u32 %v3597, 7
    %v3599 = vsub.s32 0, %v3598
    %v3600 = vrot.slane %v3579, %v3599
    %v3602 = vmul.f32 %v3594, %v3600
    %v3603 = vmul.f32 %v3595, %v3600
    %s3604 = scalar_lea.vmem %s19, 16
    %v3605 = vld [vmem:[%s3604] sm:$0xf]
    %v3606 = vld [vmem:[%s3604 + $0x4] sm:$0xf]
    %v3607 = vld [vmem:[%s3604 + $0x8] sm:$0xf]
    %v3608 = vld [vmem:[%s3604 + $0xc] sm:$0xf]
    %v3609 = vpack.c.bf16 %v3603, %v3602
    %v3614 = vunpack.c.l.b16 %v3605
    %v3615 = vunpack.c.l.b16 %v3606
    %v3616 = vunpack.c.l.b16 %v3607
    %v3617 = vunpack.c.l.b16 %v3608
    %v3618 = vpack.c.b16 %v3615, %v3614
    %v3619 = vpack.c.b16 %v3617, %v3616
    %v3623 = vsel %vm111, %v3609, 0
    %3625 = vmatprep.subr.bf16.mxu0 0
    %3626 = vmatpush1.bf16.msra.mxu0 0
    %3627 = vmatprep.subr.bf16.mxu0 0
    %3628 = vmatpush1.bf16.msra.mxu0 0
    %3629 = vmatprep.subr.bf16.mxu0 0
    %3630 = vmatpush1.bf16.msra.mxu0 0
    %3631 = vmatprep.subr.bf16.mxu0 0
    %3632 = vmatpush1.bf16.msra.mxu0 0
    %3633 = vmatprep.subr.bf16.mxu0 0
    %3634 = vmatpush1.bf16.msra.mxu0 0
    %3635 = vmatprep.subr.bf16.mxu0 0
    %3636 = vmatpush1.bf16.msra.mxu0 0
    %3637 = vmatprep.subr.bf16.mxu0 0
    %3638 = vmatpush1.bf16.msra.mxu0 %v3619
    %3639 = vmatprep.subr.bf16.mxu0 0
    %3640 = vmatpush1.bf16.msra.mxu0 %v3618
    %3641 = vmatprep.subr.bf16.mxu0 0
    %3642 = vmatpush2.bf16.msra.mxu0 0
    %3643 = vmatprep.subr.bf16.mxu0 0
    %3644 = vmatpush2.bf16.msra.mxu0 0
    %3645 = vmatprep.subr.bf16.mxu0 0
    %3646 = vmatpush2.bf16.msra.mxu0 0
    %3647 = vmatprep.subr.bf16.mxu0 0
    %3648 = vmatpush2.bf16.msra.mxu0 0
    %3649 = vmatprep.subr.bf16.mxu0 0
    %3650 = vmatpush2.bf16.msra.mxu0 0
    %3651 = vmatprep.subr.bf16.mxu0 0
    %3652 = vmatpush2.bf16.msra.mxu0 0
    %3653 = vmatprep.subr.bf16.mxu0 0
    %3654 = vmatpush2.bf16.msra.mxu0 0
    %3655 = vmatprep.subr.bf16.mxu0 0
    %3656 = vmatpush2.bf16.msra.mxu0 0
    %3657 = vmatprep.mubr.bf16.mxu0 0
    %3658 = vmatmul.mubr.bf16.gmra.mxu0 %v3623
    %v3659 = vpop.f32.mrf.mxu0
    %v3660 = vadd.f32 0.0, %v3659
    %v3661 = vpop.f32.mrf.mxu0
    %v3662 = vpop.f32.mrf.mxu0
    %v3663 = vadd.f32 0.0, %v3662
    %v3664 = vpop.f32.mrf.mxu0
    %3665 = vdwg.mxu0
    %s3666 = scalar_lea.vmem %s20, 32
    %v3667 = vld [vmem:[%s3666] sm:$0xf]
    %v3668 = vld [vmem:[%s3666 + $0x4] sm:$0xf]
    %v3669 = vld [vmem:[%s3666 + $0x8] sm:$0xf]
    %v3670 = vld [vmem:[%s3666 + $0xc] sm:$0xf]
    %v3675 = vunpack.c.l.b16 %v3667
    %v3676 = vunpack.c.l.b16 %v3668
    %v3677 = vunpack.c.l.b16 %v3669
    %v3678 = vunpack.c.l.b16 %v3670
    %v3679 = vpack.c.b16 %v3676, %v3675
    %v3680 = vpack.c.b16 %v3678, %v3677
    %3683 = vmatprep.subr.bf16.mxu0 0
    %3684 = vmatpush1.bf16.msra.mxu0 0
    %3685 = vmatprep.subr.bf16.mxu0 0
    %3686 = vmatpush1.bf16.msra.mxu0 0
    %3687 = vmatprep.subr.bf16.mxu0 0
    %3688 = vmatpush1.bf16.msra.mxu0 0
    %3689 = vmatprep.subr.bf16.mxu0 0
    %3690 = vmatpush1.bf16.msra.mxu0 0
    %3691 = vmatprep.subr.bf16.mxu0 0
    %3692 = vmatpush1.bf16.msra.mxu0 0
    %3693 = vmatprep.subr.bf16.mxu0 0
    %3694 = vmatpush1.bf16.msra.mxu0 0
    %3695 = vmatprep.subr.bf16.mxu0 0
    %3696 = vmatpush1.bf16.msra.mxu0 %v3680
    %3697 = vmatprep.subr.bf16.mxu0 0
    %3698 = vmatpush1.bf16.msra.mxu0 %v3679
    %3699 = vmatprep.subr.bf16.mxu0 0
    %3700 = vmatpush2.bf16.msra.mxu0 0
    %3701 = vmatprep.subr.bf16.mxu0 0
    %3702 = vmatpush2.bf16.msra.mxu0 0
    %3703 = vmatprep.subr.bf16.mxu0 0
    %3704 = vmatpush2.bf16.msra.mxu0 0
    %3705 = vmatprep.subr.bf16.mxu0 0
    %3706 = vmatpush2.bf16.msra.mxu0 0
    %3707 = vmatprep.subr.bf16.mxu0 0
    %3708 = vmatpush2.bf16.msra.mxu0 0
    %3709 = vmatprep.subr.bf16.mxu0 0
    %3710 = vmatpush2.bf16.msra.mxu0 0
    %3711 = vmatprep.subr.bf16.mxu0 0
    %3712 = vmatpush2.bf16.msra.mxu0 0
    %3713 = vmatprep.subr.bf16.mxu0 0
    %3714 = vmatpush2.bf16.msra.mxu0 0
    %3715 = vmatprep.mubr.bf16.mxu0 0
    %3716 = vmatmul.mubr.bf16.gmra.mxu0 %v2349
    %v3717 = vpop.f32.mrf.mxu0
    %v3718 = vadd.f32 0.0, %v3717
    %v3719 = vpop.f32.mrf.mxu0
    %v3720 = vpop.f32.mrf.mxu0
    %v3721 = vadd.f32 0.0, %v3720
    %v3722 = vpop.f32.mrf.mxu0
    %3723 = vdwg.mxu0
    %s3724 = scalar_lea.vmem %s20, 48
    %v3725 = vld [vmem:[%s3724] sm:$0xf]
    %v3726 = vld [vmem:[%s3724 + $0x4] sm:$0xf]
    %v3727 = vld [vmem:[%s3724 + $0x8] sm:$0xf]
    %v3728 = vld [vmem:[%s3724 + $0xc] sm:$0xf]
    %v3733 = vunpack.c.l.b16 %v3725
    %v3734 = vunpack.c.l.b16 %v3726
    %v3735 = vunpack.c.l.b16 %v3727
    %v3736 = vunpack.c.l.b16 %v3728
    %v3737 = vpack.c.b16 %v3734, %v3733
    %v3738 = vpack.c.b16 %v3736, %v3735
    %3741 = vmatprep.subr.bf16.mxu0 0
    %3742 = vmatpush1.bf16.msra.mxu0 0
    %3743 = vmatprep.subr.bf16.mxu0 0
    %3744 = vmatpush1.bf16.msra.mxu0 0
    %3745 = vmatprep.subr.bf16.mxu0 0
    %3746 = vmatpush1.bf16.msra.mxu0 0
    %3747 = vmatprep.subr.bf16.mxu0 0
    %3748 = vmatpush1.bf16.msra.mxu0 0
    %3749 = vmatprep.subr.bf16.mxu0 0
    %3750 = vmatpush1.bf16.msra.mxu0 0
    %3751 = vmatprep.subr.bf16.mxu0 0
    %3752 = vmatpush1.bf16.msra.mxu0 0
    %3753 = vmatprep.subr.bf16.mxu0 0
    %3754 = vmatpush1.bf16.msra.mxu0 %v3738
    %3755 = vmatprep.subr.bf16.mxu0 0
    %3756 = vmatpush1.bf16.msra.mxu0 %v3737
    %3757 = vmatprep.subr.bf16.mxu0 0
    %3758 = vmatpush2.bf16.msra.mxu0 0
    %3759 = vmatprep.subr.bf16.mxu0 0
    %3760 = vmatpush2.bf16.msra.mxu0 0
    %3761 = vmatprep.subr.bf16.mxu0 0
    %3762 = vmatpush2.bf16.msra.mxu0 0
    %3763 = vmatprep.subr.bf16.mxu0 0
    %3764 = vmatpush2.bf16.msra.mxu0 0
    %3765 = vmatprep.subr.bf16.mxu0 0
    %3766 = vmatpush2.bf16.msra.mxu0 0
    %3767 = vmatprep.subr.bf16.mxu0 0
    %3768 = vmatpush2.bf16.msra.mxu0 0
    %3769 = vmatprep.subr.bf16.mxu0 0
    %3770 = vmatpush2.bf16.msra.mxu0 0
    %3771 = vmatprep.subr.bf16.mxu0 0
    %3772 = vmatpush2.bf16.msra.mxu0 0
    %3773 = vmatprep.mubr.bf16.mxu0 0
    %3774 = vmatmul.mubr.bf16.gmra.mxu0 %v2349
    %v3775 = vpop.f32.mrf.mxu0
    %v3776 = vadd.f32 0.0, %v3775
    %v3777 = vpop.f32.mrf.mxu0
    %v3778 = vpop.f32.mrf.mxu0
    %v3779 = vadd.f32 0.0, %v3778
    %v3780 = vpop.f32.mrf.mxu0
    %3781 = vdwg.mxu0
    %s3782 = scalar_lea.vmem %s21, 16
    %v3783 = vld [vmem:[%s3782] sm:$0xf]
    %v3784 = vld [vmem:[%s3782 + $0x4] sm:$0xf]
    %v3785 = vld [vmem:[%s3782 + $0x8] sm:$0xf]
    %v3786 = vld [vmem:[%s3782 + $0xc] sm:$0xf]
    %v3787 = vmul.f32 %v3718, %v344
    %v3788 = vmul.f32 %v3718, %v348
    %v3789 = vmul.f32 %v3718, %v352
    %v3790 = vmul.f32 %v3718, %v356
    %v3791 = vmul.f32 %v3721, %v344
    %v3792 = vmul.f32 %v3721, %v348
    %v3793 = vmul.f32 %v3721, %v352
    %v3794 = vmul.f32 %v3721, %v356
    %v3795 = vmul.f32 %v3776, %v344
    %v3796 = vmul.f32 %v3776, %v348
    %v3797 = vmul.f32 %v3776, %v352
    %v3798 = vmul.f32 %v3776, %v356
    %v3799 = vmul.f32 %v3779, %v344
    %v3800 = vmul.f32 %v3779, %v348
    %v3801 = vmul.f32 %v3779, %v352
    %v3802 = vmul.f32 %v3779, %v356
    %v3803 = vpack.c.bf16 %v3660, %v3660
    %v3804 = vpack.c.bf16 %v3663, %v3663
    %v3805 = vpack.c.bf16 %v3788, %v3787
    %v3806 = vpack.c.bf16 %v3790, %v3789
    %v3807 = vpack.c.bf16 %v3792, %v3791
    %v3808 = vpack.c.bf16 %v3794, %v3793
    %v3810 = vsel %vm111, %v3803, 0
    %v3813 = vsel %vm111, %v3805, 0
    %v3816 = vsel %vm111, %v3806, 0
    %3818 = vmatprep.subr.bf16.mxu0 0
    %3819 = vmatpush1.bf16.xpose.msra.mxu0 0
    %3820 = vmatprep.subr.bf16.mxu0 0
    %3821 = vmatpush1.bf16.xpose.msra.mxu0 0
    %3822 = vmatprep.subr.bf16.mxu0 0
    %3823 = vmatpush1.bf16.xpose.msra.mxu0 0
    %3824 = vmatprep.subr.bf16.mxu0 0
    %3825 = vmatpush1.bf16.xpose.msra.mxu0 0
    %3826 = vmatprep.subr.bf16.mxu0 0
    %3827 = vmatpush1.bf16.xpose.msra.mxu0 0
    %3828 = vmatprep.subr.bf16.mxu0 0
    %3829 = vmatpush1.bf16.xpose.msra.mxu0 0
    %3830 = vmatprep.subr.bf16.mxu0 0
    %3831 = vmatpush1.bf16.xpose.msra.mxu0 %v3816
    %3832 = vmatprep.subr.bf16.mxu0 0
    %3833 = vmatpush1.bf16.xpose.msra.mxu0 %v3813
    %3834 = vmatprep.subr.bf16.mxu0 0
    %3835 = vmatpush2.bf16.xpose.msra.mxu0 0
    %3836 = vmatprep.subr.bf16.mxu0 0
    %3837 = vmatpush2.bf16.xpose.msra.mxu0 0
    %3838 = vmatprep.subr.bf16.mxu0 0
    %3839 = vmatpush2.bf16.xpose.msra.mxu0 0
    %3840 = vmatprep.subr.bf16.mxu0 0
    %3841 = vmatpush2.bf16.xpose.msra.mxu0 0
    %3842 = vmatprep.subr.bf16.mxu0 0
    %3843 = vmatpush2.bf16.xpose.msra.mxu0 0
    %3844 = vmatprep.subr.bf16.mxu0 0
    %3845 = vmatpush2.bf16.xpose.msra.mxu0 0
    %3846 = vmatprep.subr.bf16.mxu0 0
    %3847 = vmatpush2.bf16.xpose.msra.mxu0 0
    %3848 = vmatprep.subr.bf16.mxu0 0
    %3849 = vmatpush2.bf16.xpose.msra.mxu0 0
    %3850 = vmatprep.mubr.bf16.mxu0 0
    %3851 = vmatmul.mubr.bf16.gmra.mxu0 %v3810
    %v3852 = vpop.f32.mrf.mxu0
    %v3853 = vadd.f32 %v2481, %v3852
    %v3854 = vpop.f32.mrf.mxu0
    %v3855 = vpop.f32.mrf.mxu0
    %v3856 = vpop.f32.mrf.mxu0
    %3857 = vdwg.mxu0
    %v3859 = vsel %vm111, %v3804, 0
    %v3862 = vsel %vm111, %v3807, 0
    %v3865 = vsel %vm111, %v3808, 0
    %3867 = vmatprep.subr.bf16.mxu0 0
    %3868 = vmatpush1.bf16.xpose.msra.mxu0 0
    %3869 = vmatprep.subr.bf16.mxu0 0
    %3870 = vmatpush1.bf16.xpose.msra.mxu0 0
    %3871 = vmatprep.subr.bf16.mxu0 0
    %3872 = vmatpush1.bf16.xpose.msra.mxu0 0
    %3873 = vmatprep.subr.bf16.mxu0 0
    %3874 = vmatpush1.bf16.xpose.msra.mxu0 0
    %3875 = vmatprep.subr.bf16.mxu0 0
    %3876 = vmatpush1.bf16.xpose.msra.mxu0 0
    %3877 = vmatprep.subr.bf16.mxu0 0
    %3878 = vmatpush1.bf16.xpose.msra.mxu0 0
    %3879 = vmatprep.subr.bf16.mxu0 0
    %3880 = vmatpush1.bf16.xpose.msra.mxu0 %v3865
    %3881 = vmatprep.subr.bf16.mxu0 0
    %3882 = vmatpush1.bf16.xpose.msra.mxu0 %v3862
    %3883 = vmatprep.subr.bf16.mxu0 0
    %3884 = vmatpush2.bf16.xpose.msra.mxu0 0
    %3885 = vmatprep.subr.bf16.mxu0 0
    %3886 = vmatpush2.bf16.xpose.msra.mxu0 0
    %3887 = vmatprep.subr.bf16.mxu0 0
    %3888 = vmatpush2.bf16.xpose.msra.mxu0 0
    %3889 = vmatprep.subr.bf16.mxu0 0
    %3890 = vmatpush2.bf16.xpose.msra.mxu0 0
    %3891 = vmatprep.subr.bf16.mxu0 0
    %3892 = vmatpush2.bf16.xpose.msra.mxu0 0
    %3893 = vmatprep.subr.bf16.mxu0 0
    %3894 = vmatpush2.bf16.xpose.msra.mxu0 0
    %3895 = vmatprep.subr.bf16.mxu0 0
    %3896 = vmatpush2.bf16.xpose.msra.mxu0 0
    %3897 = vmatprep.subr.bf16.mxu0 0
    %3898 = vmatpush2.bf16.xpose.msra.mxu0 0
    %3899 = vmatprep.mubr.bf16.mxu0 0
    %3900 = vmatmul.mubr.bf16.gmra.mxu0 %v3859
    %v3901 = vpop.f32.mrf.mxu0
    %v3902 = vadd.f32 %v2485, %v3901
    %v3903 = vpop.f32.mrf.mxu0
    %v3904 = vpop.f32.mrf.mxu0
    %v3905 = vpop.f32.mrf.mxu0
    %3906 = vdwg.mxu0
    %v3907 = vsel %vm111, %v3853, -inf
    %3908 = vmax.xlane.f32.xlu0 %v3907
    %v3909 = vpop.xlane.xlu0 %3908
    %v3910 = vsel %vm111, %v3902, -inf
    %3911 = vmax.xlane.f32.xlu0 %v3910
    %v3912 = vpop.xlane.xlu0 %3911
    %v3913 = vsub.f32 %v3853, %v3909
    %v3914 = vsub.f32 %v3902, %v3912
    %v3915 = vmul.f32 %v3913, 1.442695
    %v3916 = vpow.pop %v3915
    %v3917 = vmul.f32 %v3914, 1.442695
    %v3918 = vpow.pop %v3917
    %v3920 = vsel %vm111, %v3916, 0
    %v3923 = vsel %vm111, %v3918, 0
    %3925 = vmatprep.subr.mxu0 0.0
    %3926 = vmatpush1.msra.mxu0 0.0
    %3927 = vmatprep.subr.mxu0 0.0
    %3928 = vmatpush1.msra.mxu0 0.0
    %3929 = vmatprep.subr.mxu0 0.0
    %3930 = vmatpush1.msra.mxu0 0.0
    %3931 = vmatprep.subr.mxu0 0.0
    %3932 = vmatpush1.msra.mxu0 0.0
    %3933 = vmatprep.subr.mxu0 0.0
    %3934 = vmatpush1.msra.mxu0 0.0
    %3935 = vmatprep.subr.mxu0 0.0
    %3936 = vmatpush1.msra.mxu0 0.0
    %3937 = vmatprep.subr.mxu0 0.0
    %3938 = vmatpush1.msra.mxu0 0.0
    %3939 = vmatprep.subr.mxu0 0.0
    %3940 = vmatpush1.msra.mxu0 0.0
    %3941 = vmatprep.subr.mxu0 0.0
    %3942 = vmatpush1.msra.mxu0 0.0
    %3943 = vmatprep.subr.mxu0 0.0
    %3944 = vmatpush1.msra.mxu0 0.0
    %3945 = vmatprep.subr.mxu0 0.0
    %3946 = vmatpush1.msra.mxu0 0.0
    %3947 = vmatprep.subr.mxu0 0.0
    %3948 = vmatpush1.msra.mxu0 0.0
    %3949 = vmatprep.subr.mxu0 0.0
    %3950 = vmatpush1.msra.mxu0 %v101
    %3951 = vmatprep.subr.mxu0 0.0
    %3952 = vmatpush1.msra.mxu0 %v100
    %3953 = vmatprep.subr.mxu0 0.0
    %3954 = vmatpush1.msra.mxu0 %v99
    %3955 = vmatprep.subr.mxu0 0.0
    %3956 = vmatpush1.msra.mxu0 %v98
    %3957 = vmatprep.subr.mxu0 0.0
    %3958 = vmatpush2.msra.mxu0 0.0
    %3959 = vmatprep.subr.mxu0 0.0
    %3960 = vmatpush2.msra.mxu0 0.0
    %3961 = vmatprep.subr.mxu0 0.0
    %3962 = vmatpush2.msra.mxu0 0.0
    %3963 = vmatprep.subr.mxu0 0.0
    %3964 = vmatpush2.msra.mxu0 0.0
    %3965 = vmatprep.subr.mxu0 0.0
    %3966 = vmatpush2.msra.mxu0 0.0
    %3967 = vmatprep.subr.mxu0 0.0
    %3968 = vmatpush2.msra.mxu0 0.0
    %3969 = vmatprep.subr.mxu0 0.0
    %3970 = vmatpush2.msra.mxu0 0.0
    %3971 = vmatprep.subr.mxu0 0.0
    %3972 = vmatpush2.msra.mxu0 0.0
    %3973 = vmatprep.subr.mxu0 0.0
    %3974 = vmatpush2.msra.mxu0 0.0
    %3975 = vmatprep.subr.mxu0 0.0
    %3976 = vmatpush2.msra.mxu0 0.0
    %3977 = vmatprep.subr.mxu0 0.0
    %3978 = vmatpush2.msra.mxu0 0.0
    %3979 = vmatprep.subr.mxu0 0.0
    %3980 = vmatpush2.msra.mxu0 0.0
    %3981 = vmatprep.subr.mxu0 0.0
    %3982 = vmatpush2.msra.mxu0 0.0
    %3983 = vmatprep.subr.mxu0 0.0
    %3984 = vmatpush2.msra.mxu0 0.0
    %3985 = vmatprep.subr.mxu0 0.0
    %3986 = vmatpush2.msra.mxu0 0.0
    %3987 = vmatprep.subr.mxu0 0.0
    %3988 = vmatpush2.msra.mxu0 0.0
    %3989 = vmatprep.mubr.f32.mxu0 0.0
    %3990 = vmatmul.mubr.f32.gmra.mxu0 %v3920
    %v3991 = vpop.f32.mrf.mxu0
    %v3992 = vadd.f32 0.0, %v3991
    %v3993 = vpop.f32.mrf.mxu0
    %3994 = vmatprep.mubr.f32.mxu0 0.0
    %3995 = vmatmul.mubr.f32.gmra.mxu0 %v3923
    %v3996 = vpop.f32.mrf.mxu0
    %v3997 = vadd.f32 0.0, %v3996
    %v3998 = vpop.f32.mrf.mxu0
    %3999 = vdwg.mxu0
    %v4000 = vrcp.pop %v3992
    %v4001 = vrcp.pop %v3997
    %v4002 = vmul.f32 %v3916, %v4000
    %v4003 = vmul.f32 %v3918, %v4001
    %v4004 = vpack.c.bf16 %v4002, %v4002
    %v4005 = vpack.c.bf16 %v4003, %v4003
    %v4006 = vpack.c.bf16 %v3796, %v3795
    %v4007 = vpack.c.bf16 %v3798, %v3797
    %v4008 = vpack.c.bf16 %v3800, %v3799
    %v4009 = vpack.c.bf16 %v3802, %v3801
    %v4011 = vsel %vm111, %v4004, 0
    %4013 = vmatprep.subr.bf16.mxu0 0
    %4014 = vmatpush1.bf16.msra.mxu0 0
    %4015 = vmatprep.subr.bf16.mxu0 0
    %4016 = vmatpush1.bf16.msra.mxu0 0
    %4017 = vmatprep.subr.bf16.mxu0 0
    %4018 = vmatpush1.bf16.msra.mxu0 0
    %4019 = vmatprep.subr.bf16.mxu0 0
    %4020 = vmatpush1.bf16.msra.mxu0 0
    %4021 = vmatprep.subr.bf16.mxu0 0
    %4022 = vmatpush1.bf16.msra.mxu0 0
    %4023 = vmatprep.subr.bf16.mxu0 0
    %4024 = vmatpush1.bf16.msra.mxu0 0
    %4025 = vmatprep.subr.bf16.mxu0 0
    %4026 = vmatpush1.bf16.msra.mxu0 %v4007
    %4027 = vmatprep.subr.bf16.mxu0 0
    %4028 = vmatpush1.bf16.msra.mxu0 %v4006
    %4029 = vmatprep.subr.bf16.mxu0 0
    %4030 = vmatpush2.bf16.msra.mxu0 0
    %4031 = vmatprep.subr.bf16.mxu0 0
    %4032 = vmatpush2.bf16.msra.mxu0 0
    %4033 = vmatprep.subr.bf16.mxu0 0
    %4034 = vmatpush2.bf16.msra.mxu0 0
    %4035 = vmatprep.subr.bf16.mxu0 0
    %4036 = vmatpush2.bf16.msra.mxu0 0
    %4037 = vmatprep.subr.bf16.mxu0 0
    %4038 = vmatpush2.bf16.msra.mxu0 0
    %4039 = vmatprep.subr.bf16.mxu0 0
    %4040 = vmatpush2.bf16.msra.mxu0 0
    %4041 = vmatprep.subr.bf16.mxu0 0
    %4042 = vmatpush2.bf16.msra.mxu0 0
    %4043 = vmatprep.subr.bf16.mxu0 0
    %4044 = vmatpush2.bf16.msra.mxu0 0
    %4045 = vmatprep.mubr.bf16.mxu0 0
    %4046 = vmatmul.mubr.bf16.gmra.mxu0 %v4011
    %v4047 = vpop.f32.mrf.mxu0
    %v4048 = vadd.f32 0.0, %v4047
    %v4049 = vpop.f32.mrf.mxu0
    %v4050 = vpop.f32.mrf.mxu0
    %v4051 = vpop.f32.mrf.mxu0
    %4052 = vdwg.mxu0
    %v4054 = vsel %vm111, %v4005, 0
    %4056 = vmatprep.subr.bf16.mxu0 0
    %4057 = vmatpush1.bf16.msra.mxu0 0
    %4058 = vmatprep.subr.bf16.mxu0 0
    %4059 = vmatpush1.bf16.msra.mxu0 0
    %4060 = vmatprep.subr.bf16.mxu0 0
    %4061 = vmatpush1.bf16.msra.mxu0 0
    %4062 = vmatprep.subr.bf16.mxu0 0
    %4063 = vmatpush1.bf16.msra.mxu0 0
    %4064 = vmatprep.subr.bf16.mxu0 0
    %4065 = vmatpush1.bf16.msra.mxu0 0
    %4066 = vmatprep.subr.bf16.mxu0 0
    %4067 = vmatpush1.bf16.msra.mxu0 0
    %4068 = vmatprep.subr.bf16.mxu0 0
    %4069 = vmatpush1.bf16.msra.mxu0 %v4009
    %4070 = vmatprep.subr.bf16.mxu0 0
    %4071 = vmatpush1.bf16.msra.mxu0 %v4008
    %4072 = vmatprep.subr.bf16.mxu0 0
    %4073 = vmatpush2.bf16.msra.mxu0 0
    %4074 = vmatprep.subr.bf16.mxu0 0
    %4075 = vmatpush2.bf16.msra.mxu0 0
    %4076 = vmatprep.subr.bf16.mxu0 0
    %4077 = vmatpush2.bf16.msra.mxu0 0
    %4078 = vmatprep.subr.bf16.mxu0 0
    %4079 = vmatpush2.bf16.msra.mxu0 0
    %4080 = vmatprep.subr.bf16.mxu0 0
    %4081 = vmatpush2.bf16.msra.mxu0 0
    %4082 = vmatprep.subr.bf16.mxu0 0
    %4083 = vmatpush2.bf16.msra.mxu0 0
    %4084 = vmatprep.subr.bf16.mxu0 0
    %4085 = vmatpush2.bf16.msra.mxu0 0
    %4086 = vmatprep.subr.bf16.mxu0 0
    %4087 = vmatpush2.bf16.msra.mxu0 0
    %4088 = vmatprep.mubr.bf16.mxu0 0
    %4089 = vmatmul.mubr.bf16.gmra.mxu0 %v4054
    %v4090 = vpop.f32.mrf.mxu0
    %v4091 = vadd.f32 0.0, %v4090
    %v4092 = vpop.f32.mrf.mxu0
    %v4093 = vpop.f32.mrf.mxu0
    %v4094 = vpop.f32.mrf.mxu0
    %4095 = vdwg.mxu0
    %v4096 = vpack.c.bf16 %v4091, %v4048
    %v4101 = vunpack.c.l.b16 %v3783
    %v4102 = vunpack.c.l.b16 %v3784
    %v4103 = vunpack.c.l.b16 %v3785
    %v4104 = vunpack.c.l.b16 %v3786
    %v4105 = vpack.c.b16 %v4102, %v4101
    %v4106 = vpack.c.b16 %v4104, %v4103
    %v4110 = vsel %vm111, %v4096, 0
    %4112 = vmatprep.subr.bf16.mxu0 0
    %4113 = vmatpush1.bf16.msra.mxu0 0
    %4114 = vmatprep.subr.bf16.mxu0 0
    %4115 = vmatpush1.bf16.msra.mxu0 0
    %4116 = vmatprep.subr.bf16.mxu0 0
    %4117 = vmatpush1.bf16.msra.mxu0 0
    %4118 = vmatprep.subr.bf16.mxu0 0
    %4119 = vmatpush1.bf16.msra.mxu0 0
    %4120 = vmatprep.subr.bf16.mxu0 0
    %4121 = vmatpush1.bf16.msra.mxu0 0
    %4122 = vmatprep.subr.bf16.mxu0 0
    %4123 = vmatpush1.bf16.msra.mxu0 0
    %4124 = vmatprep.subr.bf16.mxu0 0
    %4125 = vmatpush1.bf16.msra.mxu0 %v4106
    %4126 = vmatprep.subr.bf16.mxu0 0
    %4127 = vmatpush1.bf16.msra.mxu0 %v4105
    %4128 = vmatprep.subr.bf16.mxu0 0
    %4129 = vmatpush2.bf16.msra.mxu0 0
    %4130 = vmatprep.subr.bf16.mxu0 0
    %4131 = vmatpush2.bf16.msra.mxu0 0
    %4132 = vmatprep.subr.bf16.mxu0 0
    %4133 = vmatpush2.bf16.msra.mxu0 0
    %4134 = vmatprep.subr.bf16.mxu0 0
    %4135 = vmatpush2.bf16.msra.mxu0 0
    %4136 = vmatprep.subr.bf16.mxu0 0
    %4137 = vmatpush2.bf16.msra.mxu0 0
    %4138 = vmatprep.subr.bf16.mxu0 0
    %4139 = vmatpush2.bf16.msra.mxu0 0
    %4140 = vmatprep.subr.bf16.mxu0 0
    %4141 = vmatpush2.bf16.msra.mxu0 0
    %4142 = vmatprep.subr.bf16.mxu0 0
    %4143 = vmatpush2.bf16.msra.mxu0 0
    %4144 = vmatprep.mubr.bf16.mxu0 0
    %4145 = vmatmul.mubr.bf16.gmra.mxu0 %v4110
    %v4146 = vpop.f32.mrf.mxu0
    %v4147 = vadd.f32 0.0, %v4146
    %v4148 = vpop.f32.mrf.mxu0
    %v4149 = vpop.f32.mrf.mxu0
    %v4150 = vadd.f32 0.0, %v4149
    %v4151 = vpop.f32.mrf.mxu0
    %4152 = vdwg.mxu0
    %v4153 = vadd.f32 %v3576, %v4147
    %v4154 = vadd.f32 %v3577, %v4150
    %s4155 = scalar_lea.vmem %s22, 1
    %v4156 = vld [vmem:[%s4155] sm:$0x1]
    %v4157 = vmul.f32 %v4153, %v4153
    %v4158 = vmul.f32 %v4154, %v4154
    %v4159 = vsel %vm111, %v4157, 0.0
    %4160 = vadd.xlane.f32.xlu0 %v4159
    %v4161 = vpop.xlane.xlu0 %4160
    %v4162 = vsel %vm111, %v4158, 0.0
    %4163 = vadd.xlane.f32.xlu0 %v4162
    %v4164 = vpop.xlane.xlu0 %4163
    %v4165 = vmul.f32 %v4161, %v118
    %v4166 = vmul.f32 %v4164, %v118
    %v4167 = vadd.f32 %v4165, 1e-06
    %v4168 = vadd.f32 %v4166, 1e-06
    %v4169 = vrsqrt.pop %v4167
    %v4170 = vrsqrt.pop %v4168
    %v4171 = vmul.f32 %v4153, %v4169
    %v4172 = vmul.f32 %v4154, %v4170
    %v4174 = vlaneseq
    %v4175 = vshrl.u32 %v4174, 7
    %v4176 = vsub.s32 0, %v4175
    %v4177 = vrot.slane %v4156, %v4176
    %v4179 = vmul.f32 %v4171, %v4177
    %v4180 = vmul.f32 %v4172, %v4177
    %s4181 = scalar_lea.vmem %s23, 16
    %v4182 = vld [vmem:[%s4181] sm:$0xf]
    %v4183 = vld [vmem:[%s4181 + $0x4] sm:$0xf]
    %v4184 = vld [vmem:[%s4181 + $0x8] sm:$0xf]
    %v4185 = vld [vmem:[%s4181 + $0xc] sm:$0xf]
    %v4186 = vpack.c.bf16 %v4180, %v4179
    %v4191 = vunpack.c.l.b16 %v4182
    %v4192 = vunpack.c.l.b16 %v4183
    %v4193 = vunpack.c.l.b16 %v4184
    %v4194 = vunpack.c.l.b16 %v4185
    %v4195 = vpack.c.b16 %v4192, %v4191
    %v4196 = vpack.c.b16 %v4194, %v4193
    %v4200 = vsel %vm111, %v4186, 0
    %4202 = vmatprep.subr.bf16.mxu0 0
    %4203 = vmatpush1.bf16.msra.mxu0 0
    %4204 = vmatprep.subr.bf16.mxu0 0
    %4205 = vmatpush1.bf16.msra.mxu0 0
    %4206 = vmatprep.subr.bf16.mxu0 0
    %4207 = vmatpush1.bf16.msra.mxu0 0
    %4208 = vmatprep.subr.bf16.mxu0 0
    %4209 = vmatpush1.bf16.msra.mxu0 0
    %4210 = vmatprep.subr.bf16.mxu0 0
    %4211 = vmatpush1.bf16.msra.mxu0 0
    %4212 = vmatprep.subr.bf16.mxu0 0
    %4213 = vmatpush1.bf16.msra.mxu0 0
    %4214 = vmatprep.subr.bf16.mxu0 0
    %4215 = vmatpush1.bf16.msra.mxu0 %v4196
    %4216 = vmatprep.subr.bf16.mxu0 0
    %4217 = vmatpush1.bf16.msra.mxu0 %v4195
    %4218 = vmatprep.subr.bf16.mxu0 0
    %4219 = vmatpush2.bf16.msra.mxu0 0
    %4220 = vmatprep.subr.bf16.mxu0 0
    %4221 = vmatpush2.bf16.msra.mxu0 0
    %4222 = vmatprep.subr.bf16.mxu0 0
    %4223 = vmatpush2.bf16.msra.mxu0 0
    %4224 = vmatprep.subr.bf16.mxu0 0
    %4225 = vmatpush2.bf16.msra.mxu0 0
    %4226 = vmatprep.subr.bf16.mxu0 0
    %4227 = vmatpush2.bf16.msra.mxu0 0
    %4228 = vmatprep.subr.bf16.mxu0 0
    %4229 = vmatpush2.bf16.msra.mxu0 0
    %4230 = vmatprep.subr.bf16.mxu0 0
    %4231 = vmatpush2.bf16.msra.mxu0 0
    %4232 = vmatprep.subr.bf16.mxu0 0
    %4233 = vmatpush2.bf16.msra.mxu0 0
    %4234 = vmatprep.mubr.bf16.mxu0 0
    %4235 = vmatmul.mubr.bf16.gmra.mxu0 %v4200
    %v4236 = vpop.f32.mrf.mxu0
    %v4237 = vadd.f32 0.0, %v4236
    %v4238 = vpop.f32.mrf.mxu0
    %v4239 = vpop.f32.mrf.mxu0
    %v4240 = vadd.f32 0.0, %v4239
    %v4241 = vpop.f32.mrf.mxu0
    %4242 = vdwg.mxu0
    %v4243 = vmax.f32 %v4237, 0.0
    %v4244 = vmax.f32 %v4240, 0.0
    %s4245 = scalar_lea.vmem %s24, 32
    %v4246 = vld [vmem:[%s4245] sm:$0xf]
    %v4247 = vld [vmem:[%s4245 + $0x4] sm:$0xf]
    %v4248 = vld [vmem:[%s4245 + $0x8] sm:$0xf]
    %v4249 = vld [vmem:[%s4245 + $0xc] sm:$0xf]
    %v4250 = vld [vmem:[%s4245 + $0x10] sm:$0xf]
    %v4251 = vld [vmem:[%s4245 + $0x14] sm:$0xf]
    %v4252 = vld [vmem:[%s4245 + $0x18] sm:$0xf]
    %v4253 = vld [vmem:[%s4245 + $0x1c] sm:$0xf]
    %v4254 = vpack.c.bf16 %v4244, %v4243
    %v4263 = vunpack.c.l.b16 %v4246
    %v4264 = vunpack.c.l.b16 %v4247
    %v4265 = vunpack.c.l.b16 %v4248
    %v4266 = vunpack.c.l.b16 %v4249
    %v4267 = vunpack.c.l.b16 %v4250
    %v4268 = vunpack.c.l.b16 %v4251
    %v4269 = vunpack.c.l.b16 %v4252
    %v4270 = vunpack.c.l.b16 %v4253
    %v4271 = vpack.c.b16 %v4264, %v4263
    %v4272 = vpack.c.b16 %v4266, %v4265
    %v4273 = vpack.c.b16 %v4268, %v4267
    %v4274 = vpack.c.b16 %v4270, %v4269
    %v4280 = vsel %vm850, %v4254, 0
    %4282 = vmatprep.subr.bf16.mxu0 0
    %4283 = vmatpush1.bf16.msra.mxu0 0
    %4284 = vmatprep.subr.bf16.mxu0 0
    %4285 = vmatpush1.bf16.msra.mxu0 0
    %4286 = vmatprep.subr.bf16.mxu0 0
    %4287 = vmatpush1.bf16.msra.mxu0 0
    %4288 = vmatprep.subr.bf16.mxu0 0
    %4289 = vmatpush1.bf16.msra.mxu0 0
    %4290 = vmatprep.subr.bf16.mxu0 0
    %4291 = vmatpush1.bf16.msra.mxu0 %v4274
    %4292 = vmatprep.subr.bf16.mxu0 0
    %4293 = vmatpush1.bf16.msra.mxu0 %v4273
    %4294 = vmatprep.subr.bf16.mxu0 0
    %4295 = vmatpush1.bf16.msra.mxu0 %v4272
    %4296 = vmatprep.subr.bf16.mxu0 0
    %4297 = vmatpush1.bf16.msra.mxu0 %v4271
    %4298 = vmatprep.subr.bf16.mxu0 0
    %4299 = vmatpush2.bf16.msra.mxu0 0
    %4300 = vmatprep.subr.bf16.mxu0 0
    %4301 = vmatpush2.bf16.msra.mxu0 0
    %4302 = vmatprep.subr.bf16.mxu0 0
    %4303 = vmatpush2.bf16.msra.mxu0 0
    %4304 = vmatprep.subr.bf16.mxu0 0
    %4305 = vmatpush2.bf16.msra.mxu0 0
    %4306 = vmatprep.subr.bf16.mxu0 0
    %4307 = vmatpush2.bf16.msra.mxu0 0
    %4308 = vmatprep.subr.bf16.mxu0 0
    %4309 = vmatpush2.bf16.msra.mxu0 0
    %4310 = vmatprep.subr.bf16.mxu0 0
    %4311 = vmatpush2.bf16.msra.mxu0 0
    %4312 = vmatprep.subr.bf16.mxu0 0
    %4313 = vmatpush2.bf16.msra.mxu0 0
    %4314 = vmatprep.mubr.bf16.mxu0 0
    %4315 = vmatmul.mubr.bf16.gmra.mxu0 %v4280
    %v4316 = vpop.f32.mrf.mxu0
    %v4317 = vadd.f32 0.0, %v4316
    %v4318 = vpop.f32.mrf.mxu0
    %v4319 = vpop.f32.mrf.mxu0
    %v4320 = vadd.f32 0.0, %v4319
    %v4321 = vpop.f32.mrf.mxu0
    %4322 = vdwg.mxu0
    %v4323 = vadd.f32 %v4153, %v4317
    %v4324 = vadd.f32 %v4154, %v4320
    %v4325 = vld [vmem:[%s25] sm:$0x1]
    %v4326 = vmul.f32 %v4323, %v4323
    %v4327 = vmul.f32 %v4324, %v4324
    %v4330 = vrot.slane %v4327, 7
    %vm4331 = vcmask 1041409
    %v4332 = vsel %vm4331, %v4330, %v4326
    %vm4334 = vcmask 254976
    %v4335 = vsel %vm4334, %v4332, 0.0
    %4336 = vadd.xlane.f32.xlu0 %v4335
    %v4337 = vpop.xlane.xlu0 %4336
    %v4338 = vmul.f32 %v4337, %v118
    %v4339 = vadd.f32 %v4338, 1e-06
    %v4340 = vrsqrt.pop %v4339
    %v4342 = vrot.slane %v4340, 1
    %v4345 = vmul.f32 %v4323, %v4340
    %v4346 = vmul.f32 %v4324, %v4342
    %v4348 = vlaneseq
    %v4349 = vshrl.u32 %v4348, 7
    %v4350 = vsub.s32 0, %v4349
    %v4351 = vrot.slane %v4325, %v4350
    %v4353 = vmul.f32 %v4345, %v4351
    %v4354 = vmul.f32 %v4346, %v4351
    %v4355 = vld [vmem:[%s26] sm:$0xf]
    %v4356 = vld [vmem:[%s26 + $0x4] sm:$0xf]
    %v4357 = vld [vmem:[%s26 + $0x8] sm:$0xf]
    %v4358 = vld [vmem:[%s26 + $0xc] sm:$0xf]
    %v4359 = vpack.c.bf16 %v4353, %v4353
    %v4360 = vpack.c.bf16 %v4354, %v4354
    %v4361 = vld [vmem:[%s27] sm:$0x1]
    %v4363 = vlaneseq
    %v4364 = vshrl.u32 %v4363, 7
    %v4365 = vsub.s32 0, %v4364
    %v4366 = vrot.slane %v4361, %v4365
    %v4370 = vunpack.c.l.b16 %v4359
    %v4371 = vunpack.c.l.b16 %v4360
    %v4372 = vrot.slane %v4371, 7
    %v4373 = vsel %vm4331, %v4372, %v4370
    %v4374 = vpack.c.b16 %v4373, %v4373
    %v4379 = vunpack.c.l.b16 %v4355
    %v4380 = vunpack.c.l.b16 %v4356
    %v4381 = vunpack.c.l.b16 %v4357
    %v4382 = vunpack.c.l.b16 %v4358
    %v4383 = vpack.c.b16 %v4380, %v4379
    %v4384 = vpack.c.b16 %v4382, %v4381
    %v4388 = vsel %vm111, %v4374, 0
    %4390 = vmatprep.subr.bf16.mxu0 0
    %4391 = vmatpush1.bf16.msra.mxu0 0
    %4392 = vmatprep.subr.bf16.mxu0 0
    %4393 = vmatpush1.bf16.msra.mxu0 0
    %4394 = vmatprep.subr.bf16.mxu0 0
    %4395 = vmatpush1.bf16.msra.mxu0 0
    %4396 = vmatprep.subr.bf16.mxu0 0
    %4397 = vmatpush1.bf16.msra.mxu0 0
    %4398 = vmatprep.subr.bf16.mxu0 0
    %4399 = vmatpush1.bf16.msra.mxu0 0
    %4400 = vmatprep.subr.bf16.mxu0 0
    %4401 = vmatpush1.bf16.msra.mxu0 0
    %4402 = vmatprep.subr.bf16.mxu0 0
    %4403 = vmatpush1.bf16.msra.mxu0 %v4384
    %4404 = vmatprep.subr.bf16.mxu0 0
    %4405 = vmatpush1.bf16.msra.mxu0 %v4383
    %4406 = vmatprep.subr.bf16.mxu0 0
    %4407 = vmatpush2.bf16.msra.mxu0 0
    %4408 = vmatprep.subr.bf16.mxu0 0
    %4409 = vmatpush2.bf16.msra.mxu0 0
    %4410 = vmatprep.subr.bf16.mxu0 0
    %4411 = vmatpush2.bf16.msra.mxu0 0
    %4412 = vmatprep.subr.bf16.mxu0 0
    %4413 = vmatpush2.bf16.msra.mxu0 0
    %4414 = vmatprep.subr.bf16.mxu0 0
    %4415 = vmatpush2.bf16.msra.mxu0 0
    %4416 = vmatprep.subr.bf16.mxu0 0
    %4417 = vmatpush2.bf16.msra.mxu0 0
    %4418 = vmatprep.subr.bf16.mxu0 0
    %4419 = vmatpush2.bf16.msra.mxu0 0
    %4420 = vmatprep.subr.bf16.mxu0 0
    %4421 = vmatpush2.bf16.msra.mxu0 0
    %4422 = vmatprep.mubr.bf16.mxu0 0
    %4423 = vmatmul.mubr.bf16.gmra.mxu0 %v4388
    %v4424 = vpop.f32.mrf.mxu0
    %v4425 = vadd.f32 %v4366, %v4424
    %v4426 = vpop.f32.mrf.mxu0
    %v4427 = vpop.f32.mrf.mxu0
    %v4428 = vpop.f32.mrf.mxu0
    %4429 = vdwg.mxu0
    %4430 = vst [vmem:[#allocation2] sm:$0x3] %v4425
    // Predicated region
    $region114: #{_lambda_.1} parent=1 // pred_check
      _
    $region115: #{_lambda_.1} parent=1 // pred_check_branch
      %4432 = sbr.rel (0) target = $region117
    $region116: #{_lambda_.1} parent=1 // pred_region
      %s4434 = ssub.s32 32, 32
      %4435 = vsyncadd [#allocation3], %s4434
      %s4437 = sshll.u32 [#allocation2], 4
      %s4438 = int_to_ptr.vmem [resolvable:$true] %s4437
      %4440 = dma.vmem_to_hbm [thread:$0]  %s4438, 32, %s28, [#allocation3]
    $region117: #{_lambda_.1} parent=1 // pred_fallthru
      _
    // Predicated region
    $region118: #{_lambda_.1} parent=1 // pred_check
      _
    $region119: #{_lambda_.1} parent=1 // pred_check_branch
      %4442 = sbr.rel (0) target = $region121
    $region120: #{_lambda_.1} parent=1 // pred_region
      %4443 = dma.done [#allocation3], 32
    $region121: #{_lambda_.1} parent=1 // pred_fallthru
      _
    %4444 = vsyncpa [#allocation3], 1

</llo_original>
